<compile_context>
chip_gen: v6e
topology: v6e:2x2x1
jax: 0.10.0
libtpu: 0.0.40
codegen_flags: <defaults>
</compile_context>

<pallas_src>
import jax
import jax.numpy as jnp
from jax import lax
from jax.experimental import pallas as pl
from jax.experimental.pallas import tpu as pltpu

# ----- model config (mirrors the PyTorch globals) -----
N_EMBD = 32
BLOCK_SIZE = 32
N_HEAD = 2
N_LAYER = 2
VOCAB_SIZE = 65
LN_EPS = 1e-5          # PyTorch nn.LayerNorm default
V_PAD = 128            # lane-padded vocab for the lm_head matmul / output store


def _norm(h):
    # LayerNorm WITHOUT affine: gamma/beta are folded into the next matmul.
    # Single pass over the lanes: E[x] and E[x^2] together.
    mu = jnp.mean(h, axis=-1, keepdims=True)
    m2 = jnp.mean(h * h, axis=-1, keepdims=True)
    var = m2 - mu * mu
    return (h - mu) * lax.rsqrt(var + LN_EPS)


def gpt_kernel(
    idx_ref,                 # (1, BT) int32 token ids (dense lane row)
    tok_ref,                 # (V_PAD, C)  zero-padded token embedding table
    pos_ref,                 # (BT, C)     pre-tiled position embeddings
    bias_ref,                # (BT, BT)    additive causal + batch-block mask
    wq_ref, bq_ref,          # (L, H, C, hs), (L, H, 1, hs)   ln1-folded
    wk_ref, bk_ref,          # (L, H, C, hs), (L, H, 1, hs)
    wv_ref, bv_ref,          # (L, H, C, hs), (L, H, 1, hs)
    wproj_ref, bproj_ref,    # (L, H, hs, C), (L, 1, C)
    w1_ref, b1_ref,          # (L, C, 4C), (L, 1, 4C)         ln2-folded
    w2_ref, b2_ref,          # (L, 4C, C), (L, 1, C)
    wlm_ref, blm_ref,        # (C, V_PAD), (1, V_PAD)         ln_f-folded
    o_ref,                   # (1, BT, V_PAD) logits
):
    VP, C = tok_ref.shape
    BT = idx_ref.shape[1]
    n_layer, n_head, _, hs = wq_ref.shape
    scale = float(hs) ** -0.5

    # ---- token embedding fused in-kernel: one-hot (VP,BT)^T @ table (VP,C) ----
    ids = idx_ref[...]                                              # (1, BT)
    onehot_t = (lax.broadcasted_iota(jnp.int32, (VP, BT), 0) == ids
                ).astype(jnp.float32)                               # (VP, BT)
    x = lax.dot_general(onehot_t, tok_ref[...],
                        dimension_numbers=(((0,), (0,)), ((), ())),
                        preferred_element_type=jnp.float32)         # (BT, C)
    x = x + pos_ref[...]

    attn_bias = bias_ref[...]                                       # (BT, BT)

    for l in range(n_layer):
        # ---- multi-head self-attention on norm(x); ln1 folded into Wq/Wk/Wv ----
        h = _norm(x)                                                # (BT, C)
        sa = jnp.zeros((BT, C), jnp.float32)
        for hh in range(n_head):
            # static leading-axis indexing: no lane slices anywhere.
            qh = jnp.dot(h, wq_ref[l, hh],
                         preferred_element_type=jnp.float32) + bq_ref[l, hh]
            kh = jnp.dot(h, wk_ref[l, hh],
                         preferred_element_type=jnp.float32) + bk_ref[l, hh]
            vh = jnp.dot(h, wv_ref[l, hh],
                         preferred_element_type=jnp.float32) + bv_ref[l, hh]
            # block-diagonal score GEMM over all B*T rows at once; the additive
            # mask (-1e9) kills cross-batch and non-causal entries exactly.
            s = jnp.dot(qh, kh.T, preferred_element_type=jnp.float32) * scale
            s = s + attn_bias
            m = jnp.max(s, axis=-1, keepdims=True)
            e = jnp.exp(s - m)
            att = e / jnp.sum(e, axis=-1, keepdims=True)            # exact divide
            oh = jnp.dot(att, vh, preferred_element_type=jnp.float32)   # (BT, hs)
            # head-concat folded into the per-head row block of W_proj.
            sa = sa + jnp.dot(oh, wproj_ref[l, hh],
                              preferred_element_type=jnp.float32)
        x = x + sa + bproj_ref[l]

        # ---- feed-forward on norm(x); ln2 folded into W1 ----
        h2 = _norm(x)
        ff = jnp.dot(h2, w1_ref[l], preferred_element_type=jnp.float32) + b1_ref[l]
        ff = jnp.maximum(ff, 0.0)
        ff = jnp.dot(ff, w2_ref[l], preferred_element_type=jnp.float32) + b2_ref[l]
        x = x + ff

    # ---- final layernorm (folded into lm head) + lm head (lane-padded) ----
    xf = _norm(x)
    logits = jnp.dot(xf, wlm_ref[...], preferred_element_type=jnp.float32) + blm_ref[...]
    o_ref[...] = logits.reshape(1, BT, VP)


def _prepare_kernel_params(params):
    """Fold LayerNorm affines into the following linears, split Q/K/V/proj per
    head, and lane-pad the lm head / token table.  Runs ONCE per model."""
    C = N_EMBD
    L = params["wq"].shape[0]
    V = params["wlm"].shape[1]
    H = N_HEAD
    hs = C // H

    def fold_qkv(w):                                       # (L, C, C) -> per-head
        wf = params["ln1_g"][:, :, None] * w               # gamma fold
        bf = jnp.einsum("lc,lcd->ld", params["ln1_b"], w)  # beta fold -> bias
        wh = wf.reshape(L, C, H, hs).transpose(0, 2, 1, 3)  # (L, H, C, hs)
        bh = bf.reshape(L, H, hs)[:, :, None, :]            # (L, H, 1, hs)
        return wh, bh

    wq, bq = fold_qkv(params["wq"])
    wk, bk = fold_qkv(params["wk"])
    wv, bv = fold_qkv(params["wv"])

    wproj = params["wproj"].reshape(L, H, hs, C)           # per-head row blocks
    bproj = params["bproj"][:, None, :]                    # (L, 1, C)

    w1 = params["ln2_g"][:, :, None] * params["w1"]        # (L, C, 4C)
    b1 = (params["b1"]
          + jnp.einsum("lc,lcd->ld", params["ln2_b"], params["w1"]))[:, None, :]
    w2 = params["w2"]
    b2 = params["b2"][:, None, :]                          # (L, 1, C)

    wlm_f = params["lnf_g"][0][:, None] * params["wlm"]            # (C, V)
    blm_f = params["blm"][0] + params["lnf_b"][0] @ params["wlm"]  # (V,)
    wlm = jnp.zeros((C, V_PAD), jnp.float32).at[:, :V].set(wlm_f)
    blm = jnp.zeros((1, V_PAD), jnp.float32).at[0, :V].set(blm_f)

    tok = jnp.zeros((V_PAD, C), jnp.float32).at[:V, :].set(params["tok_table"])

    return dict(tok=tok, pos=params["pos_table"],
                wq=wq, bq=bq, wk=wk, bk=bk, wv=wv, bv=bv,
                wproj=wproj, bproj=bproj, w1=w1, b1=b1, w2=w2, b2=b2,
                wlm=wlm, blm=blm)


def make_gpt_forward(params):
    """Fold/prepare weights once; return a jitted forward idx (B,T) -> (B,T,V)."""
    # TODO(synk): the targets/cross-entropy branch and the generate() sampling
    # loop of the PyTorch module are host-side control and not implemented here.
    kp = _prepare_kernel_params(params)          # executed once, cached on device
    V = params["wlm"].shape[1]

    @jax.jit
    def forward(idx):
        B, T = idx.shape
        BT = B * T

        # Compile-time constants under jit: tiled position rows + combined
        # causal/batch-block additive mask for the block-diagonal score GEMM.
        pos_tiled = jnp.tile(kp["pos"][:T], (B, 1))                     # (BT, C)
        r = jnp.arange(BT)
        same_batch = (r[:, None] // T) == (r[None, :] // T)
        causal = (r[None, :] % T) <= (r[:, None] % T)
        attn_bias = jnp.where(same_batch & causal, 0.0, -1e9).astype(jnp.float32)

        idx_flat = idx.astype(jnp.int32).reshape(1, BT)  # dense lane row, no size-1 tail

        weight_args = (
            kp["tok"], pos_tiled, attn_bias,
            kp["wq"], kp["bq"], kp["wk"], kp["bk"], kp["wv"], kp["bv"],
            kp["wproj"], kp["bproj"],
            kp["w1"], kp["b1"], kp["w2"], kp["b2"],
            kp["wlm"], kp["blm"],
        )

        def full_spec(a):
            nd = a.ndim
            # Constant-index weight blocks; pl.Buffered(1) would halve their
            # idle double-buffer VMEM but is noise (<0.5 MiB) at this size.
            return pl.BlockSpec(a.shape, lambda s, _nd=nd: (0,) * _nd)

        in_specs = [pl.BlockSpec((1, BT), lambda s: (0, 0))]
        in_specs += [full_spec(a) for a in weight_args]

        # Single grid step: v5e/v6e have one TensorCore, and at these row
        # counts a batch split only serializes and shrinks every GEMM.
        # TODO(synk): shard the batch over v7x's two TensorCores with
        # pltpu.CORE_PARALLEL once B*T per core reaches ~256 rows.
        logits_padded = pl.pallas_call(
            gpt_kernel,
            out_shape=jax.ShapeDtypeStruct((1, BT, V_PAD), jnp.float32),
            grid=(1,),
            in_specs=in_specs,
            out_specs=pl.BlockSpec((1, BT, V_PAD), lambda s: (0, 0, 0)),
            compiler_params=pltpu.CompilerParams(
                dimension_semantics=("arbitrary",)),
        )(idx_flat, *weight_args)

        # lane-padded columns [V:128] are exact zeros; slice inside the jit.
        return logits_padded.reshape(B, T, V_PAD)[..., :V]

    return forward


def init_params(key, vocab_size=VOCAB_SIZE):
    C, L, V = N_EMBD, N_LAYER, vocab_size
    ks = iter(jax.random.split(key, 24))
    std = 0.02
    nrm = lambda shape: (std * jax.random.normal(next(ks), shape)).astype(jnp.float32)
    # LayerNorm params perturbed away from PyTorch's default (gamma=1, beta=0)
    # purely so the correctness check exercises the affine-folding path.
    ln_g = lambda shape: (1.0 + 0.1 * jax.random.normal(next(ks), shape)).astype(jnp.float32)
    ln_b = lambda shape: (0.1 * jax.random.normal(next(ks), shape)).astype(jnp.float32)
    return {
        # embeddings
        "tok_table": nrm((V, C)),
        "pos_table": nrm((BLOCK_SIZE, C)),
        # per-layer attention (stored (in, out)); q/k/v linears have no bias
        "wq": nrm((L, C, C)),
        "wk": nrm((L, C, C)),
        "wv": nrm((L, C, C)),
        "wproj": nrm((L, C, C)),
        "bproj": jnp.zeros((L, C), jnp.float32),
        # per-layer feed-forward
        "w1": nrm((L, C, 4 * C)),
        "b1": jnp.zeros((L, 4 * C), jnp.float32),
        "w2": nrm((L, 4 * C, C)),
        "b2": jnp.zeros((L, C), jnp.float32),
        # layernorms
        "ln1_g": ln_g((L, C)), "ln1_b": ln_b((L, C)),
        "ln2_g": ln_g((L, C)), "ln2_b": ln_b((L, C)),
        "lnf_g": ln_g((1, C)), "lnf_b": ln_b((1, C)),
        # lm head
        "wlm": nrm((C, V)),
        "blm": jnp.zeros((1, V), jnp.float32),
    }


def _layernorm_affine(h, g, b):
    mu = jnp.mean(h, axis=-1, keepdims=True)
    var = jnp.mean((h - mu) ** 2, axis=-1, keepdims=True)
    return (h - mu) * lax.rsqrt(var + LN_EPS) * g + b


def _reference_forward(idx, params):
    """Pure-JAX reference (faithful to the PyTorch math, unfused/unfolded)."""
    B, T = idx.shape
    x = jnp.take(params["tok_table"], idx, axis=0) + params["pos_table"][:T][None]
    hs = N_EMBD // N_HEAD
    causal = jnp.tril(jnp.ones((T, T), bool))
    for l in range(N_LAYER):
        h = _layernorm_affine(x, params["ln1_g"][l], params["ln1_b"][l])
        q = h @ params["wq"][l]
        k = h @ params["wk"][l]
        v = h @ params["wv"][l]
        outs = []
        for hh in range(N_HEAD):
            sl = slice(hh * hs, (hh + 1) * hs)
            wei = (q[..., sl] @ jnp.swapaxes(k[..., sl], -1, -2)) * hs ** -0.5
            wei = jnp.where(causal, wei, -jnp.inf)
            wei = jax.nn.softmax(wei, axis=-1)
            outs.append(wei @ v[..., sl])
        sa = jnp.concatenate(outs, axis=-1) @ params["wproj"][l] + params["bproj"][l]
        x = x + sa
        h2 = _layernorm_affine(x, params["ln2_g"][l], params["ln2_b"][l])
        ff = jnp.maximum(h2 @ params["w1"][l] + params["b1"][l], 0.0)
        ff = ff @ params["w2"][l] + params["b2"][l]
        x = x + ff
    xf = _layernorm_affine(x, params["lnf_g"][0], params["lnf_b"][0])
    return xf @ params["wlm"] + params["blm"][0]


if __name__ == "__main__":
    key = jax.random.PRNGKey(0)
    pkey, ikey = jax.random.split(key)
    params = init_params(pkey)

    B, T = 4, 8  # small shapes; T <= BLOCK_SIZE
    idx = jax.random.randint(ikey, (B, T), 0, VOCAB_SIZE, dtype=jnp.int32)

    gpt_forward = make_gpt_forward(params)          # folds weights once, jitted
    logits = jax.block_until_ready(gpt_forward(idx))
    ref = jax.block_until_ready(_reference_forward(idx, params))

    assert logits.shape == (B, T, VOCAB_SIZE)
    max_err = float(jnp.max(jnp.abs(logits - ref)))
    assert jnp.allclose(logits, ref, atol=5e-4, rtol=2e-3), f"max |err| = {max_err}"

    print("KERNEL_OK")
</pallas_src>

<mosaic_0001>
module attributes {stable_mosaic.version = 11 : i64} {
  func.func @gpt_kernel(%arg0: i32, %arg1: memref<1x32xi32, #tpu.memory_space<vmem>>, %arg2: memref<128x32xf32, #tpu.memory_space<vmem>>, %arg3: memref<32x32xf32, #tpu.memory_space<vmem>>, %arg4: memref<32x32xf32, #tpu.memory_space<vmem>>, %arg5: memref<2x2x32x16xf32, #tpu.memory_space<vmem>>, %arg6: memref<2x2x1x16xf32, #tpu.memory_space<vmem>>, %arg7: memref<2x2x32x16xf32, #tpu.memory_space<vmem>>, %arg8: memref<2x2x1x16xf32, #tpu.memory_space<vmem>>, %arg9: memref<2x2x32x16xf32, #tpu.memory_space<vmem>>, %arg10: memref<2x2x1x16xf32, #tpu.memory_space<vmem>>, %arg11: memref<2x2x16x32xf32, #tpu.memory_space<vmem>>, %arg12: memref<2x1x32xf32, #tpu.memory_space<vmem>>, %arg13: memref<2x32x128xf32, #tpu.memory_space<vmem>>, %arg14: memref<2x1x128xf32, #tpu.memory_space<vmem>>, %arg15: memref<2x128x32xf32, #tpu.memory_space<vmem>>, %arg16: memref<2x1x32xf32, #tpu.memory_space<vmem>>, %arg17: memref<32x128xf32, #tpu.memory_space<vmem>>, %arg18: memref<1x128xf32, #tpu.memory_space<vmem>>, %arg19: memref<1x32x128xf32, #tpu.memory_space<vmem>>) attributes {dimension_semantics = [#tpu.dimension_semantics<arbitrary>], iteration_bounds = array<i64: 1>, scalar_prefetch = 0 : i64, scratch_operands = 0 : i64, tpu.core_type = #tpu.core_type<tc>, window_params = [{pipeline_mode = #tpu.pipeline_mode<synchronous>, transform_indices = @transform_0, window_bounds = array<i64: 1, 32>}, {pipeline_mode = #tpu.pipeline_mode<synchronous>, transform_indices = @transform_1, window_bounds = array<i64: 128, 32>}, {pipeline_mode = #tpu.pipeline_mode<synchronous>, transform_indices = @transform_2, window_bounds = array<i64: 32, 32>}, {pipeline_mode = #tpu.pipeline_mode<synchronous>, transform_indices = @transform_3, window_bounds = array<i64: 32, 32>}, {pipeline_mode = #tpu.pipeline_mode<synchronous>, transform_indices = @transform_4, window_bounds = array<i64: 2, 2, 32, 16>}, {pipeline_mode = #tpu.pipeline_mode<synchronous>, transform_indices = @transform_5, window_bounds = array<i64: 2, 2, 1, 16>}, {pipeline_mode = #tpu.pipeline_mode<synchronous>, transform_indices = @transform_6, window_bounds = array<i64: 2, 2, 32, 16>}, {pipeline_mode = #tpu.pipeline_mode<synchronous>, transform_indices = @transform_7, window_bounds = array<i64: 2, 2, 1, 16>}, {pipeline_mode = #tpu.pipeline_mode<synchronous>, transform_indices = @transform_8, window_bounds = array<i64: 2, 2, 32, 16>}, {pipeline_mode = #tpu.pipeline_mode<synchronous>, transform_indices = @transform_9, window_bounds = array<i64: 2, 2, 1, 16>}, {pipeline_mode = #tpu.pipeline_mode<synchronous>, transform_indices = @transform_10, window_bounds = array<i64: 2, 2, 16, 32>}, {pipeline_mode = #tpu.pipeline_mode<synchronous>, transform_indices = @transform_11, window_bounds = array<i64: 2, 1, 32>}, {pipeline_mode = #tpu.pipeline_mode<synchronous>, transform_indices = @transform_12, window_bounds = array<i64: 2, 32, 128>}, {pipeline_mode = #tpu.pipeline_mode<synchronous>, transform_indices = @transform_13, window_bounds = array<i64: 2, 1, 128>}, {pipeline_mode = #tpu.pipeline_mode<synchronous>, transform_indices = @transform_14, window_bounds = array<i64: 2, 128, 32>}, {pipeline_mode = #tpu.pipeline_mode<synchronous>, transform_indices = @transform_15, window_bounds = array<i64: 2, 1, 32>}, {pipeline_mode = #tpu.pipeline_mode<synchronous>, transform_indices = @transform_16, window_bounds = array<i64: 32, 128>}, {pipeline_mode = #tpu.pipeline_mode<synchronous>, transform_indices = @transform_17, window_bounds = array<i64: 1, 128>}, {pipeline_mode = #tpu.pipeline_mode<synchronous>, transform_indices = @transform_18, window_bounds = array<i64: 1, 32, 128>}]} {
    %c0 = arith.constant 0 : index
    %c0_0 = arith.constant 0 : index
    %0 = vector.load %arg1[%c0, %c0_0] : memref<1x32xi32, #tpu.memory_space<vmem>>, vector<1x32xi32>
    %1 = tpu.iota {dimensions = array<i32: 0>} : vector<128x32xi32>
    %2 = vector.broadcast %0 : vector<1x32xi32> to vector<128x32xi32>
    %3 = arith.cmpi eq, %1, %2 : vector<128x32xi32>
    %4 = arith.extui %3 : vector<128x32xi1> to vector<128x32xi32>
    %5 = arith.sitofp %4 : vector<128x32xi32> to vector<128x32xf32>
    %c0_1 = arith.constant 0 : index
    %c0_2 = arith.constant 0 : index
    %6 = vector.load %arg2[%c0_1, %c0_2] : memref<128x32xf32, #tpu.memory_space<vmem>>, vector<128x32xf32>
    %cst = arith.constant dense<0.000000e+00> : vector<32x32xf32>
    %7 = tpu.matmul %5, %6, %cst {dimension_numbers = #tpu.dot_dimension_numbers<[0], [0], [1], [1], [0, 1, 1, 1], [], []>} : vector<128x32xf32>, vector<128x32xf32>, vector<32x32xf32> -> vector<32x32xf32>
    %c0_3 = arith.constant 0 : index
    %c0_4 = arith.constant 0 : index
    %8 = vector.load %arg3[%c0_3, %c0_4] : memref<32x32xf32, #tpu.memory_space<vmem>>, vector<32x32xf32>
    %9 = arith.addf %7, %8 : vector<32x32xf32>
    %c0_5 = arith.constant 0 : index
    %c0_6 = arith.constant 0 : index
    %10 = vector.load %arg4[%c0_5, %c0_6] : memref<32x32xf32, #tpu.memory_space<vmem>>, vector<32x32xf32>
    %cst_7 = arith.constant dense<0.000000e+00> : vector<32xf32>
    %11 = vector.multi_reduction <add>, %9, %cst_7 [1] : vector<32x32xf32> to vector<32xf32>
    %12 = vector.shape_cast %11 : vector<32xf32> to vector<32x1xf32>
    %cst_8 = arith.constant 3.200000e+01 : f32
    %13 = vector.broadcast %cst_8 : f32 to vector<32x1xf32>
    %14 = arith.divf %12, %13 : vector<32x1xf32>
    %15 = arith.mulf %9, %9 : vector<32x32xf32>
    %cst_9 = arith.constant dense<0.000000e+00> : vector<32xf32>
    %16 = vector.multi_reduction <add>, %15, %cst_9 [1] : vector<32x32xf32> to vector<32xf32>
    %17 = vector.shape_cast %16 : vector<32xf32> to vector<32x1xf32>
    %cst_10 = arith.constant 3.200000e+01 : f32
    %18 = vector.broadcast %cst_10 : f32 to vector<32x1xf32>
    %19 = arith.divf %17, %18 : vector<32x1xf32>
    %20 = arith.mulf %14, %14 : vector<32x1xf32>
    %21 = arith.subf %19, %20 : vector<32x1xf32>
    %22 = vector.broadcast %14 : vector<32x1xf32> to vector<32x32xf32>
    %23 = arith.subf %9, %22 : vector<32x32xf32>
    %cst_11 = arith.constant 9.99999974E-6 : f32
    %24 = vector.broadcast %cst_11 : f32 to vector<32x1xf32>
    %25 = arith.addf %21, %24 : vector<32x1xf32>
    %26 = math.rsqrt %25 : vector<32x1xf32>
    %27 = vector.broadcast %26 : vector<32x1xf32> to vector<32x32xf32>
    %28 = arith.mulf %23, %27 : vector<32x32xf32>
    %cst_12 = arith.constant 0.000000e+00 : f32
    %29 = vector.broadcast %cst_12 : f32 to vector<32x32xf32>
    %c0_13 = arith.constant 0 : index
    %c0_14 = arith.constant 0 : index
    %c0_15 = arith.constant 0 : index
    %c0_16 = arith.constant 0 : index
    %30 = vector.load %arg5[%c0_13, %c0_14, %c0_15, %c0_16] : memref<2x2x32x16xf32, #tpu.memory_space<vmem>>, vector<1x1x32x16xf32>
    %31 = vector.shape_cast %30 : vector<1x1x32x16xf32> to vector<32x16xf32>
    %cst_17 = arith.constant dense<0.000000e+00> : vector<32x16xf32>
    %32 = tpu.matmul %28, %31, %cst_17 {dimension_numbers = #tpu.dot_dimension_numbers<[1], [0], [0], [1], [0, 0, 1, 1], [], []>} : vector<32x32xf32>, vector<32x16xf32>, vector<32x16xf32> -> vector<32x16xf32>
    %c0_18 = arith.constant 0 : index
    %c0_19 = arith.constant 0 : index
    %c0_20 = arith.constant 0 : index
    %c0_21 = arith.constant 0 : index
    %33 = vector.load %arg6[%c0_18, %c0_19, %c0_20, %c0_21] : memref<2x2x1x16xf32, #tpu.memory_space<vmem>>, vector<1x1x1x16xf32>
    %34 = vector.shape_cast %33 : vector<1x1x1x16xf32> to vector<1x16xf32>
    %35 = vector.broadcast %34 : vector<1x16xf32> to vector<32x16xf32>
    %36 = arith.addf %32, %35 : vector<32x16xf32>
    %c0_22 = arith.constant 0 : index
    %c0_23 = arith.constant 0 : index
    %c0_24 = arith.constant 0 : index
    %c0_25 = arith.constant 0 : index
    %37 = vector.load %arg7[%c0_22, %c0_23, %c0_24, %c0_25] : memref<2x2x32x16xf32, #tpu.memory_space<vmem>>, vector<1x1x32x16xf32>
    %38 = vector.shape_cast %37 : vector<1x1x32x16xf32> to vector<32x16xf32>
    %cst_26 = arith.constant dense<0.000000e+00> : vector<32x16xf32>
    %39 = tpu.matmul %28, %38, %cst_26 {dimension_numbers = #tpu.dot_dimension_numbers<[1], [0], [0], [1], [0, 0, 1, 1], [], []>} : vector<32x32xf32>, vector<32x16xf32>, vector<32x16xf32> -> vector<32x16xf32>
    %c0_27 = arith.constant 0 : index
    %c0_28 = arith.constant 0 : index
    %c0_29 = arith.constant 0 : index
    %c0_30 = arith.constant 0 : index
    %40 = vector.load %arg8[%c0_27, %c0_28, %c0_29, %c0_30] : memref<2x2x1x16xf32, #tpu.memory_space<vmem>>, vector<1x1x1x16xf32>
    %41 = vector.shape_cast %40 : vector<1x1x1x16xf32> to vector<1x16xf32>
    %42 = vector.broadcast %41 : vector<1x16xf32> to vector<32x16xf32>
    %43 = arith.addf %39, %42 : vector<32x16xf32>
    %c0_31 = arith.constant 0 : index
    %c0_32 = arith.constant 0 : index
    %c0_33 = arith.constant 0 : index
    %c0_34 = arith.constant 0 : index
    %44 = vector.load %arg9[%c0_31, %c0_32, %c0_33, %c0_34] : memref<2x2x32x16xf32, #tpu.memory_space<vmem>>, vector<1x1x32x16xf32>
    %45 = vector.shape_cast %44 : vector<1x1x32x16xf32> to vector<32x16xf32>
    %cst_35 = arith.constant dense<0.000000e+00> : vector<32x16xf32>
    %46 = tpu.matmul %28, %45, %cst_35 {dimension_numbers = #tpu.dot_dimension_numbers<[1], [0], [0], [1], [0, 0, 1, 1], [], []>} : vector<32x32xf32>, vector<32x16xf32>, vector<32x16xf32> -> vector<32x16xf32>
    %c0_36 = arith.constant 0 : index
    %c0_37 = arith.constant 0 : index
    %c0_38 = arith.constant 0 : index
    %c0_39 = arith.constant 0 : index
    %47 = vector.load %arg10[%c0_36, %c0_37, %c0_38, %c0_39] : memref<2x2x1x16xf32, #tpu.memory_space<vmem>>, vector<1x1x1x16xf32>
    %48 = vector.shape_cast %47 : vector<1x1x1x16xf32> to vector<1x16xf32>
    %49 = vector.broadcast %48 : vector<1x16xf32> to vector<32x16xf32>
    %50 = arith.addf %46, %49 : vector<32x16xf32>
    %51 = tpu.transpose %43, [1, 0] : vector<32x16xf32> -> vector<16x32xf32>
    %cst_40 = arith.constant dense<0.000000e+00> : vector<32x32xf32>
    %52 = tpu.matmul %36, %51, %cst_40 {dimension_numbers = #tpu.dot_dimension_numbers<[1], [0], [0], [1], [0, 0, 1, 1], [], []>} : vector<32x16xf32>, vector<16x32xf32>, vector<32x32xf32> -> vector<32x32xf32>
    %cst_41 = arith.constant 2.500000e-01 : f32
    %53 = vector.broadcast %cst_41 : f32 to vector<32x32xf32>
    %54 = arith.mulf %52, %53 : vector<32x32xf32>
    %55 = arith.addf %54, %10 : vector<32x32xf32>
    %cst_42 = arith.constant dense<0xFF800000> : vector<32xf32>
    %56 = vector.multi_reduction <maximumf>, %55, %cst_42 [1] : vector<32x32xf32> to vector<32xf32>
    %57 = vector.shape_cast %56 : vector<32xf32> to vector<32x1xf32>
    %58 = vector.broadcast %57 : vector<32x1xf32> to vector<32x32xf32>
    %59 = arith.subf %55, %58 : vector<32x32xf32>
    %60 = math.exp %59 : vector<32x32xf32>
    %cst_43 = arith.constant dense<0.000000e+00> : vector<32xf32>
    %61 = vector.multi_reduction <add>, %60, %cst_43 [1] : vector<32x32xf32> to vector<32xf32>
    %62 = vector.shape_cast %61 : vector<32xf32> to vector<32x1xf32>
    %63 = vector.broadcast %62 : vector<32x1xf32> to vector<32x32xf32>
    %64 = arith.divf %60, %63 : vector<32x32xf32>
    %cst_44 = arith.constant dense<0.000000e+00> : vector<32x16xf32>
    %65 = tpu.matmul %64, %50, %cst_44 {dimension_numbers = #tpu.dot_dimension_numbers<[1], [0], [0], [1], [0, 0, 1, 1], [], []>} : vector<32x32xf32>, vector<32x16xf32>, vector<32x16xf32> -> vector<32x16xf32>
    %c0_45 = arith.constant 0 : index
    %c0_46 = arith.constant 0 : index
    %c0_47 = arith.constant 0 : index
    %c0_48 = arith.constant 0 : index
    %66 = vector.load %arg11[%c0_45, %c0_46, %c0_47, %c0_48] : memref<2x2x16x32xf32, #tpu.memory_space<vmem>>, vector<1x1x16x32xf32>
    %67 = vector.shape_cast %66 : vector<1x1x16x32xf32> to vector<16x32xf32>
    %cst_49 = arith.constant dense<0.000000e+00> : vector<32x32xf32>
    %68 = tpu.matmul %65, %67, %cst_49 {dimension_numbers = #tpu.dot_dimension_numbers<[1], [0], [0], [1], [0, 0, 1, 1], [], []>} : vector<32x16xf32>, vector<16x32xf32>, vector<32x32xf32> -> vector<32x32xf32>
    %69 = arith.addf %29, %68 : vector<32x32xf32>
    %c0_50 = arith.constant 0 : index
    %c1 = arith.constant 1 : index
    %c0_51 = arith.constant 0 : index
    %c0_52 = arith.constant 0 : index
    %70 = vector.load %arg5[%c0_50, %c1, %c0_51, %c0_52] : memref<2x2x32x16xf32, #tpu.memory_space<vmem>>, vector<1x1x32x16xf32>
    %71 = vector.shape_cast %70 : vector<1x1x32x16xf32> to vector<32x16xf32>
    %cst_53 = arith.constant dense<0.000000e+00> : vector<32x16xf32>
    %72 = tpu.matmul %28, %71, %cst_53 {dimension_numbers = #tpu.dot_dimension_numbers<[1], [0], [0], [1], [0, 0, 1, 1], [], []>} : vector<32x32xf32>, vector<32x16xf32>, vector<32x16xf32> -> vector<32x16xf32>
    %c0_54 = arith.constant 0 : index
    %c1_55 = arith.constant 1 : index
    %c0_56 = arith.constant 0 : index
    %c0_57 = arith.constant 0 : index
    %73 = vector.load %arg6[%c0_54, %c1_55, %c0_56, %c0_57] : memref<2x2x1x16xf32, #tpu.memory_space<vmem>>, vector<1x1x1x16xf32>
    %74 = vector.shape_cast %73 : vector<1x1x1x16xf32> to vector<1x16xf32>
    %75 = vector.broadcast %74 : vector<1x16xf32> to vector<32x16xf32>
    %76 = arith.addf %72, %75 : vector<32x16xf32>
    %c0_58 = arith.constant 0 : index
    %c1_59 = arith.constant 1 : index
    %c0_60 = arith.constant 0 : index
    %c0_61 = arith.constant 0 : index
    %77 = vector.load %arg7[%c0_58, %c1_59, %c0_60, %c0_61] : memref<2x2x32x16xf32, #tpu.memory_space<vmem>>, vector<1x1x32x16xf32>
    %78 = vector.shape_cast %77 : vector<1x1x32x16xf32> to vector<32x16xf32>
    %cst_62 = arith.constant dense<0.000000e+00> : vector<32x16xf32>
    %79 = tpu.matmul %28, %78, %cst_62 {dimension_numbers = #tpu.dot_dimension_numbers<[1], [0], [0], [1], [0, 0, 1, 1], [], []>} : vector<32x32xf32>, vector<32x16xf32>, vector<32x16xf32> -> vector<32x16xf32>
    %c0_63 = arith.constant 0 : index
    %c1_64 = arith.constant 1 : index
    %c0_65 = arith.constant 0 : index
    %c0_66 = arith.constant 0 : index
    %80 = vector.load %arg8[%c0_63, %c1_64, %c0_65, %c0_66] : memref<2x2x1x16xf32, #tpu.memory_space<vmem>>, vector<1x1x1x16xf32>
    %81 = vector.shape_cast %80 : vector<1x1x1x16xf32> to vector<1x16xf32>
    %82 = vector.broadcast %81 : vector<1x16xf32> to vector<32x16xf32>
    %83 = arith.addf %79, %82 : vector<32x16xf32>
    %c0_67 = arith.constant 0 : index
    %c1_68 = arith.constant 1 : index
    %c0_69 = arith.constant 0 : index
    %c0_70 = arith.constant 0 : index
    %84 = vector.load %arg9[%c0_67, %c1_68, %c0_69, %c0_70] : memref<2x2x32x16xf32, #tpu.memory_space<vmem>>, vector<1x1x32x16xf32>
    %85 = vector.shape_cast %84 : vector<1x1x32x16xf32> to vector<32x16xf32>
    %cst_71 = arith.constant dense<0.000000e+00> : vector<32x16xf32>
    %86 = tpu.matmul %28, %85, %cst_71 {dimension_numbers = #tpu.dot_dimension_numbers<[1], [0], [0], [1], [0, 0, 1, 1], [], []>} : vector<32x32xf32>, vector<32x16xf32>, vector<32x16xf32> -> vector<32x16xf32>
    %c0_72 = arith.constant 0 : index
    %c1_73 = arith.constant 1 : index
    %c0_74 = arith.constant 0 : index
    %c0_75 = arith.constant 0 : index
    %87 = vector.load %arg10[%c0_72, %c1_73, %c0_74, %c0_75] : memref<2x2x1x16xf32, #tpu.memory_space<vmem>>, vector<1x1x1x16xf32>
    %88 = vector.shape_cast %87 : vector<1x1x1x16xf32> to vector<1x16xf32>
    %89 = vector.broadcast %88 : vector<1x16xf32> to vector<32x16xf32>
    %90 = arith.addf %86, %89 : vector<32x16xf32>
    %91 = tpu.transpose %83, [1, 0] : vector<32x16xf32> -> vector<16x32xf32>
    %cst_76 = arith.constant dense<0.000000e+00> : vector<32x32xf32>
    %92 = tpu.matmul %76, %91, %cst_76 {dimension_numbers = #tpu.dot_dimension_numbers<[1], [0], [0], [1], [0, 0, 1, 1], [], []>} : vector<32x16xf32>, vector<16x32xf32>, vector<32x32xf32> -> vector<32x32xf32>
    %cst_77 = arith.constant 2.500000e-01 : f32
    %93 = vector.broadcast %cst_77 : f32 to vector<32x32xf32>
    %94 = arith.mulf %92, %93 : vector<32x32xf32>
    %95 = arith.addf %94, %10 : vector<32x32xf32>
    %cst_78 = arith.constant dense<0xFF800000> : vector<32xf32>
    %96 = vector.multi_reduction <maximumf>, %95, %cst_78 [1] : vector<32x32xf32> to vector<32xf32>
    %97 = vector.shape_cast %96 : vector<32xf32> to vector<32x1xf32>
    %98 = vector.broadcast %97 : vector<32x1xf32> to vector<32x32xf32>
    %99 = arith.subf %95, %98 : vector<32x32xf32>
    %100 = math.exp %99 : vector<32x32xf32>
    %cst_79 = arith.constant dense<0.000000e+00> : vector<32xf32>
    %101 = vector.multi_reduction <add>, %100, %cst_79 [1] : vector<32x32xf32> to vector<32xf32>
    %102 = vector.shape_cast %101 : vector<32xf32> to vector<32x1xf32>
    %103 = vector.broadcast %102 : vector<32x1xf32> to vector<32x32xf32>
    %104 = arith.divf %100, %103 : vector<32x32xf32>
    %cst_80 = arith.constant dense<0.000000e+00> : vector<32x16xf32>
    %105 = tpu.matmul %104, %90, %cst_80 {dimension_numbers = #tpu.dot_dimension_numbers<[1], [0], [0], [1], [0, 0, 1, 1], [], []>} : vector<32x32xf32>, vector<32x16xf32>, vector<32x16xf32> -> vector<32x16xf32>
    %c0_81 = arith.constant 0 : index
    %c1_82 = arith.constant 1 : index
    %c0_83 = arith.constant 0 : index
    %c0_84 = arith.constant 0 : index
    %106 = vector.load %arg11[%c0_81, %c1_82, %c0_83, %c0_84] : memref<2x2x16x32xf32, #tpu.memory_space<vmem>>, vector<1x1x16x32xf32>
    %107 = vector.shape_cast %106 : vector<1x1x16x32xf32> to vector<16x32xf32>
    %cst_85 = arith.constant dense<0.000000e+00> : vector<32x32xf32>
    %108 = tpu.matmul %105, %107, %cst_85 {dimension_numbers = #tpu.dot_dimension_numbers<[1], [0], [0], [1], [0, 0, 1, 1], [], []>} : vector<32x16xf32>, vector<16x32xf32>, vector<32x32xf32> -> vector<32x32xf32>
    %109 = arith.addf %69, %108 : vector<32x32xf32>
    %110 = arith.addf %9, %109 : vector<32x32xf32>
    %c0_86 = arith.constant 0 : index
    %c0_87 = arith.constant 0 : index
    %c0_88 = arith.constant 0 : index
    %111 = vector.load %arg12[%c0_86, %c0_87, %c0_88] : memref<2x1x32xf32, #tpu.memory_space<vmem>>, vector<1x1x32xf32>
    %112 = vector.shape_cast %111 : vector<1x1x32xf32> to vector<1x32xf32>
    %113 = vector.broadcast %112 : vector<1x32xf32> to vector<32x32xf32>
    %114 = arith.addf %110, %113 : vector<32x32xf32>
    %cst_89 = arith.constant dense<0.000000e+00> : vector<32xf32>
    %115 = vector.multi_reduction <add>, %114, %cst_89 [1] : vector<32x32xf32> to vector<32xf32>
    %116 = vector.shape_cast %115 : vector<32xf32> to vector<32x1xf32>
    %cst_90 = arith.constant 3.200000e+01 : f32
    %117 = vector.broadcast %cst_90 : f32 to vector<32x1xf32>
    %118 = arith.divf %116, %117 : vector<32x1xf32>
    %119 = arith.mulf %114, %114 : vector<32x32xf32>
    %cst_91 = arith.constant dense<0.000000e+00> : vector<32xf32>
    %120 = vector.multi_reduction <add>, %119, %cst_91 [1] : vector<32x32xf32> to vector<32xf32>
    %121 = vector.shape_cast %120 : vector<32xf32> to vector<32x1xf32>
    %cst_92 = arith.constant 3.200000e+01 : f32
    %122 = vector.broadcast %cst_92 : f32 to vector<32x1xf32>
    %123 = arith.divf %121, %122 : vector<32x1xf32>
    %124 = arith.mulf %118, %118 : vector<32x1xf32>
    %125 = arith.subf %123, %124 : vector<32x1xf32>
    %126 = vector.broadcast %118 : vector<32x1xf32> to vector<32x32xf32>
    %127 = arith.subf %114, %126 : vector<32x32xf32>
    %cst_93 = arith.constant 9.99999974E-6 : f32
    %128 = vector.broadcast %cst_93 : f32 to vector<32x1xf32>
    %129 = arith.addf %125, %128 : vector<32x1xf32>
    %130 = math.rsqrt %129 : vector<32x1xf32>
    %131 = vector.broadcast %130 : vector<32x1xf32> to vector<32x32xf32>
    %132 = arith.mulf %127, %131 : vector<32x32xf32>
    %c0_94 = arith.constant 0 : index
    %c0_95 = arith.constant 0 : index
    %c0_96 = arith.constant 0 : index
    %133 = vector.load %arg13[%c0_94, %c0_95, %c0_96] : memref<2x32x128xf32, #tpu.memory_space<vmem>>, vector<1x32x128xf32>
    %134 = vector.shape_cast %133 : vector<1x32x128xf32> to vector<32x128xf32>
    %cst_97 = arith.constant dense<0.000000e+00> : vector<32x128xf32>
    %135 = tpu.matmul %132, %134, %cst_97 {dimension_numbers = #tpu.dot_dimension_numbers<[1], [0], [0], [1], [0, 0, 1, 1], [], []>} : vector<32x32xf32>, vector<32x128xf32>, vector<32x128xf32> -> vector<32x128xf32>
    %c0_98 = arith.constant 0 : index
    %c0_99 = arith.constant 0 : index
    %c0_100 = arith.constant 0 : index
    %136 = vector.load %arg14[%c0_98, %c0_99, %c0_100] : memref<2x1x128xf32, #tpu.memory_space<vmem>>, vector<1x1x128xf32>
    %137 = vector.shape_cast %136 : vector<1x1x128xf32> to vector<1x128xf32>
    %138 = vector.broadcast %137 : vector<1x128xf32> to vector<32x128xf32>
    %139 = arith.addf %135, %138 : vector<32x128xf32>
    %cst_101 = arith.constant 0.000000e+00 : f32
    %140 = vector.broadcast %cst_101 : f32 to vector<32x128xf32>
    %141 = arith.maximumf %139, %140 : vector<32x128xf32>
    %c0_102 = arith.constant 0 : index
    %c0_103 = arith.constant 0 : index
    %c0_104 = arith.constant 0 : index
    %142 = vector.load %arg15[%c0_102, %c0_103, %c0_104] : memref<2x128x32xf32, #tpu.memory_space<vmem>>, vector<1x128x32xf32>
    %143 = vector.shape_cast %142 : vector<1x128x32xf32> to vector<128x32xf32>
    %cst_105 = arith.constant dense<0.000000e+00> : vector<32x32xf32>
    %144 = tpu.matmul %141, %143, %cst_105 {dimension_numbers = #tpu.dot_dimension_numbers<[1], [0], [0], [1], [0, 0, 1, 1], [], []>} : vector<32x128xf32>, vector<128x32xf32>, vector<32x32xf32> -> vector<32x32xf32>
    %c0_106 = arith.constant 0 : index
    %c0_107 = arith.constant 0 : index
    %c0_108 = arith.constant 0 : index
    %145 = vector.load %arg16[%c0_106, %c0_107, %c0_108] : memref<2x1x32xf32, #tpu.memory_space<vmem>>, vector<1x1x32xf32>
    %146 = vector.shape_cast %145 : vector<1x1x32xf32> to vector<1x32xf32>
    %147 = vector.broadcast %146 : vector<1x32xf32> to vector<32x32xf32>
    %148 = arith.addf %144, %147 : vector<32x32xf32>
    %149 = arith.addf %114, %148 : vector<32x32xf32>
    %cst_109 = arith.constant dense<0.000000e+00> : vector<32xf32>
    %150 = vector.multi_reduction <add>, %149, %cst_109 [1] : vector<32x32xf32> to vector<32xf32>
    %151 = vector.shape_cast %150 : vector<32xf32> to vector<32x1xf32>
    %cst_110 = arith.constant 3.200000e+01 : f32
    %152 = vector.broadcast %cst_110 : f32 to vector<32x1xf32>
    %153 = arith.divf %151, %152 : vector<32x1xf32>
    %154 = arith.mulf %149, %149 : vector<32x32xf32>
    %cst_111 = arith.constant dense<0.000000e+00> : vector<32xf32>
    %155 = vector.multi_reduction <add>, %154, %cst_111 [1] : vector<32x32xf32> to vector<32xf32>
    %156 = vector.shape_cast %155 : vector<32xf32> to vector<32x1xf32>
    %cst_112 = arith.constant 3.200000e+01 : f32
    %157 = vector.broadcast %cst_112 : f32 to vector<32x1xf32>
    %158 = arith.divf %156, %157 : vector<32x1xf32>
    %159 = arith.mulf %153, %153 : vector<32x1xf32>
    %160 = arith.subf %158, %159 : vector<32x1xf32>
    %161 = vector.broadcast %153 : vector<32x1xf32> to vector<32x32xf32>
    %162 = arith.subf %149, %161 : vector<32x32xf32>
    %cst_113 = arith.constant 9.99999974E-6 : f32
    %163 = vector.broadcast %cst_113 : f32 to vector<32x1xf32>
    %164 = arith.addf %160, %163 : vector<32x1xf32>
    %165 = math.rsqrt %164 : vector<32x1xf32>
    %166 = vector.broadcast %165 : vector<32x1xf32> to vector<32x32xf32>
    %167 = arith.mulf %162, %166 : vector<32x32xf32>
    %cst_114 = arith.constant 0.000000e+00 : f32
    %168 = vector.broadcast %cst_114 : f32 to vector<32x32xf32>
    %c1_115 = arith.constant 1 : index
    %c0_116 = arith.constant 0 : index
    %c0_117 = arith.constant 0 : index
    %c0_118 = arith.constant 0 : index
    %169 = vector.load %arg5[%c1_115, %c0_116, %c0_117, %c0_118] : memref<2x2x32x16xf32, #tpu.memory_space<vmem>>, vector<1x1x32x16xf32>
    %170 = vector.shape_cast %169 : vector<1x1x32x16xf32> to vector<32x16xf32>
    %cst_119 = arith.constant dense<0.000000e+00> : vector<32x16xf32>
    %171 = tpu.matmul %167, %170, %cst_119 {dimension_numbers = #tpu.dot_dimension_numbers<[1], [0], [0], [1], [0, 0, 1, 1], [], []>} : vector<32x32xf32>, vector<32x16xf32>, vector<32x16xf32> -> vector<32x16xf32>
    %c1_120 = arith.constant 1 : index
    %c0_121 = arith.constant 0 : index
    %c0_122 = arith.constant 0 : index
    %c0_123 = arith.constant 0 : index
    %172 = vector.load %arg6[%c1_120, %c0_121, %c0_122, %c0_123] : memref<2x2x1x16xf32, #tpu.memory_space<vmem>>, vector<1x1x1x16xf32>
    %173 = vector.shape_cast %172 : vector<1x1x1x16xf32> to vector<1x16xf32>
    %174 = vector.broadcast %173 : vector<1x16xf32> to vector<32x16xf32>
    %175 = arith.addf %171, %174 : vector<32x16xf32>
    %c1_124 = arith.constant 1 : index
    %c0_125 = arith.constant 0 : index
    %c0_126 = arith.constant 0 : index
    %c0_127 = arith.constant 0 : index
    %176 = vector.load %arg7[%c1_124, %c0_125, %c0_126, %c0_127] : memref<2x2x32x16xf32, #tpu.memory_space<vmem>>, vector<1x1x32x16xf32>
    %177 = vector.shape_cast %176 : vector<1x1x32x16xf32> to vector<32x16xf32>
    %cst_128 = arith.constant dense<0.000000e+00> : vector<32x16xf32>
    %178 = tpu.matmul %167, %177, %cst_128 {dimension_numbers = #tpu.dot_dimension_numbers<[1], [0], [0], [1], [0, 0, 1, 1], [], []>} : vector<32x32xf32>, vector<32x16xf32>, vector<32x16xf32> -> vector<32x16xf32>
    %c1_129 = arith.constant 1 : index
    %c0_130 = arith.constant 0 : index
    %c0_131 = arith.constant 0 : index
    %c0_132 = arith.constant 0 : index
    %179 = vector.load %arg8[%c1_129, %c0_130, %c0_131, %c0_132] : memref<2x2x1x16xf32, #tpu.memory_space<vmem>>, vector<1x1x1x16xf32>
    %180 = vector.shape_cast %179 : vector<1x1x1x16xf32> to vector<1x16xf32>
    %181 = vector.broadcast %180 : vector<1x16xf32> to vector<32x16xf32>
    %182 = arith.addf %178, %181 : vector<32x16xf32>
    %c1_133 = arith.constant 1 : index
    %c0_134 = arith.constant 0 : index
    %c0_135 = arith.constant 0 : index
    %c0_136 = arith.constant 0 : index
    %183 = vector.load %arg9[%c1_133, %c0_134, %c0_135, %c0_136] : memref<2x2x32x16xf32, #tpu.memory_space<vmem>>, vector<1x1x32x16xf32>
    %184 = vector.shape_cast %183 : vector<1x1x32x16xf32> to vector<32x16xf32>
    %cst_137 = arith.constant dense<0.000000e+00> : vector<32x16xf32>
    %185 = tpu.matmul %167, %184, %cst_137 {dimension_numbers = #tpu.dot_dimension_numbers<[1], [0], [0], [1], [0, 0, 1, 1], [], []>} : vector<32x32xf32>, vector<32x16xf32>, vector<32x16xf32> -> vector<32x16xf32>
    %c1_138 = arith.constant 1 : index
    %c0_139 = arith.constant 0 : index
    %c0_140 = arith.constant 0 : index
    %c0_141 = arith.constant 0 : index
    %186 = vector.load %arg10[%c1_138, %c0_139, %c0_140, %c0_141] : memref<2x2x1x16xf32, #tpu.memory_space<vmem>>, vector<1x1x1x16xf32>
    %187 = vector.shape_cast %186 : vector<1x1x1x16xf32> to vector<1x16xf32>
    %188 = vector.broadcast %187 : vector<1x16xf32> to vector<32x16xf32>
    %189 = arith.addf %185, %188 : vector<32x16xf32>
    %190 = tpu.transpose %182, [1, 0] : vector<32x16xf32> -> vector<16x32xf32>
    %cst_142 = arith.constant dense<0.000000e+00> : vector<32x32xf32>
    %191 = tpu.matmul %175, %190, %cst_142 {dimension_numbers = #tpu.dot_dimension_numbers<[1], [0], [0], [1], [0, 0, 1, 1], [], []>} : vector<32x16xf32>, vector<16x32xf32>, vector<32x32xf32> -> vector<32x32xf32>
    %cst_143 = arith.constant 2.500000e-01 : f32
    %192 = vector.broadcast %cst_143 : f32 to vector<32x32xf32>
    %193 = arith.mulf %191, %192 : vector<32x32xf32>
    %194 = arith.addf %193, %10 : vector<32x32xf32>
    %cst_144 = arith.constant dense<0xFF800000> : vector<32xf32>
    %195 = vector.multi_reduction <maximumf>, %194, %cst_144 [1] : vector<32x32xf32> to vector<32xf32>
    %196 = vector.shape_cast %195 : vector<32xf32> to vector<32x1xf32>
    %197 = vector.broadcast %196 : vector<32x1xf32> to vector<32x32xf32>
    %198 = arith.subf %194, %197 : vector<32x32xf32>
    %199 = math.exp %198 : vector<32x32xf32>
    %cst_145 = arith.constant dense<0.000000e+00> : vector<32xf32>
    %200 = vector.multi_reduction <add>, %199, %cst_145 [1] : vector<32x32xf32> to vector<32xf32>
    %201 = vector.shape_cast %200 : vector<32xf32> to vector<32x1xf32>
    %202 = vector.broadcast %201 : vector<32x1xf32> to vector<32x32xf32>
    %203 = arith.divf %199, %202 : vector<32x32xf32>
    %cst_146 = arith.constant dense<0.000000e+00> : vector<32x16xf32>
    %204 = tpu.matmul %203, %189, %cst_146 {dimension_numbers = #tpu.dot_dimension_numbers<[1], [0], [0], [1], [0, 0, 1, 1], [], []>} : vector<32x32xf32>, vector<32x16xf32>, vector<32x16xf32> -> vector<32x16xf32>
    %c1_147 = arith.constant 1 : index
    %c0_148 = arith.constant 0 : index
    %c0_149 = arith.constant 0 : index
    %c0_150 = arith.constant 0 : index
    %205 = vector.load %arg11[%c1_147, %c0_148, %c0_149, %c0_150] : memref<2x2x16x32xf32, #tpu.memory_space<vmem>>, vector<1x1x16x32xf32>
    %206 = vector.shape_cast %205 : vector<1x1x16x32xf32> to vector<16x32xf32>
    %cst_151 = arith.constant dense<0.000000e+00> : vector<32x32xf32>
    %207 = tpu.matmul %204, %206, %cst_151 {dimension_numbers = #tpu.dot_dimension_numbers<[1], [0], [0], [1], [0, 0, 1, 1], [], []>} : vector<32x16xf32>, vector<16x32xf32>, vector<32x32xf32> -> vector<32x32xf32>
    %208 = arith.addf %168, %207 : vector<32x32xf32>
    %c1_152 = arith.constant 1 : index
    %c1_153 = arith.constant 1 : index
    %c0_154 = arith.constant 0 : index
    %c0_155 = arith.constant 0 : index
    %209 = vector.load %arg5[%c1_152, %c1_153, %c0_154, %c0_155] : memref<2x2x32x16xf32, #tpu.memory_space<vmem>>, vector<1x1x32x16xf32>
    %210 = vector.shape_cast %209 : vector<1x1x32x16xf32> to vector<32x16xf32>
    %cst_156 = arith.constant dense<0.000000e+00> : vector<32x16xf32>
    %211 = tpu.matmul %167, %210, %cst_156 {dimension_numbers = #tpu.dot_dimension_numbers<[1], [0], [0], [1], [0, 0, 1, 1], [], []>} : vector<32x32xf32>, vector<32x16xf32>, vector<32x16xf32> -> vector<32x16xf32>
    %c1_157 = arith.constant 1 : index
    %c1_158 = arith.constant 1 : index
    %c0_159 = arith.constant 0 : index
    %c0_160 = arith.constant 0 : index
    %212 = vector.load %arg6[%c1_157, %c1_158, %c0_159, %c0_160] : memref<2x2x1x16xf32, #tpu.memory_space<vmem>>, vector<1x1x1x16xf32>
    %213 = vector.shape_cast %212 : vector<1x1x1x16xf32> to vector<1x16xf32>
    %214 = vector.broadcast %213 : vector<1x16xf32> to vector<32x16xf32>
    %215 = arith.addf %211, %214 : vector<32x16xf32>
    %c1_161 = arith.constant 1 : index
    %c1_162 = arith.constant 1 : index
    %c0_163 = arith.constant 0 : index
    %c0_164 = arith.constant 0 : index
    %216 = vector.load %arg7[%c1_161, %c1_162, %c0_163, %c0_164] : memref<2x2x32x16xf32, #tpu.memory_space<vmem>>, vector<1x1x32x16xf32>
    %217 = vector.shape_cast %216 : vector<1x1x32x16xf32> to vector<32x16xf32>
    %cst_165 = arith.constant dense<0.000000e+00> : vector<32x16xf32>
    %218 = tpu.matmul %167, %217, %cst_165 {dimension_numbers = #tpu.dot_dimension_numbers<[1], [0], [0], [1], [0, 0, 1, 1], [], []>} : vector<32x32xf32>, vector<32x16xf32>, vector<32x16xf32> -> vector<32x16xf32>
    %c1_166 = arith.constant 1 : index
    %c1_167 = arith.constant 1 : index
    %c0_168 = arith.constant 0 : index
    %c0_169 = arith.constant 0 : index
    %219 = vector.load %arg8[%c1_166, %c1_167, %c0_168, %c0_169] : memref<2x2x1x16xf32, #tpu.memory_space<vmem>>, vector<1x1x1x16xf32>
    %220 = vector.shape_cast %219 : vector<1x1x1x16xf32> to vector<1x16xf32>
    %221 = vector.broadcast %220 : vector<1x16xf32> to vector<32x16xf32>
    %222 = arith.addf %218, %221 : vector<32x16xf32>
    %c1_170 = arith.constant 1 : index
    %c1_171 = arith.constant 1 : index
    %c0_172 = arith.constant 0 : index
    %c0_173 = arith.constant 0 : index
    %223 = vector.load %arg9[%c1_170, %c1_171, %c0_172, %c0_173] : memref<2x2x32x16xf32, #tpu.memory_space<vmem>>, vector<1x1x32x16xf32>
    %224 = vector.shape_cast %223 : vector<1x1x32x16xf32> to vector<32x16xf32>
    %cst_174 = arith.constant dense<0.000000e+00> : vector<32x16xf32>
    %225 = tpu.matmul %167, %224, %cst_174 {dimension_numbers = #tpu.dot_dimension_numbers<[1], [0], [0], [1], [0, 0, 1, 1], [], []>} : vector<32x32xf32>, vector<32x16xf32>, vector<32x16xf32> -> vector<32x16xf32>
    %c1_175 = arith.constant 1 : index
    %c1_176 = arith.constant 1 : index
    %c0_177 = arith.constant 0 : index
    %c0_178 = arith.constant 0 : index
    %226 = vector.load %arg10[%c1_175, %c1_176, %c0_177, %c0_178] : memref<2x2x1x16xf32, #tpu.memory_space<vmem>>, vector<1x1x1x16xf32>
    %227 = vector.shape_cast %226 : vector<1x1x1x16xf32> to vector<1x16xf32>
    %228 = vector.broadcast %227 : vector<1x16xf32> to vector<32x16xf32>
    %229 = arith.addf %225, %228 : vector<32x16xf32>
    %230 = tpu.transpose %222, [1, 0] : vector<32x16xf32> -> vector<16x32xf32>
    %cst_179 = arith.constant dense<0.000000e+00> : vector<32x32xf32>
    %231 = tpu.matmul %215, %230, %cst_179 {dimension_numbers = #tpu.dot_dimension_numbers<[1], [0], [0], [1], [0, 0, 1, 1], [], []>} : vector<32x16xf32>, vector<16x32xf32>, vector<32x32xf32> -> vector<32x32xf32>
    %cst_180 = arith.constant 2.500000e-01 : f32
    %232 = vector.broadcast %cst_180 : f32 to vector<32x32xf32>
    %233 = arith.mulf %231, %232 : vector<32x32xf32>
    %234 = arith.addf %233, %10 : vector<32x32xf32>
    %cst_181 = arith.constant dense<0xFF800000> : vector<32xf32>
    %235 = vector.multi_reduction <maximumf>, %234, %cst_181 [1] : vector<32x32xf32> to vector<32xf32>
    %236 = vector.shape_cast %235 : vector<32xf32> to vector<32x1xf32>
    %237 = vector.broadcast %236 : vector<32x1xf32> to vector<32x32xf32>
    %238 = arith.subf %234, %237 : vector<32x32xf32>
    %239 = math.exp %238 : vector<32x32xf32>
    %cst_182 = arith.constant dense<0.000000e+00> : vector<32xf32>
    %240 = vector.multi_reduction <add>, %239, %cst_182 [1] : vector<32x32xf32> to vector<32xf32>
    %241 = vector.shape_cast %240 : vector<32xf32> to vector<32x1xf32>
    %242 = vector.broadcast %241 : vector<32x1xf32> to vector<32x32xf32>
    %243 = arith.divf %239, %242 : vector<32x32xf32>
    %cst_183 = arith.constant dense<0.000000e+00> : vector<32x16xf32>
    %244 = tpu.matmul %243, %229, %cst_183 {dimension_numbers = #tpu.dot_dimension_numbers<[1], [0], [0], [1], [0, 0, 1, 1], [], []>} : vector<32x32xf32>, vector<32x16xf32>, vector<32x16xf32> -> vector<32x16xf32>
    %c1_184 = arith.constant 1 : index
    %c1_185 = arith.constant 1 : index
    %c0_186 = arith.constant 0 : index
    %c0_187 = arith.constant 0 : index
    %245 = vector.load %arg11[%c1_184, %c1_185, %c0_186, %c0_187] : memref<2x2x16x32xf32, #tpu.memory_space<vmem>>, vector<1x1x16x32xf32>
    %246 = vector.shape_cast %245 : vector<1x1x16x32xf32> to vector<16x32xf32>
    %cst_188 = arith.constant dense<0.000000e+00> : vector<32x32xf32>
    %247 = tpu.matmul %244, %246, %cst_188 {dimension_numbers = #tpu.dot_dimension_numbers<[1], [0], [0], [1], [0, 0, 1, 1], [], []>} : vector<32x16xf32>, vector<16x32xf32>, vector<32x32xf32> -> vector<32x32xf32>
    %248 = arith.addf %208, %247 : vector<32x32xf32>
    %249 = arith.addf %149, %248 : vector<32x32xf32>
    %c1_189 = arith.constant 1 : index
    %c0_190 = arith.constant 0 : index
    %c0_191 = arith.constant 0 : index
    %250 = vector.load %arg12[%c1_189, %c0_190, %c0_191] : memref<2x1x32xf32, #tpu.memory_space<vmem>>, vector<1x1x32xf32>
    %251 = vector.shape_cast %250 : vector<1x1x32xf32> to vector<1x32xf32>
    %252 = vector.broadcast %251 : vector<1x32xf32> to vector<32x32xf32>
    %253 = arith.addf %249, %252 : vector<32x32xf32>
    %cst_192 = arith.constant dense<0.000000e+00> : vector<32xf32>
    %254 = vector.multi_reduction <add>, %253, %cst_192 [1] : vector<32x32xf32> to vector<32xf32>
    %255 = vector.shape_cast %254 : vector<32xf32> to vector<32x1xf32>
    %cst_193 = arith.constant 3.200000e+01 : f32
    %256 = vector.broadcast %cst_193 : f32 to vector<32x1xf32>
    %257 = arith.divf %255, %256 : vector<32x1xf32>
    %258 = arith.mulf %253, %253 : vector<32x32xf32>
    %cst_194 = arith.constant dense<0.000000e+00> : vector<32xf32>
    %259 = vector.multi_reduction <add>, %258, %cst_194 [1] : vector<32x32xf32> to vector<32xf32>
    %260 = vector.shape_cast %259 : vector<32xf32> to vector<32x1xf32>
    %cst_195 = arith.constant 3.200000e+01 : f32
    %261 = vector.broadcast %cst_195 : f32 to vector<32x1xf32>
    %262 = arith.divf %260, %261 : vector<32x1xf32>
    %263 = arith.mulf %257, %257 : vector<32x1xf32>
    %264 = arith.subf %262, %263 : vector<32x1xf32>
    %265 = vector.broadcast %257 : vector<32x1xf32> to vector<32x32xf32>
    %266 = arith.subf %253, %265 : vector<32x32xf32>
    %cst_196 = arith.constant 9.99999974E-6 : f32
    %267 = vector.broadcast %cst_196 : f32 to vector<32x1xf32>
    %268 = arith.addf %264, %267 : vector<32x1xf32>
    %269 = math.rsqrt %268 : vector<32x1xf32>
    %270 = vector.broadcast %269 : vector<32x1xf32> to vector<32x32xf32>
    %271 = arith.mulf %266, %270 : vector<32x32xf32>
    %c1_197 = arith.constant 1 : index
    %c0_198 = arith.constant 0 : index
    %c0_199 = arith.constant 0 : index
    %272 = vector.load %arg13[%c1_197, %c0_198, %c0_199] : memref<2x32x128xf32, #tpu.memory_space<vmem>>, vector<1x32x128xf32>
    %273 = vector.shape_cast %272 : vector<1x32x128xf32> to vector<32x128xf32>
    %cst_200 = arith.constant dense<0.000000e+00> : vector<32x128xf32>
    %274 = tpu.matmul %271, %273, %cst_200 {dimension_numbers = #tpu.dot_dimension_numbers<[1], [0], [0], [1], [0, 0, 1, 1], [], []>} : vector<32x32xf32>, vector<32x128xf32>, vector<32x128xf32> -> vector<32x128xf32>
    %c1_201 = arith.constant 1 : index
    %c0_202 = arith.constant 0 : index
    %c0_203 = arith.constant 0 : index
    %275 = vector.load %arg14[%c1_201, %c0_202, %c0_203] : memref<2x1x128xf32, #tpu.memory_space<vmem>>, vector<1x1x128xf32>
    %276 = vector.shape_cast %275 : vector<1x1x128xf32> to vector<1x128xf32>
    %277 = vector.broadcast %276 : vector<1x128xf32> to vector<32x128xf32>
    %278 = arith.addf %274, %277 : vector<32x128xf32>
    %cst_204 = arith.constant 0.000000e+00 : f32
    %279 = vector.broadcast %cst_204 : f32 to vector<32x128xf32>
    %280 = arith.maximumf %278, %279 : vector<32x128xf32>
    %c1_205 = arith.constant 1 : index
    %c0_206 = arith.constant 0 : index
    %c0_207 = arith.constant 0 : index
    %281 = vector.load %arg15[%c1_205, %c0_206, %c0_207] : memref<2x128x32xf32, #tpu.memory_space<vmem>>, vector<1x128x32xf32>
    %282 = vector.shape_cast %281 : vector<1x128x32xf32> to vector<128x32xf32>
    %cst_208 = arith.constant dense<0.000000e+00> : vector<32x32xf32>
    %283 = tpu.matmul %280, %282, %cst_208 {dimension_numbers = #tpu.dot_dimension_numbers<[1], [0], [0], [1], [0, 0, 1, 1], [], []>} : vector<32x128xf32>, vector<128x32xf32>, vector<32x32xf32> -> vector<32x32xf32>
    %c1_209 = arith.constant 1 : index
    %c0_210 = arith.constant 0 : index
    %c0_211 = arith.constant 0 : index
    %284 = vector.load %arg16[%c1_209, %c0_210, %c0_211] : memref<2x1x32xf32, #tpu.memory_space<vmem>>, vector<1x1x32xf32>
    %285 = vector.shape_cast %284 : vector<1x1x32xf32> to vector<1x32xf32>
    %286 = vector.broadcast %285 : vector<1x32xf32> to vector<32x32xf32>
    %287 = arith.addf %283, %286 : vector<32x32xf32>
    %288 = arith.addf %253, %287 : vector<32x32xf32>
    %cst_212 = arith.constant dense<0.000000e+00> : vector<32xf32>
    %289 = vector.multi_reduction <add>, %288, %cst_212 [1] : vector<32x32xf32> to vector<32xf32>
    %290 = vector.shape_cast %289 : vector<32xf32> to vector<32x1xf32>
    %cst_213 = arith.constant 3.200000e+01 : f32
    %291 = vector.broadcast %cst_213 : f32 to vector<32x1xf32>
    %292 = arith.divf %290, %291 : vector<32x1xf32>
    %293 = arith.mulf %288, %288 : vector<32x32xf32>
    %cst_214 = arith.constant dense<0.000000e+00> : vector<32xf32>
    %294 = vector.multi_reduction <add>, %293, %cst_214 [1] : vector<32x32xf32> to vector<32xf32>
    %295 = vector.shape_cast %294 : vector<32xf32> to vector<32x1xf32>
    %cst_215 = arith.constant 3.200000e+01 : f32
    %296 = vector.broadcast %cst_215 : f32 to vector<32x1xf32>
    %297 = arith.divf %295, %296 : vector<32x1xf32>
    %298 = arith.mulf %292, %292 : vector<32x1xf32>
    %299 = arith.subf %297, %298 : vector<32x1xf32>
    %300 = vector.broadcast %292 : vector<32x1xf32> to vector<32x32xf32>
    %301 = arith.subf %288, %300 : vector<32x32xf32>
    %cst_216 = arith.constant 9.99999974E-6 : f32
    %302 = vector.broadcast %cst_216 : f32 to vector<32x1xf32>
    %303 = arith.addf %299, %302 : vector<32x1xf32>
    %304 = math.rsqrt %303 : vector<32x1xf32>
    %305 = vector.broadcast %304 : vector<32x1xf32> to vector<32x32xf32>
    %306 = arith.mulf %301, %305 : vector<32x32xf32>
    %c0_217 = arith.constant 0 : index
    %c0_218 = arith.constant 0 : index
    %307 = vector.load %arg17[%c0_217, %c0_218] : memref<32x128xf32, #tpu.memory_space<vmem>>, vector<32x128xf32>
    %cst_219 = arith.constant dense<0.000000e+00> : vector<32x128xf32>
    %308 = tpu.matmul %306, %307, %cst_219 {dimension_numbers = #tpu.dot_dimension_numbers<[1], [0], [0], [1], [0, 0, 1, 1], [], []>} : vector<32x32xf32>, vector<32x128xf32>, vector<32x128xf32> -> vector<32x128xf32>
    %c0_220 = arith.constant 0 : index
    %c0_221 = arith.constant 0 : index
    %309 = vector.load %arg18[%c0_220, %c0_221] : memref<1x128xf32, #tpu.memory_space<vmem>>, vector<1x128xf32>
    %310 = vector.broadcast %309 : vector<1x128xf32> to vector<32x128xf32>
    %311 = arith.addf %308, %310 : vector<32x128xf32>
    %312 = vector.shape_cast %311 : vector<32x128xf32> to vector<1x32x128xf32>
    %c0_222 = arith.constant 0 : index
    %c0_223 = arith.constant 0 : index
    %c0_224 = arith.constant 0 : index
    %313 = vector.load %arg19[%c0_222, %c0_223, %c0_224] : memref<1x32x128xf32, #tpu.memory_space<vmem>>, vector<1x32x128xf32>
    tpu.vector_store %arg19[%c0_222, %c0_223, %c0_224], %312 {strides = array<i32>} : memref<1x32x128xf32, #tpu.memory_space<vmem>>, vector<1x32x128xf32>,
    return
  }
  func.func @transform_0(%arg0: i32) -> (i32, i32) {
    %c0_i32 = arith.constant 0 : i32
    %c0_i32_0 = arith.constant 0 : i32
    %c0_i32_1 = arith.constant 0 : i32
    return %c0_i32, %c0_i32_0 : i32, i32
  }
  func.func @transform_1(%arg0: i32) -> (i32, i32) {
    %c0_i32 = arith.constant 0 : i32
    %c0_i32_0 = arith.constant 0 : i32
    %c0_i32_1 = arith.constant 0 : i32
    return %c0_i32, %c0_i32_0 : i32, i32
  }
  func.func @transform_2(%arg0: i32) -> (i32, i32) {
    %c0_i32 = arith.constant 0 : i32
    %c0_i32_0 = arith.constant 0 : i32
    %c0_i32_1 = arith.constant 0 : i32
    return %c0_i32, %c0_i32_0 : i32, i32
  }
  func.func @transform_3(%arg0: i32) -> (i32, i32) {
    %c0_i32 = arith.constant 0 : i32
    %c0_i32_0 = arith.constant 0 : i32
    %c0_i32_1 = arith.constant 0 : i32
    return %c0_i32, %c0_i32_0 : i32, i32
  }
  func.func @transform_4(%arg0: i32) -> (i32, i32, i32, i32) {
    %c0_i32 = arith.constant 0 : i32
    %c0_i32_0 = arith.constant 0 : i32
    %c0_i32_1 = arith.constant 0 : i32
    %c0_i32_2 = arith.constant 0 : i32
    %c0_i32_3 = arith.constant 0 : i32
    return %c0_i32, %c0_i32_0, %c0_i32_1, %c0_i32_2 : i32, i32, i32, i32
  }
  func.func @transform_5(%arg0: i32) -> (i32, i32, i32, i32) {
    %c0_i32 = arith.constant 0 : i32
    %c0_i32_0 = arith.constant 0 : i32
    %c0_i32_1 = arith.constant 0 : i32
    %c0_i32_2 = arith.constant 0 : i32
    %c0_i32_3 = arith.constant 0 : i32
    return %c0_i32, %c0_i32_0, %c0_i32_1, %c0_i32_2 : i32, i32, i32, i32
  }
  func.func @transform_6(%arg0: i32) -> (i32, i32, i32, i32) {
    %c0_i32 = arith.constant 0 : i32
    %c0_i32_0 = arith.constant 0 : i32
    %c0_i32_1 = arith.constant 0 : i32
    %c0_i32_2 = arith.constant 0 : i32
    %c0_i32_3 = arith.constant 0 : i32
    return %c0_i32, %c0_i32_0, %c0_i32_1, %c0_i32_2 : i32, i32, i32, i32
  }
  func.func @transform_7(%arg0: i32) -> (i32, i32, i32, i32) {
    %c0_i32 = arith.constant 0 : i32
    %c0_i32_0 = arith.constant 0 : i32
    %c0_i32_1 = arith.constant 0 : i32
    %c0_i32_2 = arith.constant 0 : i32
    %c0_i32_3 = arith.constant 0 : i32
    return %c0_i32, %c0_i32_0, %c0_i32_1, %c0_i32_2 : i32, i32, i32, i32
  }
  func.func @transform_8(%arg0: i32) -> (i32, i32, i32, i32) {
    %c0_i32 = arith.constant 0 : i32
    %c0_i32_0 = arith.constant 0 : i32
    %c0_i32_1 = arith.constant 0 : i32
    %c0_i32_2 = arith.constant 0 : i32
    %c0_i32_3 = arith.constant 0 : i32
    return %c0_i32, %c0_i32_0, %c0_i32_1, %c0_i32_2 : i32, i32, i32, i32
  }
  func.func @transform_9(%arg0: i32) -> (i32, i32, i32, i32) {
    %c0_i32 = arith.constant 0 : i32
    %c0_i32_0 = arith.constant 0 : i32
    %c0_i32_1 = arith.constant 0 : i32
    %c0_i32_2 = arith.constant 0 : i32
    %c0_i32_3 = arith.constant 0 : i32
    return %c0_i32, %c0_i32_0, %c0_i32_1, %c0_i32_2 : i32, i32, i32, i32
  }
  func.func @transform_10(%arg0: i32) -> (i32, i32, i32, i32) {
    %c0_i32 = arith.constant 0 : i32
    %c0_i32_0 = arith.constant 0 : i32
    %c0_i32_1 = arith.constant 0 : i32
    %c0_i32_2 = arith.constant 0 : i32
    %c0_i32_3 = arith.constant 0 : i32
    return %c0_i32, %c0_i32_0, %c0_i32_1, %c0_i32_2 : i32, i32, i32, i32
  }
  func.func @transform_11(%arg0: i32) -> (i32, i32, i32) {
    %c0_i32 = arith.constant 0 : i32
    %c0_i32_0 = arith.constant 0 : i32
    %c0_i32_1 = arith.constant 0 : i32
    %c0_i32_2 = arith.constant 0 : i32
    return %c0_i32, %c0_i32_0, %c0_i32_1 : i32, i32, i32
  }
  func.func @transform_12(%arg0: i32) -> (i32, i32, i32) {
    %c0_i32 = arith.constant 0 : i32
    %c0_i32_0 = arith.constant 0 : i32
    %c0_i32_1 = arith.constant 0 : i32
    %c0_i32_2 = arith.constant 0 : i32
    return %c0_i32, %c0_i32_0, %c0_i32_1 : i32, i32, i32
  }
  func.func @transform_13(%arg0: i32) -> (i32, i32, i32) {
    %c0_i32 = arith.constant 0 : i32
    %c0_i32_0 = arith.constant 0 : i32
    %c0_i32_1 = arith.constant 0 : i32
    %c0_i32_2 = arith.constant 0 : i32
    return %c0_i32, %c0_i32_0, %c0_i32_1 : i32, i32, i32
  }
  func.func @transform_14(%arg0: i32) -> (i32, i32, i32) {
    %c0_i32 = arith.constant 0 : i32
    %c0_i32_0 = arith.constant 0 : i32
    %c0_i32_1 = arith.constant 0 : i32
    %c0_i32_2 = arith.constant 0 : i32
    return %c0_i32, %c0_i32_0, %c0_i32_1 : i32, i32, i32
  }
  func.func @transform_15(%arg0: i32) -> (i32, i32, i32) {
    %c0_i32 = arith.constant 0 : i32
    %c0_i32_0 = arith.constant 0 : i32
    %c0_i32_1 = arith.constant 0 : i32
    %c0_i32_2 = arith.constant 0 : i32
    return %c0_i32, %c0_i32_0, %c0_i32_1 : i32, i32, i32
  }
  func.func @transform_16(%arg0: i32) -> (i32, i32) {
    %c0_i32 = arith.constant 0 : i32
    %c0_i32_0 = arith.constant 0 : i32
    %c0_i32_1 = arith.constant 0 : i32
    return %c0_i32, %c0_i32_0 : i32, i32
  }
  func.func @transform_17(%arg0: i32) -> (i32, i32) {
    %c0_i32 = arith.constant 0 : i32
    %c0_i32_0 = arith.constant 0 : i32
    %c0_i32_1 = arith.constant 0 : i32
    return %c0_i32, %c0_i32_0 : i32, i32
  }
  func.func @transform_18(%arg0: i32) -> (i32, i32, i32) {
    %c0_i32 = arith.constant 0 : i32
    %c0_i32_0 = arith.constant 0 : i32
    %c0_i32_1 = arith.constant 0 : i32
    %c0_i32_2 = arith.constant 0 : i32
    return %c0_i32, %c0_i32_0, %c0_i32_1 : i32, i32, i32
  }
}

</mosaic_0001>

<llo_original>
// kernel: forward.1
$region0: #{forward.1}
  #allocation0 [shape = 'u32[]', space=smem, size = 0x4, offset = 0x4, fixed_abs, tag = 'smem constant byte address 0x4 - core index']
  #allocation1 [shape = 'u32[144,128]{1,0:T(1,128)}', space=vmem, size = 0x12000, scoped, tag = 'internal scratch']
  %s0 = inlined_call_operand.vmem [shape: s32[1,32], index: 0, kind: input, shape index: {}]
  %s1 = inlined_call_operand.hbm [shape: f32[128,32], index: 1, kind: input, shape index: {}]
  %s2 = inlined_call_operand.vmem [shape: f32[32,32], index: 2, kind: input, shape index: {}]
  %s3 = inlined_call_operand.vmem [shape: f32[32,32], index: 3, kind: input, shape index: {}]
  %s4 = inlined_call_operand.hbm [shape: f32[2,2,32,16], index: 4, kind: input, shape index: {}]
  %s5 = inlined_call_operand.hbm [shape: f32[2,2,1,16], index: 5, kind: input, shape index: {}]
  %s6 = inlined_call_operand.hbm [shape: f32[2,2,32,16], index: 6, kind: input, shape index: {}]
  %s7 = inlined_call_operand.hbm [shape: f32[2,2,1,16], index: 7, kind: input, shape index: {}]
  %s8 = inlined_call_operand.hbm [shape: f32[2,2,32,16], index: 8, kind: input, shape index: {}]
  %s9 = inlined_call_operand.vmem [shape: f32[2,2,1,16], index: 9, kind: input, shape index: {}]
  %s10 = inlined_call_operand.hbm [shape: f32[2,2,16,32], index: 10, kind: input, shape index: {}]
  %s11 = inlined_call_operand.vmem [shape: f32[2,1,32], index: 11, kind: input, shape index: {}, may-alias: {11,15}]
  %s12 = inlined_call_operand.vmem [shape: f32[2,32,128], index: 12, kind: input, shape index: {}]
  %s13 = inlined_call_operand.hbm [shape: f32[2,1,128], index: 13, kind: input, shape index: {}]
  %s14 = inlined_call_operand.hbm [shape: f32[2,128,32], index: 14, kind: input, shape index: {}]
  %s15 = inlined_call_operand.vmem [shape: f32[2,1,32], index: 15, kind: input, shape index: {}, may-alias: {11,15}]
  %s16 = inlined_call_operand.vmem [shape: f32[32,128], index: 16, kind: input, shape index: {}]
  %s17 = inlined_call_operand.vmem [shape: f32[1,128], index: 17, kind: input, shape index: {}]
  %s18 = inlined_call_operand.hbm [shape: f32[1,32,128], index: 18, kind: output, shape index: {}]
  %s19 = sld [smem:[#allocation0]]
  $region118: #{forward.1} parent=0
    _
  %s21 = ssub.s32 1, %s19
  %s22 = scalar_select 0, %s21, %s19
  $region1: #{forward.1} parent=0
    #allocation2 [shape = 'u8[65536]{0}', space=vmem, size = 0x10000, scoped, tag = 'input window, operand 1, single buffered']
    #allocation3 [shape = 's32[1]{0}', space=sflag, size = 0x4, scoped, tag = 'scoped memory for forward.1']
    #allocation4 [shape = 's32[1]{0}', space=sflag, size = 0x4, scoped, tag = 'scoped memory for forward.1']
    #allocation5 [shape = 'u8[65536]{0}', space=vmem, size = 0x10000, scoped, tag = 'input window, operand 4, single buffered']
    #allocation6 [shape = 's32[1]{0}', space=sflag, size = 0x4, scoped, tag = 'scoped memory for forward.1']
    #allocation7 [shape = 'u8[2048]{0}', space=vmem, size = 0x800, scoped, tag = 'input window, operand 5, single buffered']
    #allocation8 [shape = 'u8[65536]{0}', space=vmem, size = 0x10000, scoped, tag = 'input window, operand 6, single buffered']
    #allocation9 [shape = 's32[1]{0}', space=sflag, size = 0x4, scoped, tag = 'scoped memory for forward.1']
    #allocation10 [shape = 'u8[2048]{0}', space=vmem, size = 0x800, scoped, tag = 'input window, operand 7, single buffered']
    #allocation11 [shape = 'u8[65536]{0}', space=vmem, size = 0x10000, scoped, tag = 'input window, operand 8, single buffered']
    #allocation12 [shape = 's32[1]{0}', space=sflag, size = 0x4, scoped, tag = 'scoped memory for forward.1']
    #allocation13 [shape = 'u8[32768]{0}', space=vmem, size = 0x8000, scoped, tag = 'input window, operand 10, single buffered']
    #allocation14 [shape = 'u8[1024]{0}', space=vmem, size = 0x400, scoped, tag = 'input window, operand 13, single buffered']
    #allocation15 [shape = 's32[1]{0}', space=sflag, size = 0x4, scoped, tag = 'scoped memory for forward.1']
    #allocation16 [shape = 'u8[131072]{0}', space=vmem, size = 0x20000, scoped, tag = 'input window, operand 14, single buffered']
    #allocation17 [shape = 'u8[16384]{0}', space=vmem, size = 0x4000, scoped, tag = 'output window, operand 0, single buffered']
    %23 = vsyncpa [#allocation3], 0
    %24 = vsyncpa [#allocation6], 0
    %25 = vsyncpa [#allocation9], 0
    %26 = vsyncpa [#allocation12], 0
    %27 = vsyncpa [#allocation15], 0
    %28 = vsyncpa [#allocation4], 0
    // Predicated region
    $region2: #{forward.1} parent=1 // pred_check
      _
    $region3: #{forward.1} parent=1 // pred_check_branch
      %30 = sbr.rel (0) target = $region5
    $region4: #{forward.1} parent=1 // pred_region
      _
    $region5: #{forward.1} parent=1 // pred_fallthru
      _
    // Predicated region
    $region6: #{forward.1} parent=1 // pred_check
      _
    $region7: #{forward.1} parent=1 // pred_check_branch
      %32 = sbr.rel (0) target = $region9
    $region8: #{forward.1} parent=1 // pred_region
      %s34 = ssub.s32 2048, 2048
      %35 = vsyncadd [#allocation3], %s34
      %s36 = sshll.u32 [#allocation2], 4
      %s37 = int_to_ptr.vmem [resolvable:$true] %s36
      %42 = dma.hbm_to_vmem [thread:$0]  %s1, 2048, %s37, [#allocation3], 128, 128, 8
    $region9: #{forward.1} parent=1 // pred_fallthru
      _
    // Predicated region
    $region10: #{forward.1} parent=1 // pred_check
      _
    $region11: #{forward.1} parent=1 // pred_check_branch
      %44 = sbr.rel (0) target = $region13
    $region12: #{forward.1} parent=1 // pred_region
      _
    $region13: #{forward.1} parent=1 // pred_fallthru
      _
    // Predicated region
    $region14: #{forward.1} parent=1 // pred_check
      _
    $region15: #{forward.1} parent=1 // pred_check_branch
      %46 = sbr.rel (0) target = $region17
    $region16: #{forward.1} parent=1 // pred_region
      _
    $region17: #{forward.1} parent=1 // pred_fallthru
      _
    // Predicated region
    $region18: #{forward.1} parent=1 // pred_check
      _
    $region19: #{forward.1} parent=1 // pred_check_branch
      %48 = sbr.rel (0) target = $region21
    $region20: #{forward.1} parent=1 // pred_region
      %s50 = ssub.s32 2048, 2048
      %51 = vsyncadd [#allocation6], %s50
      %s52 = sshll.u32 [#allocation5], 4
      %s53 = int_to_ptr.vmem [resolvable:$true] %s52
      %58 = dma.hbm_to_vmem [thread:$0]  %s4, 2048, %s53, [#allocation6], 128, 128, 8
    $region21: #{forward.1} parent=1 // pred_fallthru
      _
    // Predicated region
    $region22: #{forward.1} parent=1 // pred_check
      _
    $region23: #{forward.1} parent=1 // pred_check_branch
      %60 = sbr.rel (0) target = $region25
    $region24: #{forward.1} parent=1 // pred_region
      %s62 = ssub.s32 64, 64
      %63 = vsyncadd [#allocation6], %s62
      %s64 = sshll.u32 [#allocation7], 4
      %s65 = int_to_ptr.vmem [resolvable:$true] %s64
      %70 = dma.hbm_to_vmem [thread:$0]  %s5, 64, %s65, [#allocation6], 16, 16, 1
    $region25: #{forward.1} parent=1 // pred_fallthru
      _
    // Predicated region
    $region26: #{forward.1} parent=1 // pred_check
      _
    $region27: #{forward.1} parent=1 // pred_check_branch
      %72 = sbr.rel (0) target = $region29
    $region28: #{forward.1} parent=1 // pred_region
      %s74 = ssub.s32 2048, 2048
      %75 = vsyncadd [#allocation9], %s74
      %s76 = sshll.u32 [#allocation8], 4
      %s77 = int_to_ptr.vmem [resolvable:$true] %s76
      %82 = dma.hbm_to_vmem [thread:$0]  %s6, 2048, %s77, [#allocation9], 128, 128, 8
    $region29: #{forward.1} parent=1 // pred_fallthru
      _
    // Predicated region
    $region30: #{forward.1} parent=1 // pred_check
      _
    $region31: #{forward.1} parent=1 // pred_check_branch
      %84 = sbr.rel (0) target = $region33
    $region32: #{forward.1} parent=1 // pred_region
      %s86 = ssub.s32 64, 64
      %87 = vsyncadd [#allocation9], %s86
      %s88 = sshll.u32 [#allocation10], 4
      %s89 = int_to_ptr.vmem [resolvable:$true] %s88
      %94 = dma.hbm_to_vmem [thread:$0]  %s7, 64, %s89, [#allocation9], 16, 16, 1
    $region33: #{forward.1} parent=1 // pred_fallthru
      _
    // Predicated region
    $region34: #{forward.1} parent=1 // pred_check
      _
    $region35: #{forward.1} parent=1 // pred_check_branch
      %96 = sbr.rel (0) target = $region37
    $region36: #{forward.1} parent=1 // pred_region
      %s98 = ssub.s32 2048, 2048
      %99 = vsyncadd [#allocation12], %s98
      %s100 = sshll.u32 [#allocation11], 4
      %s101 = int_to_ptr.vmem [resolvable:$true] %s100
      %106 = dma.hbm_to_vmem [thread:$0]  %s8, 2048, %s101, [#allocation12], 128, 128, 8
    $region37: #{forward.1} parent=1 // pred_fallthru
      _
    // Predicated region
    $region38: #{forward.1} parent=1 // pred_check
      _
    $region39: #{forward.1} parent=1 // pred_check_branch
      %108 = sbr.rel (0) target = $region41
    $region40: #{forward.1} parent=1 // pred_region
      _
    $region41: #{forward.1} parent=1 // pred_fallthru
      _
    // Predicated region
    $region42: #{forward.1} parent=1 // pred_check
      _
    $region43: #{forward.1} parent=1 // pred_check_branch
      %110 = sbr.rel (0) target = $region45
    $region44: #{forward.1} parent=1 // pred_region
      %s112 = ssub.s32 1024, 1024
      %113 = vsyncadd [#allocation12], %s112
      %s114 = sshll.u32 [#allocation13], 4
      %s115 = int_to_ptr.vmem [resolvable:$true] %s114
      %120 = dma.hbm_to_vmem [thread:$0]  %s10, 1024, %s115, [#allocation12], 128, 128, 8
    $region45: #{forward.1} parent=1 // pred_fallthru
      _
    // Predicated region
    $region46: #{forward.1} parent=1 // pred_check
      _
    $region47: #{forward.1} parent=1 // pred_check_branch
      %122 = sbr.rel (0) target = $region49
    $region48: #{forward.1} parent=1 // pred_region
      _
    $region49: #{forward.1} parent=1 // pred_fallthru
      _
    // Predicated region
    $region50: #{forward.1} parent=1 // pred_check
      _
    $region51: #{forward.1} parent=1 // pred_check_branch
      %124 = sbr.rel (0) target = $region53
    $region52: #{forward.1} parent=1 // pred_region
      _
    $region53: #{forward.1} parent=1 // pred_fallthru
      _
    // Predicated region
    $region54: #{forward.1} parent=1 // pred_check
      _
    $region55: #{forward.1} parent=1 // pred_check_branch
      %126 = sbr.rel (0) target = $region57
    $region56: #{forward.1} parent=1 // pred_region
      %s128 = ssub.s32 32, 32
      %129 = vsyncadd [#allocation15], %s128
      %s130 = sshll.u32 [#allocation14], 4
      %s131 = int_to_ptr.vmem [resolvable:$true] %s130
      %136 = dma.hbm_to_vmem [thread:$0]  %s13, 32, %s131, [#allocation15], 16, 16, 1
    $region57: #{forward.1} parent=1 // pred_fallthru
      _
    // Predicated region
    $region58: #{forward.1} parent=1 // pred_check
      _
    $region59: #{forward.1} parent=1 // pred_check_branch
      %138 = sbr.rel (0) target = $region61
    $region60: #{forward.1} parent=1 // pred_region
      %s140 = ssub.s32 4096, 4096
      %141 = vsyncadd [#allocation15], %s140
      %s142 = sshll.u32 [#allocation16], 4
      %s143 = int_to_ptr.vmem [resolvable:$true] %s142
      %148 = dma.hbm_to_vmem [thread:$0]  %s14, 4096, %s143, [#allocation15], 128, 128, 8
    $region61: #{forward.1} parent=1 // pred_fallthru
      _
    // Predicated region
    $region62: #{forward.1} parent=1 // pred_check
      _
    $region63: #{forward.1} parent=1 // pred_check_branch
      %150 = sbr.rel (0) target = $region65
    $region64: #{forward.1} parent=1 // pred_region
      _
    $region65: #{forward.1} parent=1 // pred_fallthru
      _
    // Predicated region
    $region66: #{forward.1} parent=1 // pred_check
      _
    $region67: #{forward.1} parent=1 // pred_check_branch
      %152 = sbr.rel (0) target = $region69
    $region68: #{forward.1} parent=1 // pred_region
      _
    $region69: #{forward.1} parent=1 // pred_fallthru
      _
    // Predicated region
    $region70: #{forward.1} parent=1 // pred_check
      _
    $region71: #{forward.1} parent=1 // pred_check_branch
      %154 = sbr.rel (0) target = $region73
    $region72: #{forward.1} parent=1 // pred_region
      _
    $region73: #{forward.1} parent=1 // pred_fallthru
      _
    // Predicated region
    $region74: #{forward.1} parent=1 // pred_check
      _
    $region75: #{forward.1} parent=1 // pred_check_branch
      %156 = sbr.rel (0) target = $region77
    $region76: #{forward.1} parent=1 // pred_region
      %157 = dma.done [#allocation3], 2048
    $region77: #{forward.1} parent=1 // pred_fallthru
      _
    // Predicated region
    $region78: #{forward.1} parent=1 // pred_check
      _
    $region79: #{forward.1} parent=1 // pred_check_branch
      %159 = sbr.rel (0) target = $region81
    $region80: #{forward.1} parent=1 // pred_region
      %160 = dma.done [#allocation6], 2048
    $region81: #{forward.1} parent=1 // pred_fallthru
      _
    // Predicated region
    $region82: #{forward.1} parent=1 // pred_check
      _
    $region83: #{forward.1} parent=1 // pred_check_branch
      %162 = sbr.rel (0) target = $region85
    $region84: #{forward.1} parent=1 // pred_region
      %163 = dma.done [#allocation6], 64
    $region85: #{forward.1} parent=1 // pred_fallthru
      _
    // Predicated region
    $region86: #{forward.1} parent=1 // pred_check
      _
    $region87: #{forward.1} parent=1 // pred_check_branch
      %165 = sbr.rel (0) target = $region89
    $region88: #{forward.1} parent=1 // pred_region
      %166 = dma.done [#allocation9], 2048
    $region89: #{forward.1} parent=1 // pred_fallthru
      _
    // Predicated region
    $region90: #{forward.1} parent=1 // pred_check
      _
    $region91: #{forward.1} parent=1 // pred_check_branch
      %168 = sbr.rel (0) target = $region93
    $region92: #{forward.1} parent=1 // pred_region
      %169 = dma.done [#allocation9], 64
    $region93: #{forward.1} parent=1 // pred_fallthru
      _
    // Predicated region
    $region94: #{forward.1} parent=1 // pred_check
      _
    $region95: #{forward.1} parent=1 // pred_check_branch
      %171 = sbr.rel (0) target = $region97
    $region96: #{forward.1} parent=1 // pred_region
      %172 = dma.done [#allocation12], 2048
    $region97: #{forward.1} parent=1 // pred_fallthru
      _
    // Predicated region
    $region98: #{forward.1} parent=1 // pred_check
      _
    $region99: #{forward.1} parent=1 // pred_check_branch
      %174 = sbr.rel (0) target = $region101
    $region100: #{forward.1} parent=1 // pred_region
      %175 = dma.done [#allocation12], 1024
    $region101: #{forward.1} parent=1 // pred_fallthru
      _
    // Predicated region
    $region102: #{forward.1} parent=1 // pred_check
      _
    $region103: #{forward.1} parent=1 // pred_check_branch
      %177 = sbr.rel (0) target = $region105
    $region104: #{forward.1} parent=1 // pred_region
      %178 = dma.done [#allocation15], 32
    $region105: #{forward.1} parent=1 // pred_fallthru
      _
    // Predicated region
    $region106: #{forward.1} parent=1 // pred_check
      _
    $region107: #{forward.1} parent=1 // pred_check_branch
      %180 = sbr.rel (0) target = $region109
    $region108: #{forward.1} parent=1 // pred_region
      %181 = dma.done [#allocation15], 4096
    $region109: #{forward.1} parent=1 // pred_fallthru
      _
    %v182 = vld [vmem:[%s0] sm:$0x1]
    %v183 = vlaneseq
    %v184 = vshrl.u32 %v183, 7
    %v185 = vadd.s32 %v184, 8
    %v186 = vadd.s32 %v184, 16
    %v187 = vadd.s32 %v184, 24
    %v188 = vadd.s32 %v184, 32
    %v189 = vadd.s32 %v184, 40
    %v190 = vadd.s32 %v184, 48
    %v191 = vadd.s32 %v184, 56
    %v192 = vadd.s32 %v184, 64
    %v193 = vadd.s32 %v184, 72
    %v194 = vadd.s32 %v184, 80
    %v195 = vadd.s32 %v184, 88
    %v196 = vadd.s32 %v184, 96
    %v197 = vadd.s32 %v184, 104
    %v198 = vadd.s32 %v184, 112
    %v199 = vadd.s32 %v184, 120
    %v200 = vlaneseq
    %v201 = vshrl.u32 %v200, 7
    %v202 = vsub.s32 0, %v201
    %v203 = vrot.slane %v182, %v202
    %vm204 = vcmp.eq.s32.totalorder %v184, %v203
    %vm205 = vcmp.eq.s32.totalorder %v185, %v203
    %vm206 = vcmp.eq.s32.totalorder %v186, %v203
    %vm207 = vcmp.eq.s32.totalorder %v187, %v203
    %vm208 = vcmp.eq.s32.totalorder %v188, %v203
    %vm209 = vcmp.eq.s32.totalorder %v189, %v203
    %vm210 = vcmp.eq.s32.totalorder %v190, %v203
    %vm211 = vcmp.eq.s32.totalorder %v191, %v203
    %vm212 = vcmp.eq.s32.totalorder %v192, %v203
    %vm213 = vcmp.eq.s32.totalorder %v193, %v203
    %vm214 = vcmp.eq.s32.totalorder %v194, %v203
    %vm215 = vcmp.eq.s32.totalorder %v195, %v203
    %vm216 = vcmp.eq.s32.totalorder %v196, %v203
    %vm217 = vcmp.eq.s32.totalorder %v197, %v203
    %vm218 = vcmp.eq.s32.totalorder %v198, %v203
    %vm219 = vcmp.eq.s32.totalorder %v199, %v203
    %v220 = vsel %vm204, 1, 0
    %v221 = vsel %vm205, 1, 0
    %v222 = vsel %vm206, 1, 0
    %v223 = vsel %vm207, 1, 0
    %v224 = vsel %vm208, 1, 0
    %v225 = vsel %vm209, 1, 0
    %v226 = vsel %vm210, 1, 0
    %v227 = vsel %vm211, 1, 0
    %v228 = vsel %vm212, 1, 0
    %v229 = vsel %vm213, 1, 0
    %v230 = vsel %vm214, 1, 0
    %v231 = vsel %vm215, 1, 0
    %v232 = vsel %vm216, 1, 0
    %v233 = vsel %vm217, 1, 0
    %v234 = vsel %vm218, 1, 0
    %v235 = vsel %vm219, 1, 0
    %v236 = vcvt.s32.f32 %v220
    %v237 = vcvt.s32.f32 %v221
    %v238 = vcvt.s32.f32 %v222
    %v239 = vcvt.s32.f32 %v223
    %v240 = vcvt.s32.f32 %v224
    %v241 = vcvt.s32.f32 %v225
    %v242 = vcvt.s32.f32 %v226
    %v243 = vcvt.s32.f32 %v227
    %v244 = vcvt.s32.f32 %v228
    %v245 = vcvt.s32.f32 %v229
    %v246 = vcvt.s32.f32 %v230
    %v247 = vcvt.s32.f32 %v231
    %v248 = vcvt.s32.f32 %v232
    %v249 = vcvt.s32.f32 %v233
    %v250 = vcvt.s32.f32 %v234
    %v251 = vcvt.s32.f32 %v235
    %v252 = vld [vmem:[#allocation2] sm:$0xff]
    %v253 = vld [vmem:[#allocation2 + $0x8] sm:$0xff]
    %v254 = vld [vmem:[#allocation2 + $0x10] sm:$0xff]
    %v255 = vld [vmem:[#allocation2 + $0x18] sm:$0xff]
    %v256 = vld [vmem:[#allocation2 + $0x20] sm:$0xff]
    %v257 = vld [vmem:[#allocation2 + $0x28] sm:$0xff]
    %v258 = vld [vmem:[#allocation2 + $0x30] sm:$0xff]
    %v259 = vld [vmem:[#allocation2 + $0x38] sm:$0xff]
    %v260 = vld [vmem:[#allocation2 + $0x40] sm:$0xff]
    %v261 = vld [vmem:[#allocation2 + $0x48] sm:$0xff]
    %v262 = vld [vmem:[#allocation2 + $0x50] sm:$0xff]
    %v263 = vld [vmem:[#allocation2 + $0x58] sm:$0xff]
    %v264 = vld [vmem:[#allocation2 + $0x60] sm:$0xff]
    %v265 = vld [vmem:[#allocation2 + $0x68] sm:$0xff]
    %v266 = vld [vmem:[#allocation2 + $0x70] sm:$0xff]
    %v267 = vld [vmem:[#allocation2 + $0x78] sm:$0xff]
    %v268 = vld [vmem:[%s2] sm:$0xff]
    %v269 = vld [vmem:[%s2 + $0x8] sm:$0xff]
    %v270 = vld [vmem:[%s2 + $0x10] sm:$0xff]
    %v271 = vld [vmem:[%s2 + $0x18] sm:$0xff]
    %272 = vxpose.xlu0.b32.start [1/16] %v236, 128
    %273 = vxpose.xlu0.b32.cont [2/16] %v237, 128
    %274 = vxpose.xlu0.b32.cont [3/16] %v238, 128
    %275 = vxpose.xlu0.b32.cont [4/16] %v239, 128
    %276 = vxpose.xlu0.b32.cont [5/16] %v240, 128
    %277 = vxpose.xlu0.b32.cont [6/16] %v241, 128
    %278 = vxpose.xlu0.b32.cont [7/16] %v242, 128
    %279 = vxpose.xlu0.b32.cont [8/16] %v243, 128
    %280 = vxpose.xlu0.b32.cont [9/16] %v244, 128
    %281 = vxpose.xlu0.b32.cont [10/16] %v245, 128
    %282 = vxpose.xlu0.b32.cont [11/16] %v246, 128
    %283 = vxpose.xlu0.b32.cont [12/16] %v247, 128
    %284 = vxpose.xlu0.b32.cont [13/16] %v248, 128
    %285 = vxpose.xlu0.b32.cont [14/16] %v249, 128
    %286 = vxpose.xlu0.b32.cont [15/16] %v250, 128
    %287 = vxpose.xlu0.b32.end [16/16] %v251, 128
    %v288 = vpop.trf.xlu0
    %v289 = vpop.trf.xlu0
    %v290 = vpop.trf.xlu0
    %v291 = vpop.trf.xlu0
    %v292 = vpop.trf.xlu0
    %v293 = vpop.trf.xlu0
    %v294 = vpop.trf.xlu0
    %v295 = vpop.trf.xlu0
    %v296 = vpop.trf.xlu0
    %v297 = vpop.trf.xlu0
    %v298 = vpop.trf.xlu0
    %v299 = vpop.trf.xlu0
    %v300 = vpop.trf.xlu0
    %v301 = vpop.trf.xlu0
    %v302 = vpop.trf.xlu0
    %v303 = vpop.trf.xlu0
    %304 = vmatprep.subr.mxu0 0.0
    %305 = vmatpush1.msra.mxu0 %v267
    %306 = vmatprep.subr.mxu0 0.0
    %307 = vmatpush1.msra.mxu0 %v266
    %308 = vmatprep.subr.mxu0 0.0
    %309 = vmatpush1.msra.mxu0 %v265
    %310 = vmatprep.subr.mxu0 0.0
    %311 = vmatpush1.msra.mxu0 %v264
    %312 = vmatprep.subr.mxu0 0.0
    %313 = vmatpush1.msra.mxu0 %v263
    %314 = vmatprep.subr.mxu0 0.0
    %315 = vmatpush1.msra.mxu0 %v262
    %316 = vmatprep.subr.mxu0 0.0
    %317 = vmatpush1.msra.mxu0 %v261
    %318 = vmatprep.subr.mxu0 0.0
    %319 = vmatpush1.msra.mxu0 %v260
    %320 = vmatprep.subr.mxu0 0.0
    %321 = vmatpush1.msra.mxu0 %v259
    %322 = vmatprep.subr.mxu0 0.0
    %323 = vmatpush1.msra.mxu0 %v258
    %324 = vmatprep.subr.mxu0 0.0
    %325 = vmatpush1.msra.mxu0 %v257
    %326 = vmatprep.subr.mxu0 0.0
    %327 = vmatpush1.msra.mxu0 %v256
    %328 = vmatprep.subr.mxu0 0.0
    %329 = vmatpush1.msra.mxu0 %v255
    %330 = vmatprep.subr.mxu0 0.0
    %331 = vmatpush1.msra.mxu0 %v254
    %332 = vmatprep.subr.mxu0 0.0
    %333 = vmatpush1.msra.mxu0 %v253
    %334 = vmatprep.subr.mxu0 0.0
    %335 = vmatpush1.msra.mxu0 %v252
    %336 = vmatprep.subr.mxu0 0.0
    %337 = vmatpush2.msra.mxu0 0.0
    %338 = vmatprep.subr.mxu0 0.0
    %339 = vmatpush2.msra.mxu0 0.0
    %340 = vmatprep.subr.mxu0 0.0
    %341 = vmatpush2.msra.mxu0 0.0
    %342 = vmatprep.subr.mxu0 0.0
    %343 = vmatpush2.msra.mxu0 0.0
    %344 = vmatprep.subr.mxu0 0.0
    %345 = vmatpush2.msra.mxu0 0.0
    %346 = vmatprep.subr.mxu0 0.0
    %347 = vmatpush2.msra.mxu0 0.0
    %348 = vmatprep.subr.mxu0 0.0
    %349 = vmatpush2.msra.mxu0 0.0
    %350 = vmatprep.subr.mxu0 0.0
    %351 = vmatpush2.msra.mxu0 0.0
    %352 = vmatprep.subr.mxu0 0.0
    %353 = vmatpush2.msra.mxu0 0.0
    %354 = vmatprep.subr.mxu0 0.0
    %355 = vmatpush2.msra.mxu0 0.0
    %356 = vmatprep.subr.mxu0 0.0
    %357 = vmatpush2.msra.mxu0 0.0
    %358 = vmatprep.subr.mxu0 0.0
    %359 = vmatpush2.msra.mxu0 0.0
    %360 = vmatprep.subr.mxu0 0.0
    %361 = vmatpush2.msra.mxu0 0.0
    %362 = vmatprep.subr.mxu0 0.0
    %363 = vmatpush2.msra.mxu0 0.0
    %364 = vmatprep.subr.mxu0 0.0
    %365 = vmatpush2.msra.mxu0 0.0
    %366 = vmatprep.subr.mxu0 0.0
    %367 = vmatpush2.msra.mxu0 0.0
    %368 = vmatprep.mubr.f32.mxu0 0.0
    %369 = vmatmul.mubr.f32.gmra.mxu0 %v288
    %v370 = vpop.f32.mrf.mxu0
    %v371 = vadd.f32 %v268, %v370
    %v372 = vpop.f32.mrf.mxu0
    %373 = vmatprep.mubr.f32.mxu0 0.0
    %374 = vmatmul.mubr.f32.gmra.mxu0 %v289
    %v375 = vpop.f32.mrf.mxu0
    %v376 = vadd.f32 %v269, %v375
    %v377 = vpop.f32.mrf.mxu0
    %378 = vmatprep.mubr.f32.mxu0 0.0
    %379 = vmatmul.mubr.f32.gmra.mxu0 %v290
    %v380 = vpop.f32.mrf.mxu0
    %v381 = vadd.f32 %v270, %v380
    %v382 = vpop.f32.mrf.mxu0
    %383 = vmatprep.mubr.f32.mxu0 0.0
    %384 = vmatmul.mubr.f32.gmra.mxu0 %v291
    %v385 = vpop.f32.mrf.mxu0
    %v386 = vadd.f32 %v271, %v385
    %v387 = vpop.f32.mrf.mxu0
    %388 = vdwg.mxu0
    %v389 = vld [vmem:[%s3] sm:$0xff]
    %v390 = vld [vmem:[%s3 + $0x8] sm:$0xff]
    %v391 = vld [vmem:[%s3 + $0x10] sm:$0xff]
    %v392 = vld [vmem:[%s3 + $0x18] sm:$0xff]
    %vm393 = vcmask 261120
    %v394 = vsel %vm393, %v371, 0.0
    %395 = vadd.xlane.f32.xlu0 %v394
    %v396 = vpop.xlane.xlu0 %395
    %v397 = vsel %vm393, %v376, 0.0
    %398 = vadd.xlane.f32.xlu0 %v397
    %v399 = vpop.xlane.xlu0 %398
    %v400 = vsel %vm393, %v381, 0.0
    %401 = vadd.xlane.f32.xlu0 %v400
    %v402 = vpop.xlane.xlu0 %401
    %v403 = vsel %vm393, %v386, 0.0
    %404 = vadd.xlane.f32.xlu0 %v403
    %v405 = vpop.xlane.xlu0 %404
    %v406 = vrcp.pop 32.0
    %v407 = vmul.f32 %v396, %v406
    %v408 = vmul.f32 %v399, %v406
    %v409 = vmul.f32 %v402, %v406
    %v410 = vmul.f32 %v405, %v406
    %v411 = vmul.f32 %v371, %v371
    %v412 = vmul.f32 %v376, %v376
    %v413 = vmul.f32 %v381, %v381
    %v414 = vmul.f32 %v386, %v386
    %v415 = vsel %vm393, %v411, 0.0
    %416 = vadd.xlane.f32.xlu0 %v415
    %v417 = vpop.xlane.xlu0 %416
    %v418 = vsel %vm393, %v412, 0.0
    %419 = vadd.xlane.f32.xlu0 %v418
    %v420 = vpop.xlane.xlu0 %419
    %v421 = vsel %vm393, %v413, 0.0
    %422 = vadd.xlane.f32.xlu0 %v421
    %v423 = vpop.xlane.xlu0 %422
    %v424 = vsel %vm393, %v414, 0.0
    %425 = vadd.xlane.f32.xlu0 %v424
    %v426 = vpop.xlane.xlu0 %425
    %v427 = vmul.f32 %v417, %v406
    %v428 = vmul.f32 %v420, %v406
    %v429 = vmul.f32 %v423, %v406
    %v430 = vmul.f32 %v426, %v406
    %v431 = vmul.f32 %v407, %v407
    %v432 = vmul.f32 %v408, %v408
    %v433 = vmul.f32 %v409, %v409
    %v434 = vmul.f32 %v410, %v410
    %v435 = vsub.f32 %v427, %v431
    %v436 = vsub.f32 %v428, %v432
    %v437 = vsub.f32 %v429, %v433
    %v438 = vsub.f32 %v430, %v434
    %v439 = vsub.f32 %v371, %v407
    %v440 = vsub.f32 %v376, %v408
    %v441 = vsub.f32 %v381, %v409
    %v442 = vsub.f32 %v386, %v410
    %v443 = vadd.f32 %v435, 1e-05
    %v444 = vadd.f32 %v436, 1e-05
    %v445 = vadd.f32 %v437, 1e-05
    %v446 = vadd.f32 %v438, 1e-05
    %v447 = vrsqrt.pop %v443
    %v448 = vrsqrt.pop %v444
    %v449 = vrsqrt.pop %v445
    %v450 = vrsqrt.pop %v446
    %v451 = vmul.f32 %v439, %v447
    %v452 = vmul.f32 %v440, %v448
    %v453 = vmul.f32 %v441, %v449
    %v454 = vmul.f32 %v442, %v450
    %v455 = vld [vmem:[#allocation5] sm:$0xff]
    %v456 = vld [vmem:[#allocation5 + $0x8] sm:$0xff]
    %v457 = vld [vmem:[#allocation5 + $0x10] sm:$0xff]
    %v458 = vld [vmem:[#allocation5 + $0x18] sm:$0xff]
    %v459 = vld [vmem:[#allocation7] sm:$0x1]
    %v461 = vlaneseq
    %v462 = vshrl.u32 %v461, 7
    %v463 = vsub.s32 0, %v462
    %v464 = vrot.slane %v459, %v463
    %v467 = vsel %vm393, %v451, 0
    %v470 = vsel %vm393, %v452, 0
    %v473 = vsel %vm393, %v453, 0
    %v476 = vsel %vm393, %v454, 0
    %478 = vmatprep.subr.mxu0 0.0
    %479 = vmatpush1.msra.mxu0 0.0
    %480 = vmatprep.subr.mxu0 0.0
    %481 = vmatpush1.msra.mxu0 0.0
    %482 = vmatprep.subr.mxu0 0.0
    %483 = vmatpush1.msra.mxu0 0.0
    %484 = vmatprep.subr.mxu0 0.0
    %485 = vmatpush1.msra.mxu0 0.0
    %486 = vmatprep.subr.mxu0 0.0
    %487 = vmatpush1.msra.mxu0 0.0
    %488 = vmatprep.subr.mxu0 0.0
    %489 = vmatpush1.msra.mxu0 0.0
    %490 = vmatprep.subr.mxu0 0.0
    %491 = vmatpush1.msra.mxu0 0.0
    %492 = vmatprep.subr.mxu0 0.0
    %493 = vmatpush1.msra.mxu0 0.0
    %494 = vmatprep.subr.mxu0 0.0
    %495 = vmatpush1.msra.mxu0 0.0
    %496 = vmatprep.subr.mxu0 0.0
    %497 = vmatpush1.msra.mxu0 0.0
    %498 = vmatprep.subr.mxu0 0.0
    %499 = vmatpush1.msra.mxu0 0.0
    %500 = vmatprep.subr.mxu0 0.0
    %501 = vmatpush1.msra.mxu0 0.0
    %502 = vmatprep.subr.mxu0 0.0
    %503 = vmatpush1.msra.mxu0 %v458
    %504 = vmatprep.subr.mxu0 0.0
    %505 = vmatpush1.msra.mxu0 %v457
    %506 = vmatprep.subr.mxu0 0.0
    %507 = vmatpush1.msra.mxu0 %v456
    %508 = vmatprep.subr.mxu0 0.0
    %509 = vmatpush1.msra.mxu0 %v455
    %510 = vmatprep.subr.mxu0 0.0
    %511 = vmatpush2.msra.mxu0 0.0
    %512 = vmatprep.subr.mxu0 0.0
    %513 = vmatpush2.msra.mxu0 0.0
    %514 = vmatprep.subr.mxu0 0.0
    %515 = vmatpush2.msra.mxu0 0.0
    %516 = vmatprep.subr.mxu0 0.0
    %517 = vmatpush2.msra.mxu0 0.0
    %518 = vmatprep.subr.mxu0 0.0
    %519 = vmatpush2.msra.mxu0 0.0
    %520 = vmatprep.subr.mxu0 0.0
    %521 = vmatpush2.msra.mxu0 0.0
    %522 = vmatprep.subr.mxu0 0.0
    %523 = vmatpush2.msra.mxu0 0.0
    %524 = vmatprep.subr.mxu0 0.0
    %525 = vmatpush2.msra.mxu0 0.0
    %526 = vmatprep.subr.mxu0 0.0
    %527 = vmatpush2.msra.mxu0 0.0
    %528 = vmatprep.subr.mxu0 0.0
    %529 = vmatpush2.msra.mxu0 0.0
    %530 = vmatprep.subr.mxu0 0.0
    %531 = vmatpush2.msra.mxu0 0.0
    %532 = vmatprep.subr.mxu0 0.0
    %533 = vmatpush2.msra.mxu0 0.0
    %534 = vmatprep.subr.mxu0 0.0
    %535 = vmatpush2.msra.mxu0 0.0
    %536 = vmatprep.subr.mxu0 0.0
    %537 = vmatpush2.msra.mxu0 0.0
    %538 = vmatprep.subr.mxu0 0.0
    %539 = vmatpush2.msra.mxu0 0.0
    %540 = vmatprep.subr.mxu0 0.0
    %541 = vmatpush2.msra.mxu0 0.0
    %542 = vmatprep.mubr.f32.mxu0 0.0
    %543 = vmatmul.mubr.f32.gmra.mxu0 %v467
    %v544 = vpop.f32.mrf.mxu0
    %v545 = vadd.f32 %v464, %v544
    %v546 = vpop.f32.mrf.mxu0
    %547 = vmatprep.mubr.f32.mxu0 0.0
    %548 = vmatmul.mubr.f32.gmra.mxu0 %v470
    %v549 = vpop.f32.mrf.mxu0
    %v550 = vadd.f32 %v464, %v549
    %v551 = vpop.f32.mrf.mxu0
    %552 = vmatprep.mubr.f32.mxu0 0.0
    %553 = vmatmul.mubr.f32.gmra.mxu0 %v473
    %v554 = vpop.f32.mrf.mxu0
    %v555 = vadd.f32 %v464, %v554
    %v556 = vpop.f32.mrf.mxu0
    %557 = vmatprep.mubr.f32.mxu0 0.0
    %558 = vmatmul.mubr.f32.gmra.mxu0 %v476
    %v559 = vpop.f32.mrf.mxu0
    %v560 = vadd.f32 %v464, %v559
    %v561 = vpop.f32.mrf.mxu0
    %562 = vdwg.mxu0
    %v563 = vld [vmem:[#allocation8] sm:$0xff]
    %v564 = vld [vmem:[#allocation8 + $0x8] sm:$0xff]
    %v565 = vld [vmem:[#allocation8 + $0x10] sm:$0xff]
    %v566 = vld [vmem:[#allocation8 + $0x18] sm:$0xff]
    %v567 = vld [vmem:[#allocation10] sm:$0x1]
    %v569 = vlaneseq
    %v570 = vshrl.u32 %v569, 7
    %v571 = vsub.s32 0, %v570
    %v572 = vrot.slane %v567, %v571
    %574 = vmatprep.subr.mxu0 0.0
    %575 = vmatpush1.msra.mxu0 0.0
    %576 = vmatprep.subr.mxu0 0.0
    %577 = vmatpush1.msra.mxu0 0.0
    %578 = vmatprep.subr.mxu0 0.0
    %579 = vmatpush1.msra.mxu0 0.0
    %580 = vmatprep.subr.mxu0 0.0
    %581 = vmatpush1.msra.mxu0 0.0
    %582 = vmatprep.subr.mxu0 0.0
    %583 = vmatpush1.msra.mxu0 0.0
    %584 = vmatprep.subr.mxu0 0.0
    %585 = vmatpush1.msra.mxu0 0.0
    %586 = vmatprep.subr.mxu0 0.0
    %587 = vmatpush1.msra.mxu0 0.0
    %588 = vmatprep.subr.mxu0 0.0
    %589 = vmatpush1.msra.mxu0 0.0
    %590 = vmatprep.subr.mxu0 0.0
    %591 = vmatpush1.msra.mxu0 0.0
    %592 = vmatprep.subr.mxu0 0.0
    %593 = vmatpush1.msra.mxu0 0.0
    %594 = vmatprep.subr.mxu0 0.0
    %595 = vmatpush1.msra.mxu0 0.0
    %596 = vmatprep.subr.mxu0 0.0
    %597 = vmatpush1.msra.mxu0 0.0
    %598 = vmatprep.subr.mxu0 0.0
    %599 = vmatpush1.msra.mxu0 %v566
    %600 = vmatprep.subr.mxu0 0.0
    %601 = vmatpush1.msra.mxu0 %v565
    %602 = vmatprep.subr.mxu0 0.0
    %603 = vmatpush1.msra.mxu0 %v564
    %604 = vmatprep.subr.mxu0 0.0
    %605 = vmatpush1.msra.mxu0 %v563
    %606 = vmatprep.subr.mxu0 0.0
    %607 = vmatpush2.msra.mxu0 0.0
    %608 = vmatprep.subr.mxu0 0.0
    %609 = vmatpush2.msra.mxu0 0.0
    %610 = vmatprep.subr.mxu0 0.0
    %611 = vmatpush2.msra.mxu0 0.0
    %612 = vmatprep.subr.mxu0 0.0
    %613 = vmatpush2.msra.mxu0 0.0
    %614 = vmatprep.subr.mxu0 0.0
    %615 = vmatpush2.msra.mxu0 0.0
    %616 = vmatprep.subr.mxu0 0.0
    %617 = vmatpush2.msra.mxu0 0.0
    %618 = vmatprep.subr.mxu0 0.0
    %619 = vmatpush2.msra.mxu0 0.0
    %620 = vmatprep.subr.mxu0 0.0
    %621 = vmatpush2.msra.mxu0 0.0
    %622 = vmatprep.subr.mxu0 0.0
    %623 = vmatpush2.msra.mxu0 0.0
    %624 = vmatprep.subr.mxu0 0.0
    %625 = vmatpush2.msra.mxu0 0.0
    %626 = vmatprep.subr.mxu0 0.0
    %627 = vmatpush2.msra.mxu0 0.0
    %628 = vmatprep.subr.mxu0 0.0
    %629 = vmatpush2.msra.mxu0 0.0
    %630 = vmatprep.subr.mxu0 0.0
    %631 = vmatpush2.msra.mxu0 0.0
    %632 = vmatprep.subr.mxu0 0.0
    %633 = vmatpush2.msra.mxu0 0.0
    %634 = vmatprep.subr.mxu0 0.0
    %635 = vmatpush2.msra.mxu0 0.0
    %636 = vmatprep.subr.mxu0 0.0
    %637 = vmatpush2.msra.mxu0 0.0
    %638 = vmatprep.mubr.f32.mxu0 0.0
    %639 = vmatmul.mubr.f32.gmra.mxu0 %v467
    %v640 = vpop.f32.mrf.mxu0
    %v641 = vadd.f32 %v572, %v640
    %v642 = vpop.f32.mrf.mxu0
    %643 = vmatprep.mubr.f32.mxu0 0.0
    %644 = vmatmul.mubr.f32.gmra.mxu0 %v470
    %v645 = vpop.f32.mrf.mxu0
    %v646 = vadd.f32 %v572, %v645
    %v647 = vpop.f32.mrf.mxu0
    %648 = vmatprep.mubr.f32.mxu0 0.0
    %649 = vmatmul.mubr.f32.gmra.mxu0 %v473
    %v650 = vpop.f32.mrf.mxu0
    %v651 = vadd.f32 %v572, %v650
    %v652 = vpop.f32.mrf.mxu0
    %653 = vmatprep.mubr.f32.mxu0 0.0
    %654 = vmatmul.mubr.f32.gmra.mxu0 %v476
    %v655 = vpop.f32.mrf.mxu0
    %v656 = vadd.f32 %v572, %v655
    %v657 = vpop.f32.mrf.mxu0
    %658 = vdwg.mxu0
    %v659 = vld [vmem:[#allocation11] sm:$0xff]
    %v660 = vld [vmem:[#allocation11 + $0x8] sm:$0xff]
    %v661 = vld [vmem:[#allocation11 + $0x10] sm:$0xff]
    %v662 = vld [vmem:[#allocation11 + $0x18] sm:$0xff]
    %v663 = vld [vmem:[%s9] sm:$0x1]
    %v665 = vlaneseq
    %v666 = vshrl.u32 %v665, 7
    %v667 = vsub.s32 0, %v666
    %v668 = vrot.slane %v663, %v667
    %670 = vmatprep.subr.mxu0 0.0
    %671 = vmatpush1.msra.mxu0 0.0
    %672 = vmatprep.subr.mxu0 0.0
    %673 = vmatpush1.msra.mxu0 0.0
    %674 = vmatprep.subr.mxu0 0.0
    %675 = vmatpush1.msra.mxu0 0.0
    %676 = vmatprep.subr.mxu0 0.0
    %677 = vmatpush1.msra.mxu0 0.0
    %678 = vmatprep.subr.mxu0 0.0
    %679 = vmatpush1.msra.mxu0 0.0
    %680 = vmatprep.subr.mxu0 0.0
    %681 = vmatpush1.msra.mxu0 0.0
    %682 = vmatprep.subr.mxu0 0.0
    %683 = vmatpush1.msra.mxu0 0.0
    %684 = vmatprep.subr.mxu0 0.0
    %685 = vmatpush1.msra.mxu0 0.0
    %686 = vmatprep.subr.mxu0 0.0
    %687 = vmatpush1.msra.mxu0 0.0
    %688 = vmatprep.subr.mxu0 0.0
    %689 = vmatpush1.msra.mxu0 0.0
    %690 = vmatprep.subr.mxu0 0.0
    %691 = vmatpush1.msra.mxu0 0.0
    %692 = vmatprep.subr.mxu0 0.0
    %693 = vmatpush1.msra.mxu0 0.0
    %694 = vmatprep.subr.mxu0 0.0
    %695 = vmatpush1.msra.mxu0 %v662
    %696 = vmatprep.subr.mxu0 0.0
    %697 = vmatpush1.msra.mxu0 %v661
    %698 = vmatprep.subr.mxu0 0.0
    %699 = vmatpush1.msra.mxu0 %v660
    %700 = vmatprep.subr.mxu0 0.0
    %701 = vmatpush1.msra.mxu0 %v659
    %702 = vmatprep.subr.mxu0 0.0
    %703 = vmatpush2.msra.mxu0 0.0
    %704 = vmatprep.subr.mxu0 0.0
    %705 = vmatpush2.msra.mxu0 0.0
    %706 = vmatprep.subr.mxu0 0.0
    %707 = vmatpush2.msra.mxu0 0.0
    %708 = vmatprep.subr.mxu0 0.0
    %709 = vmatpush2.msra.mxu0 0.0
    %710 = vmatprep.subr.mxu0 0.0
    %711 = vmatpush2.msra.mxu0 0.0
    %712 = vmatprep.subr.mxu0 0.0
    %713 = vmatpush2.msra.mxu0 0.0
    %714 = vmatprep.subr.mxu0 0.0
    %715 = vmatpush2.msra.mxu0 0.0
    %716 = vmatprep.subr.mxu0 0.0
    %717 = vmatpush2.msra.mxu0 0.0
    %718 = vmatprep.subr.mxu0 0.0
    %719 = vmatpush2.msra.mxu0 0.0
    %720 = vmatprep.subr.mxu0 0.0
    %721 = vmatpush2.msra.mxu0 0.0
    %722 = vmatprep.subr.mxu0 0.0
    %723 = vmatpush2.msra.mxu0 0.0
    %724 = vmatprep.subr.mxu0 0.0
    %725 = vmatpush2.msra.mxu0 0.0
    %726 = vmatprep.subr.mxu0 0.0
    %727 = vmatpush2.msra.mxu0 0.0
    %728 = vmatprep.subr.mxu0 0.0
    %729 = vmatpush2.msra.mxu0 0.0
    %730 = vmatprep.subr.mxu0 0.0
    %731 = vmatpush2.msra.mxu0 0.0
    %732 = vmatprep.subr.mxu0 0.0
    %733 = vmatpush2.msra.mxu0 0.0
    %734 = vmatprep.mubr.f32.mxu0 0.0
    %735 = vmatmul.mubr.f32.gmra.mxu0 %v467
    %v736 = vpop.f32.mrf.mxu0
    %v737 = vadd.f32 %v668, %v736
    %v738 = vpop.f32.mrf.mxu0
    %739 = vmatprep.mubr.f32.mxu0 0.0
    %740 = vmatmul.mubr.f32.gmra.mxu0 %v470
    %v741 = vpop.f32.mrf.mxu0
    %v742 = vadd.f32 %v668, %v741
    %v743 = vpop.f32.mrf.mxu0
    %744 = vmatprep.mubr.f32.mxu0 0.0
    %745 = vmatmul.mubr.f32.gmra.mxu0 %v473
    %v746 = vpop.f32.mrf.mxu0
    %v747 = vadd.f32 %v668, %v746
    %v748 = vpop.f32.mrf.mxu0
    %749 = vmatprep.mubr.f32.mxu0 0.0
    %750 = vmatmul.mubr.f32.gmra.mxu0 %v476
    %v751 = vpop.f32.mrf.mxu0
    %v752 = vadd.f32 %v668, %v751
    %v753 = vpop.f32.mrf.mxu0
    %754 = vdwg.mxu0
    %vm755 = vcmask 130048
    %v757 = vsel %vm755, %v545, 0
    %v760 = vsel %vm755, %v550, 0
    %v763 = vsel %vm755, %v555, 0
    %v766 = vsel %vm755, %v560, 0
    %v769 = vsel %vm755, %v641, 0
    %v772 = vsel %vm755, %v646, 0
    %v775 = vsel %vm755, %v651, 0
    %v778 = vsel %vm755, %v656, 0
    %780 = vmatprep.subr.mxu0 0.0
    %781 = vmatpush1.xpose.msra.mxu0 0.0
    %782 = vmatprep.subr.mxu0 0.0
    %783 = vmatpush1.xpose.msra.mxu0 0.0
    %784 = vmatprep.subr.mxu0 0.0
    %785 = vmatpush1.xpose.msra.mxu0 0.0
    %786 = vmatprep.subr.mxu0 0.0
    %787 = vmatpush1.xpose.msra.mxu0 0.0
    %788 = vmatprep.subr.mxu0 0.0
    %789 = vmatpush1.xpose.msra.mxu0 0.0
    %790 = vmatprep.subr.mxu0 0.0
    %791 = vmatpush1.xpose.msra.mxu0 0.0
    %792 = vmatprep.subr.mxu0 0.0
    %793 = vmatpush1.xpose.msra.mxu0 0.0
    %794 = vmatprep.subr.mxu0 0.0
    %795 = vmatpush1.xpose.msra.mxu0 0.0
    %796 = vmatprep.subr.mxu0 0.0
    %797 = vmatpush1.xpose.msra.mxu0 0.0
    %798 = vmatprep.subr.mxu0 0.0
    %799 = vmatpush1.xpose.msra.mxu0 0.0
    %800 = vmatprep.subr.mxu0 0.0
    %801 = vmatpush1.xpose.msra.mxu0 0.0
    %802 = vmatprep.subr.mxu0 0.0
    %803 = vmatpush1.xpose.msra.mxu0 0.0
    %804 = vmatprep.subr.mxu0 0.0
    %805 = vmatpush1.xpose.msra.mxu0 %v778
    %806 = vmatprep.subr.mxu0 0.0
    %807 = vmatpush1.xpose.msra.mxu0 %v775
    %808 = vmatprep.subr.mxu0 0.0
    %809 = vmatpush1.xpose.msra.mxu0 %v772
    %810 = vmatprep.subr.mxu0 0.0
    %811 = vmatpush1.xpose.msra.mxu0 %v769
    %812 = vmatprep.subr.mxu0 0.0
    %813 = vmatpush2.xpose.msra.mxu0 0.0
    %814 = vmatprep.subr.mxu0 0.0
    %815 = vmatpush2.xpose.msra.mxu0 0.0
    %816 = vmatprep.subr.mxu0 0.0
    %817 = vmatpush2.xpose.msra.mxu0 0.0
    %818 = vmatprep.subr.mxu0 0.0
    %819 = vmatpush2.xpose.msra.mxu0 0.0
    %820 = vmatprep.subr.mxu0 0.0
    %821 = vmatpush2.xpose.msra.mxu0 0.0
    %822 = vmatprep.subr.mxu0 0.0
    %823 = vmatpush2.xpose.msra.mxu0 0.0
    %824 = vmatprep.subr.mxu0 0.0
    %825 = vmatpush2.xpose.msra.mxu0 0.0
    %826 = vmatprep.subr.mxu0 0.0
    %827 = vmatpush2.xpose.msra.mxu0 0.0
    %828 = vmatprep.subr.mxu0 0.0
    %829 = vmatpush2.xpose.msra.mxu0 0.0
    %830 = vmatprep.subr.mxu0 0.0
    %831 = vmatpush2.xpose.msra.mxu0 0.0
    %832 = vmatprep.subr.mxu0 0.0
    %833 = vmatpush2.xpose.msra.mxu0 0.0
    %834 = vmatprep.subr.mxu0 0.0
    %835 = vmatpush2.xpose.msra.mxu0 0.0
    %836 = vmatprep.subr.mxu0 0.0
    %837 = vmatpush2.xpose.msra.mxu0 0.0
    %838 = vmatprep.subr.mxu0 0.0
    %839 = vmatpush2.xpose.msra.mxu0 0.0
    %840 = vmatprep.subr.mxu0 0.0
    %841 = vmatpush2.xpose.msra.mxu0 0.0
    %842 = vmatprep.subr.mxu0 0.0
    %843 = vmatpush2.xpose.msra.mxu0 0.0
    %844 = vmatprep.mubr.f32.mxu0 0.0
    %845 = vmatmul.mubr.f32.gmra.mxu0 %v757
    %v846 = vpop.f32.mrf.mxu0
    %v847 = vadd.f32 0.0, %v846
    %v848 = vpop.f32.mrf.mxu0
    %849 = vmatprep.mubr.f32.mxu0 0.0
    %850 = vmatmul.mubr.f32.gmra.mxu0 %v760
    %v851 = vpop.f32.mrf.mxu0
    %v852 = vadd.f32 0.0, %v851
    %v853 = vpop.f32.mrf.mxu0
    %854 = vmatprep.mubr.f32.mxu0 0.0
    %855 = vmatmul.mubr.f32.gmra.mxu0 %v763
    %v856 = vpop.f32.mrf.mxu0
    %v857 = vadd.f32 0.0, %v856
    %v858 = vpop.f32.mrf.mxu0
    %859 = vmatprep.mubr.f32.mxu0 0.0
    %860 = vmatmul.mubr.f32.gmra.mxu0 %v766
    %v861 = vpop.f32.mrf.mxu0
    %v862 = vadd.f32 0.0, %v861
    %v863 = vpop.f32.mrf.mxu0
    %864 = vdwg.mxu0
    %v865 = vmul.f32 %v847, 0.25
    %v866 = vmul.f32 %v852, 0.25
    %v867 = vmul.f32 %v857, 0.25
    %v868 = vmul.f32 %v862, 0.25
    %v869 = vadd.f32 %v865, %v389
    %v870 = vadd.f32 %v866, %v390
    %v871 = vadd.f32 %v867, %v391
    %v872 = vadd.f32 %v868, %v392
    %v873 = vsel %vm393, %v869, -inf
    %874 = vmax.xlane.f32.xlu0 %v873
    %v875 = vpop.xlane.xlu0 %874
    %v876 = vsel %vm393, %v870, -inf
    %877 = vmax.xlane.f32.xlu0 %v876
    %v878 = vpop.xlane.xlu0 %877
    %v879 = vsel %vm393, %v871, -inf
    %880 = vmax.xlane.f32.xlu0 %v879
    %v881 = vpop.xlane.xlu0 %880
    %v882 = vsel %vm393, %v872, -inf
    %883 = vmax.xlane.f32.xlu0 %v882
    %v884 = vpop.xlane.xlu0 %883
    %v885 = vsub.f32 %v869, %v875
    %v886 = vsub.f32 %v870, %v878
    %v887 = vsub.f32 %v871, %v881
    %v888 = vsub.f32 %v872, %v884
    %v889 = vmul.f32 %v885, 1.442695
    %v890 = vpow.pop %v889
    %v891 = vmul.f32 %v886, 1.442695
    %v892 = vpow.pop %v891
    %v893 = vmul.f32 %v887, 1.442695
    %v894 = vpow.pop %v893
    %v895 = vmul.f32 %v888, 1.442695
    %v896 = vpow.pop %v895
    %v897 = vsel %vm393, %v890, 0.0
    %898 = vadd.xlane.f32.xlu0 %v897
    %v899 = vpop.xlane.xlu0 %898
    %v900 = vsel %vm393, %v892, 0.0
    %901 = vadd.xlane.f32.xlu0 %v900
    %v902 = vpop.xlane.xlu0 %901
    %v903 = vsel %vm393, %v894, 0.0
    %904 = vadd.xlane.f32.xlu0 %v903
    %v905 = vpop.xlane.xlu0 %904
    %v906 = vsel %vm393, %v896, 0.0
    %907 = vadd.xlane.f32.xlu0 %v906
    %v908 = vpop.xlane.xlu0 %907
    %v909 = vrcp.pop %v899
    %v910 = vmul.f32 %v890, %v909
    %v911 = vrcp.pop %v902
    %v912 = vmul.f32 %v892, %v911
    %v913 = vrcp.pop %v905
    %v914 = vmul.f32 %v894, %v913
    %v915 = vrcp.pop %v908
    %v916 = vmul.f32 %v896, %v915
    %v918 = vsel %vm393, %v910, 0
    %v921 = vsel %vm393, %v912, 0
    %v924 = vsel %vm393, %v914, 0
    %v927 = vsel %vm393, %v916, 0
    %929 = vmatprep.subr.mxu0 0.0
    %930 = vmatpush1.msra.mxu0 0.0
    %931 = vmatprep.subr.mxu0 0.0
    %932 = vmatpush1.msra.mxu0 0.0
    %933 = vmatprep.subr.mxu0 0.0
    %934 = vmatpush1.msra.mxu0 0.0
    %935 = vmatprep.subr.mxu0 0.0
    %936 = vmatpush1.msra.mxu0 0.0
    %937 = vmatprep.subr.mxu0 0.0
    %938 = vmatpush1.msra.mxu0 0.0
    %939 = vmatprep.subr.mxu0 0.0
    %940 = vmatpush1.msra.mxu0 0.0
    %941 = vmatprep.subr.mxu0 0.0
    %942 = vmatpush1.msra.mxu0 0.0
    %943 = vmatprep.subr.mxu0 0.0
    %944 = vmatpush1.msra.mxu0 0.0
    %945 = vmatprep.subr.mxu0 0.0
    %946 = vmatpush1.msra.mxu0 0.0
    %947 = vmatprep.subr.mxu0 0.0
    %948 = vmatpush1.msra.mxu0 0.0
    %949 = vmatprep.subr.mxu0 0.0
    %950 = vmatpush1.msra.mxu0 0.0
    %951 = vmatprep.subr.mxu0 0.0
    %952 = vmatpush1.msra.mxu0 0.0
    %953 = vmatprep.subr.mxu0 0.0
    %954 = vmatpush1.msra.mxu0 %v752
    %955 = vmatprep.subr.mxu0 0.0
    %956 = vmatpush1.msra.mxu0 %v747
    %957 = vmatprep.subr.mxu0 0.0
    %958 = vmatpush1.msra.mxu0 %v742
    %959 = vmatprep.subr.mxu0 0.0
    %960 = vmatpush1.msra.mxu0 %v737
    %961 = vmatprep.subr.mxu0 0.0
    %962 = vmatpush2.msra.mxu0 0.0
    %963 = vmatprep.subr.mxu0 0.0
    %964 = vmatpush2.msra.mxu0 0.0
    %965 = vmatprep.subr.mxu0 0.0
    %966 = vmatpush2.msra.mxu0 0.0
    %967 = vmatprep.subr.mxu0 0.0
    %968 = vmatpush2.msra.mxu0 0.0
    %969 = vmatprep.subr.mxu0 0.0
    %970 = vmatpush2.msra.mxu0 0.0
    %971 = vmatprep.subr.mxu0 0.0
    %972 = vmatpush2.msra.mxu0 0.0
    %973 = vmatprep.subr.mxu0 0.0
    %974 = vmatpush2.msra.mxu0 0.0
    %975 = vmatprep.subr.mxu0 0.0
    %976 = vmatpush2.msra.mxu0 0.0
    %977 = vmatprep.subr.mxu0 0.0
    %978 = vmatpush2.msra.mxu0 0.0
    %979 = vmatprep.subr.mxu0 0.0
    %980 = vmatpush2.msra.mxu0 0.0
    %981 = vmatprep.subr.mxu0 0.0
    %982 = vmatpush2.msra.mxu0 0.0
    %983 = vmatprep.subr.mxu0 0.0
    %984 = vmatpush2.msra.mxu0 0.0
    %985 = vmatprep.subr.mxu0 0.0
    %986 = vmatpush2.msra.mxu0 0.0
    %987 = vmatprep.subr.mxu0 0.0
    %988 = vmatpush2.msra.mxu0 0.0
    %989 = vmatprep.subr.mxu0 0.0
    %990 = vmatpush2.msra.mxu0 0.0
    %991 = vmatprep.subr.mxu0 0.0
    %992 = vmatpush2.msra.mxu0 0.0
    %993 = vmatprep.mubr.f32.mxu0 0.0
    %994 = vmatmul.mubr.f32.gmra.mxu0 %v918
    %v995 = vpop.f32.mrf.mxu0
    %v996 = vadd.f32 0.0, %v995
    %v997 = vpop.f32.mrf.mxu0
    %998 = vmatprep.mubr.f32.mxu0 0.0
    %999 = vmatmul.mubr.f32.gmra.mxu0 %v921
    %v1000 = vpop.f32.mrf.mxu0
    %v1001 = vadd.f32 0.0, %v1000
    %v1002 = vpop.f32.mrf.mxu0
    %1003 = vmatprep.mubr.f32.mxu0 0.0
    %1004 = vmatmul.mubr.f32.gmra.mxu0 %v924
    %v1005 = vpop.f32.mrf.mxu0
    %v1006 = vadd.f32 0.0, %v1005
    %v1007 = vpop.f32.mrf.mxu0
    %1008 = vmatprep.mubr.f32.mxu0 0.0
    %1009 = vmatmul.mubr.f32.gmra.mxu0 %v927
    %v1010 = vpop.f32.mrf.mxu0
    %v1011 = vadd.f32 0.0, %v1010
    %v1012 = vpop.f32.mrf.mxu0
    %1013 = vdwg.mxu0
    %v1014 = vld [vmem:[#allocation13] sm:$0xff]
    %v1015 = vld [vmem:[#allocation13 + $0x8] sm:$0xff]
    %s1016 = scalar_lea.vmem [#allocation5], 32
    %v1017 = vld [vmem:[%s1016] sm:$0xff]
    %v1018 = vld [vmem:[%s1016 + $0x8] sm:$0xff]
    %v1019 = vld [vmem:[%s1016 + $0x10] sm:$0xff]
    %v1020 = vld [vmem:[%s1016 + $0x18] sm:$0xff]
    %s1021 = scalar_lea.vmem [#allocation7], 1
    %v1022 = vld [vmem:[%s1021] sm:$0x1]
    %v1024 = vlaneseq
    %v1025 = vshrl.u32 %v1024, 7
    %v1026 = vsub.s32 0, %v1025
    %v1027 = vrot.slane %v1022, %v1026
    %1029 = vmatprep.subr.mxu0 0.0
    %1030 = vmatpush1.msra.mxu0 0.0
    %1031 = vmatprep.subr.mxu0 0.0
    %1032 = vmatpush1.msra.mxu0 0.0
    %1033 = vmatprep.subr.mxu0 0.0
    %1034 = vmatpush1.msra.mxu0 0.0
    %1035 = vmatprep.subr.mxu0 0.0
    %1036 = vmatpush1.msra.mxu0 0.0
    %1037 = vmatprep.subr.mxu0 0.0
    %1038 = vmatpush1.msra.mxu0 0.0
    %1039 = vmatprep.subr.mxu0 0.0
    %1040 = vmatpush1.msra.mxu0 0.0
    %1041 = vmatprep.subr.mxu0 0.0
    %1042 = vmatpush1.msra.mxu0 0.0
    %1043 = vmatprep.subr.mxu0 0.0
    %1044 = vmatpush1.msra.mxu0 0.0
    %1045 = vmatprep.subr.mxu0 0.0
    %1046 = vmatpush1.msra.mxu0 0.0
    %1047 = vmatprep.subr.mxu0 0.0
    %1048 = vmatpush1.msra.mxu0 0.0
    %1049 = vmatprep.subr.mxu0 0.0
    %1050 = vmatpush1.msra.mxu0 0.0
    %1051 = vmatprep.subr.mxu0 0.0
    %1052 = vmatpush1.msra.mxu0 0.0
    %1053 = vmatprep.subr.mxu0 0.0
    %1054 = vmatpush1.msra.mxu0 %v1020
    %1055 = vmatprep.subr.mxu0 0.0
    %1056 = vmatpush1.msra.mxu0 %v1019
    %1057 = vmatprep.subr.mxu0 0.0
    %1058 = vmatpush1.msra.mxu0 %v1018
    %1059 = vmatprep.subr.mxu0 0.0
    %1060 = vmatpush1.msra.mxu0 %v1017
    %1061 = vmatprep.subr.mxu0 0.0
    %1062 = vmatpush2.msra.mxu0 0.0
    %1063 = vmatprep.subr.mxu0 0.0
    %1064 = vmatpush2.msra.mxu0 0.0
    %1065 = vmatprep.subr.mxu0 0.0
    %1066 = vmatpush2.msra.mxu0 0.0
    %1067 = vmatprep.subr.mxu0 0.0
    %1068 = vmatpush2.msra.mxu0 0.0
    %1069 = vmatprep.subr.mxu0 0.0
    %1070 = vmatpush2.msra.mxu0 0.0
    %1071 = vmatprep.subr.mxu0 0.0
    %1072 = vmatpush2.msra.mxu0 0.0
    %1073 = vmatprep.subr.mxu0 0.0
    %1074 = vmatpush2.msra.mxu0 0.0
    %1075 = vmatprep.subr.mxu0 0.0
    %1076 = vmatpush2.msra.mxu0 0.0
    %1077 = vmatprep.subr.mxu0 0.0
    %1078 = vmatpush2.msra.mxu0 0.0
    %1079 = vmatprep.subr.mxu0 0.0
    %1080 = vmatpush2.msra.mxu0 0.0
    %1081 = vmatprep.subr.mxu0 0.0
    %1082 = vmatpush2.msra.mxu0 0.0
    %1083 = vmatprep.subr.mxu0 0.0
    %1084 = vmatpush2.msra.mxu0 0.0
    %1085 = vmatprep.subr.mxu0 0.0
    %1086 = vmatpush2.msra.mxu0 0.0
    %1087 = vmatprep.subr.mxu0 0.0
    %1088 = vmatpush2.msra.mxu0 0.0
    %1089 = vmatprep.subr.mxu0 0.0
    %1090 = vmatpush2.msra.mxu0 0.0
    %1091 = vmatprep.subr.mxu0 0.0
    %1092 = vmatpush2.msra.mxu0 0.0
    %1093 = vmatprep.mubr.f32.mxu0 0.0
    %1094 = vmatmul.mubr.f32.gmra.mxu0 %v467
    %v1095 = vpop.f32.mrf.mxu0
    %v1096 = vadd.f32 %v1027, %v1095
    %v1097 = vpop.f32.mrf.mxu0
    %1098 = vmatprep.mubr.f32.mxu0 0.0
    %1099 = vmatmul.mubr.f32.gmra.mxu0 %v470
    %v1100 = vpop.f32.mrf.mxu0
    %v1101 = vadd.f32 %v1027, %v1100
    %v1102 = vpop.f32.mrf.mxu0
    %1103 = vmatprep.mubr.f32.mxu0 0.0
    %1104 = vmatmul.mubr.f32.gmra.mxu0 %v473
    %v1105 = vpop.f32.mrf.mxu0
    %v1106 = vadd.f32 %v1027, %v1105
    %v1107 = vpop.f32.mrf.mxu0
    %1108 = vmatprep.mubr.f32.mxu0 0.0
    %1109 = vmatmul.mubr.f32.gmra.mxu0 %v476
    %v1110 = vpop.f32.mrf.mxu0
    %v1111 = vadd.f32 %v1027, %v1110
    %v1112 = vpop.f32.mrf.mxu0
    %1113 = vdwg.mxu0
    %s1114 = scalar_lea.vmem [#allocation8], 32
    %v1115 = vld [vmem:[%s1114] sm:$0xff]
    %v1116 = vld [vmem:[%s1114 + $0x8] sm:$0xff]
    %v1117 = vld [vmem:[%s1114 + $0x10] sm:$0xff]
    %v1118 = vld [vmem:[%s1114 + $0x18] sm:$0xff]
    %s1119 = scalar_lea.vmem [#allocation10], 1
    %v1120 = vld [vmem:[%s1119] sm:$0x1]
    %v1122 = vlaneseq
    %v1123 = vshrl.u32 %v1122, 7
    %v1124 = vsub.s32 0, %v1123
    %v1125 = vrot.slane %v1120, %v1124
    %1127 = vmatprep.subr.mxu0 0.0
    %1128 = vmatpush1.msra.mxu0 0.0
    %1129 = vmatprep.subr.mxu0 0.0
    %1130 = vmatpush1.msra.mxu0 0.0
    %1131 = vmatprep.subr.mxu0 0.0
    %1132 = vmatpush1.msra.mxu0 0.0
    %1133 = vmatprep.subr.mxu0 0.0
    %1134 = vmatpush1.msra.mxu0 0.0
    %1135 = vmatprep.subr.mxu0 0.0
    %1136 = vmatpush1.msra.mxu0 0.0
    %1137 = vmatprep.subr.mxu0 0.0
    %1138 = vmatpush1.msra.mxu0 0.0
    %1139 = vmatprep.subr.mxu0 0.0
    %1140 = vmatpush1.msra.mxu0 0.0
    %1141 = vmatprep.subr.mxu0 0.0
    %1142 = vmatpush1.msra.mxu0 0.0
    %1143 = vmatprep.subr.mxu0 0.0
    %1144 = vmatpush1.msra.mxu0 0.0
    %1145 = vmatprep.subr.mxu0 0.0
    %1146 = vmatpush1.msra.mxu0 0.0
    %1147 = vmatprep.subr.mxu0 0.0
    %1148 = vmatpush1.msra.mxu0 0.0
    %1149 = vmatprep.subr.mxu0 0.0
    %1150 = vmatpush1.msra.mxu0 0.0
    %1151 = vmatprep.subr.mxu0 0.0
    %1152 = vmatpush1.msra.mxu0 %v1118
    %1153 = vmatprep.subr.mxu0 0.0
    %1154 = vmatpush1.msra.mxu0 %v1117
    %1155 = vmatprep.subr.mxu0 0.0
    %1156 = vmatpush1.msra.mxu0 %v1116
    %1157 = vmatprep.subr.mxu0 0.0
    %1158 = vmatpush1.msra.mxu0 %v1115
    %1159 = vmatprep.subr.mxu0 0.0
    %1160 = vmatpush2.msra.mxu0 0.0
    %1161 = vmatprep.subr.mxu0 0.0
    %1162 = vmatpush2.msra.mxu0 0.0
    %1163 = vmatprep.subr.mxu0 0.0
    %1164 = vmatpush2.msra.mxu0 0.0
    %1165 = vmatprep.subr.mxu0 0.0
    %1166 = vmatpush2.msra.mxu0 0.0
    %1167 = vmatprep.subr.mxu0 0.0
    %1168 = vmatpush2.msra.mxu0 0.0
    %1169 = vmatprep.subr.mxu0 0.0
    %1170 = vmatpush2.msra.mxu0 0.0
    %1171 = vmatprep.subr.mxu0 0.0
    %1172 = vmatpush2.msra.mxu0 0.0
    %1173 = vmatprep.subr.mxu0 0.0
    %1174 = vmatpush2.msra.mxu0 0.0
    %1175 = vmatprep.subr.mxu0 0.0
    %1176 = vmatpush2.msra.mxu0 0.0
    %1177 = vmatprep.subr.mxu0 0.0
    %1178 = vmatpush2.msra.mxu0 0.0
    %1179 = vmatprep.subr.mxu0 0.0
    %1180 = vmatpush2.msra.mxu0 0.0
    %1181 = vmatprep.subr.mxu0 0.0
    %1182 = vmatpush2.msra.mxu0 0.0
    %1183 = vmatprep.subr.mxu0 0.0
    %1184 = vmatpush2.msra.mxu0 0.0
    %1185 = vmatprep.subr.mxu0 0.0
    %1186 = vmatpush2.msra.mxu0 0.0
    %1187 = vmatprep.subr.mxu0 0.0
    %1188 = vmatpush2.msra.mxu0 0.0
    %1189 = vmatprep.subr.mxu0 0.0
    %1190 = vmatpush2.msra.mxu0 0.0
    %1191 = vmatprep.mubr.f32.mxu0 0.0
    %1192 = vmatmul.mubr.f32.gmra.mxu0 %v467
    %v1193 = vpop.f32.mrf.mxu0
    %v1194 = vadd.f32 %v1125, %v1193
    %v1195 = vpop.f32.mrf.mxu0
    %1196 = vmatprep.mubr.f32.mxu0 0.0
    %1197 = vmatmul.mubr.f32.gmra.mxu0 %v470
    %v1198 = vpop.f32.mrf.mxu0
    %v1199 = vadd.f32 %v1125, %v1198
    %v1200 = vpop.f32.mrf.mxu0
    %1201 = vmatprep.mubr.f32.mxu0 0.0
    %1202 = vmatmul.mubr.f32.gmra.mxu0 %v473
    %v1203 = vpop.f32.mrf.mxu0
    %v1204 = vadd.f32 %v1125, %v1203
    %v1205 = vpop.f32.mrf.mxu0
    %1206 = vmatprep.mubr.f32.mxu0 0.0
    %1207 = vmatmul.mubr.f32.gmra.mxu0 %v476
    %v1208 = vpop.f32.mrf.mxu0
    %v1209 = vadd.f32 %v1125, %v1208
    %v1210 = vpop.f32.mrf.mxu0
    %1211 = vdwg.mxu0
    %s1212 = scalar_lea.vmem [#allocation11], 32
    %v1213 = vld [vmem:[%s1212] sm:$0xff]
    %v1214 = vld [vmem:[%s1212 + $0x8] sm:$0xff]
    %v1215 = vld [vmem:[%s1212 + $0x10] sm:$0xff]
    %v1216 = vld [vmem:[%s1212 + $0x18] sm:$0xff]
    %s1217 = scalar_lea.vmem %s9, 1
    %v1218 = vld [vmem:[%s1217] sm:$0x1]
    %v1220 = vlaneseq
    %v1221 = vshrl.u32 %v1220, 7
    %v1222 = vsub.s32 0, %v1221
    %v1223 = vrot.slane %v1218, %v1222
    %1225 = vmatprep.subr.mxu0 0.0
    %1226 = vmatpush1.msra.mxu0 0.0
    %1227 = vmatprep.subr.mxu0 0.0
    %1228 = vmatpush1.msra.mxu0 0.0
    %1229 = vmatprep.subr.mxu0 0.0
    %1230 = vmatpush1.msra.mxu0 0.0
    %1231 = vmatprep.subr.mxu0 0.0
    %1232 = vmatpush1.msra.mxu0 0.0
    %1233 = vmatprep.subr.mxu0 0.0
    %1234 = vmatpush1.msra.mxu0 0.0
    %1235 = vmatprep.subr.mxu0 0.0
    %1236 = vmatpush1.msra.mxu0 0.0
    %1237 = vmatprep.subr.mxu0 0.0
    %1238 = vmatpush1.msra.mxu0 0.0
    %1239 = vmatprep.subr.mxu0 0.0
    %1240 = vmatpush1.msra.mxu0 0.0
    %1241 = vmatprep.subr.mxu0 0.0
    %1242 = vmatpush1.msra.mxu0 0.0
    %1243 = vmatprep.subr.mxu0 0.0
    %1244 = vmatpush1.msra.mxu0 0.0
    %1245 = vmatprep.subr.mxu0 0.0
    %1246 = vmatpush1.msra.mxu0 0.0
    %1247 = vmatprep.subr.mxu0 0.0
    %1248 = vmatpush1.msra.mxu0 0.0
    %1249 = vmatprep.subr.mxu0 0.0
    %1250 = vmatpush1.msra.mxu0 %v1216
    %1251 = vmatprep.subr.mxu0 0.0
    %1252 = vmatpush1.msra.mxu0 %v1215
    %1253 = vmatprep.subr.mxu0 0.0
    %1254 = vmatpush1.msra.mxu0 %v1214
    %1255 = vmatprep.subr.mxu0 0.0
    %1256 = vmatpush1.msra.mxu0 %v1213
    %1257 = vmatprep.subr.mxu0 0.0
    %1258 = vmatpush2.msra.mxu0 0.0
    %1259 = vmatprep.subr.mxu0 0.0
    %1260 = vmatpush2.msra.mxu0 0.0
    %1261 = vmatprep.subr.mxu0 0.0
    %1262 = vmatpush2.msra.mxu0 0.0
    %1263 = vmatprep.subr.mxu0 0.0
    %1264 = vmatpush2.msra.mxu0 0.0
    %1265 = vmatprep.subr.mxu0 0.0
    %1266 = vmatpush2.msra.mxu0 0.0
    %1267 = vmatprep.subr.mxu0 0.0
    %1268 = vmatpush2.msra.mxu0 0.0
    %1269 = vmatprep.subr.mxu0 0.0
    %1270 = vmatpush2.msra.mxu0 0.0
    %1271 = vmatprep.subr.mxu0 0.0
    %1272 = vmatpush2.msra.mxu0 0.0
    %1273 = vmatprep.subr.mxu0 0.0
    %1274 = vmatpush2.msra.mxu0 0.0
    %1275 = vmatprep.subr.mxu0 0.0
    %1276 = vmatpush2.msra.mxu0 0.0
    %1277 = vmatprep.subr.mxu0 0.0
    %1278 = vmatpush2.msra.mxu0 0.0
    %1279 = vmatprep.subr.mxu0 0.0
    %1280 = vmatpush2.msra.mxu0 0.0
    %1281 = vmatprep.subr.mxu0 0.0
    %1282 = vmatpush2.msra.mxu0 0.0
    %1283 = vmatprep.subr.mxu0 0.0
    %1284 = vmatpush2.msra.mxu0 0.0
    %1285 = vmatprep.subr.mxu0 0.0
    %1286 = vmatpush2.msra.mxu0 0.0
    %1287 = vmatprep.subr.mxu0 0.0
    %1288 = vmatpush2.msra.mxu0 0.0
    %1289 = vmatprep.mubr.f32.mxu0 0.0
    %1290 = vmatmul.mubr.f32.gmra.mxu0 %v467
    %v1291 = vpop.f32.mrf.mxu0
    %v1292 = vadd.f32 %v1223, %v1291
    %v1293 = vpop.f32.mrf.mxu0
    %1294 = vmatprep.mubr.f32.mxu0 0.0
    %1295 = vmatmul.mubr.f32.gmra.mxu0 %v470
    %v1296 = vpop.f32.mrf.mxu0
    %v1297 = vadd.f32 %v1223, %v1296
    %v1298 = vpop.f32.mrf.mxu0
    %1299 = vmatprep.mubr.f32.mxu0 0.0
    %1300 = vmatmul.mubr.f32.gmra.mxu0 %v473
    %v1301 = vpop.f32.mrf.mxu0
    %v1302 = vadd.f32 %v1223, %v1301
    %v1303 = vpop.f32.mrf.mxu0
    %1304 = vmatprep.mubr.f32.mxu0 0.0
    %1305 = vmatmul.mubr.f32.gmra.mxu0 %v476
    %v1306 = vpop.f32.mrf.mxu0
    %v1307 = vadd.f32 %v1223, %v1306
    %v1308 = vpop.f32.mrf.mxu0
    %1309 = vdwg.mxu0
    %v1311 = vsel %vm755, %v1096, 0
    %v1314 = vsel %vm755, %v1101, 0
    %v1317 = vsel %vm755, %v1106, 0
    %v1320 = vsel %vm755, %v1111, 0
    %v1323 = vsel %vm755, %v1194, 0
    %v1326 = vsel %vm755, %v1199, 0
    %v1329 = vsel %vm755, %v1204, 0
    %v1332 = vsel %vm755, %v1209, 0
    %1334 = vmatprep.subr.mxu0 0.0
    %1335 = vmatpush1.xpose.msra.mxu0 0.0
    %1336 = vmatprep.subr.mxu0 0.0
    %1337 = vmatpush1.xpose.msra.mxu0 0.0
    %1338 = vmatprep.subr.mxu0 0.0
    %1339 = vmatpush1.xpose.msra.mxu0 0.0
    %1340 = vmatprep.subr.mxu0 0.0
    %1341 = vmatpush1.xpose.msra.mxu0 0.0
    %1342 = vmatprep.subr.mxu0 0.0
    %1343 = vmatpush1.xpose.msra.mxu0 0.0
    %1344 = vmatprep.subr.mxu0 0.0
    %1345 = vmatpush1.xpose.msra.mxu0 0.0
    %1346 = vmatprep.subr.mxu0 0.0
    %1347 = vmatpush1.xpose.msra.mxu0 0.0
    %1348 = vmatprep.subr.mxu0 0.0
    %1349 = vmatpush1.xpose.msra.mxu0 0.0
    %1350 = vmatprep.subr.mxu0 0.0
    %1351 = vmatpush1.xpose.msra.mxu0 0.0
    %1352 = vmatprep.subr.mxu0 0.0
    %1353 = vmatpush1.xpose.msra.mxu0 0.0
    %1354 = vmatprep.subr.mxu0 0.0
    %1355 = vmatpush1.xpose.msra.mxu0 0.0
    %1356 = vmatprep.subr.mxu0 0.0
    %1357 = vmatpush1.xpose.msra.mxu0 0.0
    %1358 = vmatprep.subr.mxu0 0.0
    %1359 = vmatpush1.xpose.msra.mxu0 %v1332
    %1360 = vmatprep.subr.mxu0 0.0
    %1361 = vmatpush1.xpose.msra.mxu0 %v1329
    %1362 = vmatprep.subr.mxu0 0.0
    %1363 = vmatpush1.xpose.msra.mxu0 %v1326
    %1364 = vmatprep.subr.mxu0 0.0
    %1365 = vmatpush1.xpose.msra.mxu0 %v1323
    %1366 = vmatprep.subr.mxu0 0.0
    %1367 = vmatpush2.xpose.msra.mxu0 0.0
    %1368 = vmatprep.subr.mxu0 0.0
    %1369 = vmatpush2.xpose.msra.mxu0 0.0
    %1370 = vmatprep.subr.mxu0 0.0
    %1371 = vmatpush2.xpose.msra.mxu0 0.0
    %1372 = vmatprep.subr.mxu0 0.0
    %1373 = vmatpush2.xpose.msra.mxu0 0.0
    %1374 = vmatprep.subr.mxu0 0.0
    %1375 = vmatpush2.xpose.msra.mxu0 0.0
    %1376 = vmatprep.subr.mxu0 0.0
    %1377 = vmatpush2.xpose.msra.mxu0 0.0
    %1378 = vmatprep.subr.mxu0 0.0
    %1379 = vmatpush2.xpose.msra.mxu0 0.0
    %1380 = vmatprep.subr.mxu0 0.0
    %1381 = vmatpush2.xpose.msra.mxu0 0.0
    %1382 = vmatprep.subr.mxu0 0.0
    %1383 = vmatpush2.xpose.msra.mxu0 0.0
    %1384 = vmatprep.subr.mxu0 0.0
    %1385 = vmatpush2.xpose.msra.mxu0 0.0
    %1386 = vmatprep.subr.mxu0 0.0
    %1387 = vmatpush2.xpose.msra.mxu0 0.0
    %1388 = vmatprep.subr.mxu0 0.0
    %1389 = vmatpush2.xpose.msra.mxu0 0.0
    %1390 = vmatprep.subr.mxu0 0.0
    %1391 = vmatpush2.xpose.msra.mxu0 0.0
    %1392 = vmatprep.subr.mxu0 0.0
    %1393 = vmatpush2.xpose.msra.mxu0 0.0
    %1394 = vmatprep.subr.mxu0 0.0
    %1395 = vmatpush2.xpose.msra.mxu0 0.0
    %1396 = vmatprep.subr.mxu0 0.0
    %1397 = vmatpush2.xpose.msra.mxu0 0.0
    %1398 = vmatprep.mubr.f32.mxu0 0.0
    %1399 = vmatmul.mubr.f32.gmra.mxu0 %v1311
    %v1400 = vpop.f32.mrf.mxu0
    %v1401 = vadd.f32 0.0, %v1400
    %v1402 = vpop.f32.mrf.mxu0
    %1403 = vmatprep.mubr.f32.mxu0 0.0
    %1404 = vmatmul.mubr.f32.gmra.mxu0 %v1314
    %v1405 = vpop.f32.mrf.mxu0
    %v1406 = vadd.f32 0.0, %v1405
    %v1407 = vpop.f32.mrf.mxu0
    %1408 = vmatprep.mubr.f32.mxu0 0.0
    %1409 = vmatmul.mubr.f32.gmra.mxu0 %v1317
    %v1410 = vpop.f32.mrf.mxu0
    %v1411 = vadd.f32 0.0, %v1410
    %v1412 = vpop.f32.mrf.mxu0
    %1413 = vmatprep.mubr.f32.mxu0 0.0
    %1414 = vmatmul.mubr.f32.gmra.mxu0 %v1320
    %v1415 = vpop.f32.mrf.mxu0
    %v1416 = vadd.f32 0.0, %v1415
    %v1417 = vpop.f32.mrf.mxu0
    %1418 = vdwg.mxu0
    %v1419 = vmul.f32 %v1401, 0.25
    %v1420 = vmul.f32 %v1406, 0.25
    %v1421 = vmul.f32 %v1411, 0.25
    %v1422 = vmul.f32 %v1416, 0.25
    %v1423 = vadd.f32 %v1419, %v389
    %v1424 = vadd.f32 %v1420, %v390
    %v1425 = vadd.f32 %v1421, %v391
    %v1426 = vadd.f32 %v1422, %v392
    %v1427 = vsel %vm393, %v1423, -inf
    %1428 = vmax.xlane.f32.xlu0 %v1427
    %v1429 = vpop.xlane.xlu0 %1428
    %v1430 = vsel %vm393, %v1424, -inf
    %1431 = vmax.xlane.f32.xlu0 %v1430
    %v1432 = vpop.xlane.xlu0 %1431
    %v1433 = vsel %vm393, %v1425, -inf
    %1434 = vmax.xlane.f32.xlu0 %v1433
    %v1435 = vpop.xlane.xlu0 %1434
    %v1436 = vsel %vm393, %v1426, -inf
    %1437 = vmax.xlane.f32.xlu0 %v1436
    %v1438 = vpop.xlane.xlu0 %1437
    %v1439 = vsub.f32 %v1423, %v1429
    %v1440 = vsub.f32 %v1424, %v1432
    %v1441 = vsub.f32 %v1425, %v1435
    %v1442 = vsub.f32 %v1426, %v1438
    %v1443 = vmul.f32 %v1439, 1.442695
    %v1444 = vpow.pop %v1443
    %v1445 = vmul.f32 %v1440, 1.442695
    %v1446 = vpow.pop %v1445
    %v1447 = vmul.f32 %v1441, 1.442695
    %v1448 = vpow.pop %v1447
    %v1449 = vmul.f32 %v1442, 1.442695
    %v1450 = vpow.pop %v1449
    %v1451 = vsel %vm393, %v1444, 0.0
    %1452 = vadd.xlane.f32.xlu0 %v1451
    %v1453 = vpop.xlane.xlu0 %1452
    %v1454 = vsel %vm393, %v1446, 0.0
    %1455 = vadd.xlane.f32.xlu0 %v1454
    %v1456 = vpop.xlane.xlu0 %1455
    %v1457 = vsel %vm393, %v1448, 0.0
    %1458 = vadd.xlane.f32.xlu0 %v1457
    %v1459 = vpop.xlane.xlu0 %1458
    %v1460 = vsel %vm393, %v1450, 0.0
    %1461 = vadd.xlane.f32.xlu0 %v1460
    %v1462 = vpop.xlane.xlu0 %1461
    %v1463 = vrcp.pop %v1453
    %v1464 = vmul.f32 %v1444, %v1463
    %v1465 = vrcp.pop %v1456
    %v1466 = vmul.f32 %v1446, %v1465
    %v1467 = vrcp.pop %v1459
    %v1468 = vmul.f32 %v1448, %v1467
    %v1469 = vrcp.pop %v1462
    %v1470 = vmul.f32 %v1450, %v1469
    %v1472 = vsel %vm393, %v1464, 0
    %v1475 = vsel %vm393, %v1466, 0
    %v1478 = vsel %vm393, %v1468, 0
    %v1481 = vsel %vm393, %v1470, 0
    %1483 = vmatprep.subr.mxu0 0.0
    %1484 = vmatpush1.msra.mxu0 0.0
    %1485 = vmatprep.subr.mxu0 0.0
    %1486 = vmatpush1.msra.mxu0 0.0
    %1487 = vmatprep.subr.mxu0 0.0
    %1488 = vmatpush1.msra.mxu0 0.0
    %1489 = vmatprep.subr.mxu0 0.0
    %1490 = vmatpush1.msra.mxu0 0.0
    %1491 = vmatprep.subr.mxu0 0.0
    %1492 = vmatpush1.msra.mxu0 0.0
    %1493 = vmatprep.subr.mxu0 0.0
    %1494 = vmatpush1.msra.mxu0 0.0
    %1495 = vmatprep.subr.mxu0 0.0
    %1496 = vmatpush1.msra.mxu0 0.0
    %1497 = vmatprep.subr.mxu0 0.0
    %1498 = vmatpush1.msra.mxu0 0.0
    %1499 = vmatprep.subr.mxu0 0.0
    %1500 = vmatpush1.msra.mxu0 0.0
    %1501 = vmatprep.subr.mxu0 0.0
    %1502 = vmatpush1.msra.mxu0 0.0
    %1503 = vmatprep.subr.mxu0 0.0
    %1504 = vmatpush1.msra.mxu0 0.0
    %1505 = vmatprep.subr.mxu0 0.0
    %1506 = vmatpush1.msra.mxu0 0.0
    %1507 = vmatprep.subr.mxu0 0.0
    %1508 = vmatpush1.msra.mxu0 %v1307
    %1509 = vmatprep.subr.mxu0 0.0
    %1510 = vmatpush1.msra.mxu0 %v1302
    %1511 = vmatprep.subr.mxu0 0.0
    %1512 = vmatpush1.msra.mxu0 %v1297
    %1513 = vmatprep.subr.mxu0 0.0
    %1514 = vmatpush1.msra.mxu0 %v1292
    %1515 = vmatprep.subr.mxu0 0.0
    %1516 = vmatpush2.msra.mxu0 0.0
    %1517 = vmatprep.subr.mxu0 0.0
    %1518 = vmatpush2.msra.mxu0 0.0
    %1519 = vmatprep.subr.mxu0 0.0
    %1520 = vmatpush2.msra.mxu0 0.0
    %1521 = vmatprep.subr.mxu0 0.0
    %1522 = vmatpush2.msra.mxu0 0.0
    %1523 = vmatprep.subr.mxu0 0.0
    %1524 = vmatpush2.msra.mxu0 0.0
    %1525 = vmatprep.subr.mxu0 0.0
    %1526 = vmatpush2.msra.mxu0 0.0
    %1527 = vmatprep.subr.mxu0 0.0
    %1528 = vmatpush2.msra.mxu0 0.0
    %1529 = vmatprep.subr.mxu0 0.0
    %1530 = vmatpush2.msra.mxu0 0.0
    %1531 = vmatprep.subr.mxu0 0.0
    %1532 = vmatpush2.msra.mxu0 0.0
    %1533 = vmatprep.subr.mxu0 0.0
    %1534 = vmatpush2.msra.mxu0 0.0
    %1535 = vmatprep.subr.mxu0 0.0
    %1536 = vmatpush2.msra.mxu0 0.0
    %1537 = vmatprep.subr.mxu0 0.0
    %1538 = vmatpush2.msra.mxu0 0.0
    %1539 = vmatprep.subr.mxu0 0.0
    %1540 = vmatpush2.msra.mxu0 0.0
    %1541 = vmatprep.subr.mxu0 0.0
    %1542 = vmatpush2.msra.mxu0 0.0
    %1543 = vmatprep.subr.mxu0 0.0
    %1544 = vmatpush2.msra.mxu0 0.0
    %1545 = vmatprep.subr.mxu0 0.0
    %1546 = vmatpush2.msra.mxu0 0.0
    %1547 = vmatprep.mubr.f32.mxu0 0.0
    %1548 = vmatmul.mubr.f32.gmra.mxu0 %v1472
    %v1549 = vpop.f32.mrf.mxu0
    %v1550 = vadd.f32 0.0, %v1549
    %v1551 = vpop.f32.mrf.mxu0
    %1552 = vmatprep.mubr.f32.mxu0 0.0
    %1553 = vmatmul.mubr.f32.gmra.mxu0 %v1475
    %v1554 = vpop.f32.mrf.mxu0
    %v1555 = vadd.f32 0.0, %v1554
    %v1556 = vpop.f32.mrf.mxu0
    %1557 = vmatprep.mubr.f32.mxu0 0.0
    %1558 = vmatmul.mubr.f32.gmra.mxu0 %v1478
    %v1559 = vpop.f32.mrf.mxu0
    %v1560 = vadd.f32 0.0, %v1559
    %v1561 = vpop.f32.mrf.mxu0
    %1562 = vmatprep.mubr.f32.mxu0 0.0
    %1563 = vmatmul.mubr.f32.gmra.mxu0 %v1481
    %v1564 = vpop.f32.mrf.mxu0
    %v1565 = vadd.f32 0.0, %v1564
    %v1566 = vpop.f32.mrf.mxu0
    %1567 = vdwg.mxu0
    %s1568 = scalar_lea.vmem [#allocation13], 16
    %v1569 = vld [vmem:[%s1568] sm:$0xff]
    %v1570 = vld [vmem:[%s1568 + $0x8] sm:$0xff]
    %v1572 = vsel %vm755, %v1550, 0
    %v1575 = vsel %vm755, %v1555, 0
    %v1578 = vsel %vm755, %v1560, 0
    %v1581 = vsel %vm755, %v1565, 0
    %1583 = vmatprep.subr.mxu0 0.0
    %1584 = vmatpush1.msra.mxu0 0.0
    %1585 = vmatprep.subr.mxu0 0.0
    %1586 = vmatpush1.msra.mxu0 0.0
    %1587 = vmatprep.subr.mxu0 0.0
    %1588 = vmatpush1.msra.mxu0 0.0
    %1589 = vmatprep.subr.mxu0 0.0
    %1590 = vmatpush1.msra.mxu0 0.0
    %1591 = vmatprep.subr.mxu0 0.0
    %1592 = vmatpush1.msra.mxu0 0.0
    %1593 = vmatprep.subr.mxu0 0.0
    %1594 = vmatpush1.msra.mxu0 0.0
    %1595 = vmatprep.subr.mxu0 0.0
    %1596 = vmatpush1.msra.mxu0 0.0
    %1597 = vmatprep.subr.mxu0 0.0
    %1598 = vmatpush1.msra.mxu0 0.0
    %1599 = vmatprep.subr.mxu0 0.0
    %1600 = vmatpush1.msra.mxu0 0.0
    %1601 = vmatprep.subr.mxu0 0.0
    %1602 = vmatpush1.msra.mxu0 0.0
    %1603 = vmatprep.subr.mxu0 0.0
    %1604 = vmatpush1.msra.mxu0 0.0
    %1605 = vmatprep.subr.mxu0 0.0
    %1606 = vmatpush1.msra.mxu0 0.0
    %1607 = vmatprep.subr.mxu0 0.0
    %1608 = vmatpush1.msra.mxu0 0.0
    %1609 = vmatprep.subr.mxu0 0.0
    %1610 = vmatpush1.msra.mxu0 0.0
    %1611 = vmatprep.subr.mxu0 0.0
    %1612 = vmatpush1.msra.mxu0 %v1570
    %1613 = vmatprep.subr.mxu0 0.0
    %1614 = vmatpush1.msra.mxu0 %v1569
    %1615 = vmatprep.subr.mxu0 0.0
    %1616 = vmatpush2.msra.mxu0 0.0
    %1617 = vmatprep.subr.mxu0 0.0
    %1618 = vmatpush2.msra.mxu0 0.0
    %1619 = vmatprep.subr.mxu0 0.0
    %1620 = vmatpush2.msra.mxu0 0.0
    %1621 = vmatprep.subr.mxu0 0.0
    %1622 = vmatpush2.msra.mxu0 0.0
    %1623 = vmatprep.subr.mxu0 0.0
    %1624 = vmatpush2.msra.mxu0 0.0
    %1625 = vmatprep.subr.mxu0 0.0
    %1626 = vmatpush2.msra.mxu0 0.0
    %1627 = vmatprep.subr.mxu0 0.0
    %1628 = vmatpush2.msra.mxu0 0.0
    %1629 = vmatprep.subr.mxu0 0.0
    %1630 = vmatpush2.msra.mxu0 0.0
    %1631 = vmatprep.subr.mxu0 0.0
    %1632 = vmatpush2.msra.mxu0 0.0
    %1633 = vmatprep.subr.mxu0 0.0
    %1634 = vmatpush2.msra.mxu0 0.0
    %1635 = vmatprep.subr.mxu0 0.0
    %1636 = vmatpush2.msra.mxu0 0.0
    %1637 = vmatprep.subr.mxu0 0.0
    %1638 = vmatpush2.msra.mxu0 0.0
    %1639 = vmatprep.subr.mxu0 0.0
    %1640 = vmatpush2.msra.mxu0 0.0
    %1641 = vmatprep.subr.mxu0 0.0
    %1642 = vmatpush2.msra.mxu0 0.0
    %1643 = vmatprep.subr.mxu0 0.0
    %1644 = vmatpush2.msra.mxu0 0.0
    %1645 = vmatprep.subr.mxu0 0.0
    %1646 = vmatpush2.msra.mxu0 0.0
    %1647 = vmatprep.mubr.f32.mxu0 0.0
    %1648 = vmatmul.mubr.f32.gmra.mxu0 %v1572
    %v1649 = vpop.f32.mrf.mxu0
    %v1650 = vadd.f32 0.0, %v1649
    %v1651 = vpop.f32.mrf.mxu0
    %1652 = vmatprep.mubr.f32.mxu0 0.0
    %1653 = vmatmul.mubr.f32.gmra.mxu0 %v1575
    %v1654 = vpop.f32.mrf.mxu0
    %v1655 = vadd.f32 0.0, %v1654
    %v1656 = vpop.f32.mrf.mxu0
    %1657 = vmatprep.mubr.f32.mxu0 0.0
    %1658 = vmatmul.mubr.f32.gmra.mxu0 %v1578
    %v1659 = vpop.f32.mrf.mxu0
    %v1660 = vadd.f32 0.0, %v1659
    %v1661 = vpop.f32.mrf.mxu0
    %1662 = vmatprep.mubr.f32.mxu0 0.0
    %1663 = vmatmul.mubr.f32.gmra.mxu0 %v1581
    %v1664 = vpop.f32.mrf.mxu0
    %v1665 = vadd.f32 0.0, %v1664
    %v1666 = vpop.f32.mrf.mxu0
    %1667 = vdwg.mxu0
    %v1669 = vsel %vm755, %v996, 0
    %v1672 = vsel %vm755, %v1001, 0
    %v1675 = vsel %vm755, %v1006, 0
    %v1678 = vsel %vm755, %v1011, 0
    %1680 = vmatprep.subr.mxu0 0.0
    %1681 = vmatpush1.msra.mxu0 0.0
    %1682 = vmatprep.subr.mxu0 0.0
    %1683 = vmatpush1.msra.mxu0 0.0
    %1684 = vmatprep.subr.mxu0 0.0
    %1685 = vmatpush1.msra.mxu0 0.0
    %1686 = vmatprep.subr.mxu0 0.0
    %1687 = vmatpush1.msra.mxu0 0.0
    %1688 = vmatprep.subr.mxu0 0.0
    %1689 = vmatpush1.msra.mxu0 0.0
    %1690 = vmatprep.subr.mxu0 0.0
    %1691 = vmatpush1.msra.mxu0 0.0
    %1692 = vmatprep.subr.mxu0 0.0
    %1693 = vmatpush1.msra.mxu0 0.0
    %1694 = vmatprep.subr.mxu0 0.0
    %1695 = vmatpush1.msra.mxu0 0.0
    %1696 = vmatprep.subr.mxu0 0.0
    %1697 = vmatpush1.msra.mxu0 0.0
    %1698 = vmatprep.subr.mxu0 0.0
    %1699 = vmatpush1.msra.mxu0 0.0
    %1700 = vmatprep.subr.mxu0 0.0
    %1701 = vmatpush1.msra.mxu0 0.0
    %1702 = vmatprep.subr.mxu0 0.0
    %1703 = vmatpush1.msra.mxu0 0.0
    %1704 = vmatprep.subr.mxu0 0.0
    %1705 = vmatpush1.msra.mxu0 0.0
    %1706 = vmatprep.subr.mxu0 0.0
    %1707 = vmatpush1.msra.mxu0 0.0
    %1708 = vmatprep.subr.mxu0 0.0
    %1709 = vmatpush1.msra.mxu0 %v1015
    %1710 = vmatprep.subr.mxu0 0.0
    %1711 = vmatpush1.msra.mxu0 %v1014
    %1712 = vmatprep.subr.mxu0 0.0
    %1713 = vmatpush2.msra.mxu0 0.0
    %1714 = vmatprep.subr.mxu0 0.0
    %1715 = vmatpush2.msra.mxu0 0.0
    %1716 = vmatprep.subr.mxu0 0.0
    %1717 = vmatpush2.msra.mxu0 0.0
    %1718 = vmatprep.subr.mxu0 0.0
    %1719 = vmatpush2.msra.mxu0 0.0
    %1720 = vmatprep.subr.mxu0 0.0
    %1721 = vmatpush2.msra.mxu0 0.0
    %1722 = vmatprep.subr.mxu0 0.0
    %1723 = vmatpush2.msra.mxu0 0.0
    %1724 = vmatprep.subr.mxu0 0.0
    %1725 = vmatpush2.msra.mxu0 0.0
    %1726 = vmatprep.subr.mxu0 0.0
    %1727 = vmatpush2.msra.mxu0 0.0
    %1728 = vmatprep.subr.mxu0 0.0
    %1729 = vmatpush2.msra.mxu0 0.0
    %1730 = vmatprep.subr.mxu0 0.0
    %1731 = vmatpush2.msra.mxu0 0.0
    %1732 = vmatprep.subr.mxu0 0.0
    %1733 = vmatpush2.msra.mxu0 0.0
    %1734 = vmatprep.subr.mxu0 0.0
    %1735 = vmatpush2.msra.mxu0 0.0
    %1736 = vmatprep.subr.mxu0 0.0
    %1737 = vmatpush2.msra.mxu0 0.0
    %1738 = vmatprep.subr.mxu0 0.0
    %1739 = vmatpush2.msra.mxu0 0.0
    %1740 = vmatprep.subr.mxu0 0.0
    %1741 = vmatpush2.msra.mxu0 0.0
    %1742 = vmatprep.subr.mxu0 0.0
    %1743 = vmatpush2.msra.mxu0 0.0
    %1744 = vmatprep.mubr.f32.mxu0 0.0
    %1745 = vmatmul.mubr.f32.gmra.mxu0 %v1669
    %v1746 = vpop.f32.mrf.mxu0
    %v1747 = vadd.f32 %v1650, %v1746
    %v1748 = vpop.f32.mrf.mxu0
    %1749 = vmatprep.mubr.f32.mxu0 0.0
    %1750 = vmatmul.mubr.f32.gmra.mxu0 %v1672
    %v1751 = vpop.f32.mrf.mxu0
    %v1752 = vadd.f32 %v1655, %v1751
    %v1753 = vpop.f32.mrf.mxu0
    %1754 = vmatprep.mubr.f32.mxu0 0.0
    %1755 = vmatmul.mubr.f32.gmra.mxu0 %v1675
    %v1756 = vpop.f32.mrf.mxu0
    %v1757 = vadd.f32 %v1660, %v1756
    %v1758 = vpop.f32.mrf.mxu0
    %1759 = vmatprep.mubr.f32.mxu0 0.0
    %1760 = vmatmul.mubr.f32.gmra.mxu0 %v1678
    %v1761 = vpop.f32.mrf.mxu0
    %v1762 = vadd.f32 %v1665, %v1761
    %v1763 = vpop.f32.mrf.mxu0
    %1764 = vdwg.mxu0
    %v1765 = vadd.f32 %v371, %v1747
    %v1766 = vadd.f32 %v376, %v1752
    %v1767 = vadd.f32 %v381, %v1757
    %v1768 = vadd.f32 %v386, %v1762
    %v1769 = vld [vmem:[%s11] sm:$0x1]
    %v1771 = vlaneseq
    %v1772 = vshrl.u32 %v1771, 7
    %v1773 = vsub.s32 0, %v1772
    %v1774 = vrot.slane %v1769, %v1773
    %v1776 = vadd.f32 %v1765, %v1774
    %v1777 = vadd.f32 %v1766, %v1774
    %v1778 = vadd.f32 %v1767, %v1774
    %v1779 = vadd.f32 %v1768, %v1774
    %v1780 = vsel %vm393, %v1776, 0.0
    %1781 = vadd.xlane.f32.xlu0 %v1780
    %v1782 = vpop.xlane.xlu0 %1781
    %v1783 = vsel %vm393, %v1777, 0.0
    %1784 = vadd.xlane.f32.xlu0 %v1783
    %v1785 = vpop.xlane.xlu0 %1784
    %v1786 = vsel %vm393, %v1778, 0.0
    %1787 = vadd.xlane.f32.xlu0 %v1786
    %v1788 = vpop.xlane.xlu0 %1787
    %v1789 = vsel %vm393, %v1779, 0.0
    %1790 = vadd.xlane.f32.xlu0 %v1789
    %v1791 = vpop.xlane.xlu0 %1790
    %v1792 = vmul.f32 %v1782, %v406
    %v1793 = vmul.f32 %v1785, %v406
    %v1794 = vmul.f32 %v1788, %v406
    %v1795 = vmul.f32 %v1791, %v406
    %v1796 = vmul.f32 %v1776, %v1776
    %v1797 = vmul.f32 %v1777, %v1777
    %v1798 = vmul.f32 %v1778, %v1778
    %v1799 = vmul.f32 %v1779, %v1779
    %v1800 = vsel %vm393, %v1796, 0.0
    %1801 = vadd.xlane.f32.xlu0 %v1800
    %v1802 = vpop.xlane.xlu0 %1801
    %v1803 = vsel %vm393, %v1797, 0.0
    %1804 = vadd.xlane.f32.xlu0 %v1803
    %v1805 = vpop.xlane.xlu0 %1804
    %v1806 = vsel %vm393, %v1798, 0.0
    %1807 = vadd.xlane.f32.xlu0 %v1806
    %v1808 = vpop.xlane.xlu0 %1807
    %v1809 = vsel %vm393, %v1799, 0.0
    %1810 = vadd.xlane.f32.xlu0 %v1809
    %v1811 = vpop.xlane.xlu0 %1810
    %v1812 = vmul.f32 %v1802, %v406
    %v1813 = vmul.f32 %v1805, %v406
    %v1814 = vmul.f32 %v1808, %v406
    %v1815 = vmul.f32 %v1811, %v406
    %v1816 = vmul.f32 %v1792, %v1792
    %v1817 = vmul.f32 %v1793, %v1793
    %v1818 = vmul.f32 %v1794, %v1794
    %v1819 = vmul.f32 %v1795, %v1795
    %v1820 = vsub.f32 %v1812, %v1816
    %v1821 = vsub.f32 %v1813, %v1817
    %v1822 = vsub.f32 %v1814, %v1818
    %v1823 = vsub.f32 %v1815, %v1819
    %v1824 = vsub.f32 %v1776, %v1792
    %v1825 = vsub.f32 %v1777, %v1793
    %v1826 = vsub.f32 %v1778, %v1794
    %v1827 = vsub.f32 %v1779, %v1795
    %v1828 = vadd.f32 %v1820, 1e-05
    %v1829 = vadd.f32 %v1821, 1e-05
    %v1830 = vadd.f32 %v1822, 1e-05
    %v1831 = vadd.f32 %v1823, 1e-05
    %v1832 = vrsqrt.pop %v1828
    %v1833 = vrsqrt.pop %v1829
    %v1834 = vrsqrt.pop %v1830
    %v1835 = vrsqrt.pop %v1831
    %v1836 = vmul.f32 %v1824, %v1832
    %v1837 = vmul.f32 %v1825, %v1833
    %v1838 = vmul.f32 %v1826, %v1834
    %v1839 = vmul.f32 %v1827, %v1835
    %v1840 = vld [vmem:[%s12] sm:$0xff]
    %v1841 = vld [vmem:[%s12 + $0x8] sm:$0xff]
    %v1842 = vld [vmem:[%s12 + $0x10] sm:$0xff]
    %v1843 = vld [vmem:[%s12 + $0x18] sm:$0xff]
    %v1844 = vld [vmem:[#allocation14] sm:$0x1]
    %v1846 = vlaneseq
    %v1847 = vshrl.u32 %v1846, 7
    %v1848 = vsub.s32 0, %v1847
    %v1849 = vrot.slane %v1844, %v1848
    %v1852 = vsel %vm393, %v1836, 0
    %v1855 = vsel %vm393, %v1837, 0
    %v1858 = vsel %vm393, %v1838, 0
    %v1861 = vsel %vm393, %v1839, 0
    %1863 = vmatprep.subr.mxu0 0.0
    %1864 = vmatpush1.msra.mxu0 0.0
    %1865 = vmatprep.subr.mxu0 0.0
    %1866 = vmatpush1.msra.mxu0 0.0
    %1867 = vmatprep.subr.mxu0 0.0
    %1868 = vmatpush1.msra.mxu0 0.0
    %1869 = vmatprep.subr.mxu0 0.0
    %1870 = vmatpush1.msra.mxu0 0.0
    %1871 = vmatprep.subr.mxu0 0.0
    %1872 = vmatpush1.msra.mxu0 0.0
    %1873 = vmatprep.subr.mxu0 0.0
    %1874 = vmatpush1.msra.mxu0 0.0
    %1875 = vmatprep.subr.mxu0 0.0
    %1876 = vmatpush1.msra.mxu0 0.0
    %1877 = vmatprep.subr.mxu0 0.0
    %1878 = vmatpush1.msra.mxu0 0.0
    %1879 = vmatprep.subr.mxu0 0.0
    %1880 = vmatpush1.msra.mxu0 0.0
    %1881 = vmatprep.subr.mxu0 0.0
    %1882 = vmatpush1.msra.mxu0 0.0
    %1883 = vmatprep.subr.mxu0 0.0
    %1884 = vmatpush1.msra.mxu0 0.0
    %1885 = vmatprep.subr.mxu0 0.0
    %1886 = vmatpush1.msra.mxu0 0.0
    %1887 = vmatprep.subr.mxu0 0.0
    %1888 = vmatpush1.msra.mxu0 %v1843
    %1889 = vmatprep.subr.mxu0 0.0
    %1890 = vmatpush1.msra.mxu0 %v1842
    %1891 = vmatprep.subr.mxu0 0.0
    %1892 = vmatpush1.msra.mxu0 %v1841
    %1893 = vmatprep.subr.mxu0 0.0
    %1894 = vmatpush1.msra.mxu0 %v1840
    %1895 = vmatprep.subr.mxu0 0.0
    %1896 = vmatpush2.msra.mxu0 0.0
    %1897 = vmatprep.subr.mxu0 0.0
    %1898 = vmatpush2.msra.mxu0 0.0
    %1899 = vmatprep.subr.mxu0 0.0
    %1900 = vmatpush2.msra.mxu0 0.0
    %1901 = vmatprep.subr.mxu0 0.0
    %1902 = vmatpush2.msra.mxu0 0.0
    %1903 = vmatprep.subr.mxu0 0.0
    %1904 = vmatpush2.msra.mxu0 0.0
    %1905 = vmatprep.subr.mxu0 0.0
    %1906 = vmatpush2.msra.mxu0 0.0
    %1907 = vmatprep.subr.mxu0 0.0
    %1908 = vmatpush2.msra.mxu0 0.0
    %1909 = vmatprep.subr.mxu0 0.0
    %1910 = vmatpush2.msra.mxu0 0.0
    %1911 = vmatprep.subr.mxu0 0.0
    %1912 = vmatpush2.msra.mxu0 0.0
    %1913 = vmatprep.subr.mxu0 0.0
    %1914 = vmatpush2.msra.mxu0 0.0
    %1915 = vmatprep.subr.mxu0 0.0
    %1916 = vmatpush2.msra.mxu0 0.0
    %1917 = vmatprep.subr.mxu0 0.0
    %1918 = vmatpush2.msra.mxu0 0.0
    %1919 = vmatprep.subr.mxu0 0.0
    %1920 = vmatpush2.msra.mxu0 0.0
    %1921 = vmatprep.subr.mxu0 0.0
    %1922 = vmatpush2.msra.mxu0 0.0
    %1923 = vmatprep.subr.mxu0 0.0
    %1924 = vmatpush2.msra.mxu0 0.0
    %1925 = vmatprep.subr.mxu0 0.0
    %1926 = vmatpush2.msra.mxu0 0.0
    %1927 = vmatprep.mubr.f32.mxu0 0.0
    %1928 = vmatmul.mubr.f32.gmra.mxu0 %v1852
    %v1929 = vpop.f32.mrf.mxu0
    %v1930 = vadd.f32 %v1849, %v1929
    %v1931 = vpop.f32.mrf.mxu0
    %1932 = vmatprep.mubr.f32.mxu0 0.0
    %1933 = vmatmul.mubr.f32.gmra.mxu0 %v1855
    %v1934 = vpop.f32.mrf.mxu0
    %v1935 = vadd.f32 %v1849, %v1934
    %v1936 = vpop.f32.mrf.mxu0
    %1937 = vmatprep.mubr.f32.mxu0 0.0
    %1938 = vmatmul.mubr.f32.gmra.mxu0 %v1858
    %v1939 = vpop.f32.mrf.mxu0
    %v1940 = vadd.f32 %v1849, %v1939
    %v1941 = vpop.f32.mrf.mxu0
    %1942 = vmatprep.mubr.f32.mxu0 0.0
    %1943 = vmatmul.mubr.f32.gmra.mxu0 %v1861
    %v1944 = vpop.f32.mrf.mxu0
    %v1945 = vadd.f32 %v1849, %v1944
    %v1946 = vpop.f32.mrf.mxu0
    %1947 = vdwg.mxu0
    %v1948 = vmax.f32 %v1930, 0.0
    %v1949 = vmax.f32 %v1935, 0.0
    %v1950 = vmax.f32 %v1940, 0.0
    %v1951 = vmax.f32 %v1945, 0.0
    %v1952 = vld [vmem:[#allocation16] sm:$0xff]
    %v1953 = vld [vmem:[#allocation16 + $0x8] sm:$0xff]
    %v1954 = vld [vmem:[#allocation16 + $0x10] sm:$0xff]
    %v1955 = vld [vmem:[#allocation16 + $0x18] sm:$0xff]
    %v1956 = vld [vmem:[#allocation16 + $0x20] sm:$0xff]
    %v1957 = vld [vmem:[#allocation16 + $0x28] sm:$0xff]
    %v1958 = vld [vmem:[#allocation16 + $0x30] sm:$0xff]
    %v1959 = vld [vmem:[#allocation16 + $0x38] sm:$0xff]
    %v1960 = vld [vmem:[#allocation16 + $0x40] sm:$0xff]
    %v1961 = vld [vmem:[#allocation16 + $0x48] sm:$0xff]
    %v1962 = vld [vmem:[#allocation16 + $0x50] sm:$0xff]
    %v1963 = vld [vmem:[#allocation16 + $0x58] sm:$0xff]
    %v1964 = vld [vmem:[#allocation16 + $0x60] sm:$0xff]
    %v1965 = vld [vmem:[#allocation16 + $0x68] sm:$0xff]
    %v1966 = vld [vmem:[#allocation16 + $0x70] sm:$0xff]
    %v1967 = vld [vmem:[#allocation16 + $0x78] sm:$0xff]
    %v1968 = vld [vmem:[%s15] sm:$0x1]
    %v1970 = vlaneseq
    %v1971 = vshrl.u32 %v1970, 7
    %v1972 = vsub.s32 0, %v1971
    %v1973 = vrot.slane %v1968, %v1972
    %1975 = vmatprep.subr.mxu0 0.0
    %1976 = vmatpush1.msra.mxu0 %v1967
    %1977 = vmatprep.subr.mxu0 0.0
    %1978 = vmatpush1.msra.mxu0 %v1966
    %1979 = vmatprep.subr.mxu0 0.0
    %1980 = vmatpush1.msra.mxu0 %v1965
    %1981 = vmatprep.subr.mxu0 0.0
    %1982 = vmatpush1.msra.mxu0 %v1964
    %1983 = vmatprep.subr.mxu0 0.0
    %1984 = vmatpush1.msra.mxu0 %v1963
    %1985 = vmatprep.subr.mxu0 0.0
    %1986 = vmatpush1.msra.mxu0 %v1962
    %1987 = vmatprep.subr.mxu0 0.0
    %1988 = vmatpush1.msra.mxu0 %v1961
    %1989 = vmatprep.subr.mxu0 0.0
    %1990 = vmatpush1.msra.mxu0 %v1960
    %1991 = vmatprep.subr.mxu0 0.0
    %1992 = vmatpush1.msra.mxu0 %v1959
    %1993 = vmatprep.subr.mxu0 0.0
    %1994 = vmatpush1.msra.mxu0 %v1958
    %1995 = vmatprep.subr.mxu0 0.0
    %1996 = vmatpush1.msra.mxu0 %v1957
    %1997 = vmatprep.subr.mxu0 0.0
    %1998 = vmatpush1.msra.mxu0 %v1956
    %1999 = vmatprep.subr.mxu0 0.0
    %2000 = vmatpush1.msra.mxu0 %v1955
    %2001 = vmatprep.subr.mxu0 0.0
    %2002 = vmatpush1.msra.mxu0 %v1954
    %2003 = vmatprep.subr.mxu0 0.0
    %2004 = vmatpush1.msra.mxu0 %v1953
    %2005 = vmatprep.subr.mxu0 0.0
    %2006 = vmatpush1.msra.mxu0 %v1952
    %2007 = vmatprep.subr.mxu0 0.0
    %2008 = vmatpush2.msra.mxu0 0.0
    %2009 = vmatprep.subr.mxu0 0.0
    %2010 = vmatpush2.msra.mxu0 0.0
    %2011 = vmatprep.subr.mxu0 0.0
    %2012 = vmatpush2.msra.mxu0 0.0
    %2013 = vmatprep.subr.mxu0 0.0
    %2014 = vmatpush2.msra.mxu0 0.0
    %2015 = vmatprep.subr.mxu0 0.0
    %2016 = vmatpush2.msra.mxu0 0.0
    %2017 = vmatprep.subr.mxu0 0.0
    %2018 = vmatpush2.msra.mxu0 0.0
    %2019 = vmatprep.subr.mxu0 0.0
    %2020 = vmatpush2.msra.mxu0 0.0
    %2021 = vmatprep.subr.mxu0 0.0
    %2022 = vmatpush2.msra.mxu0 0.0
    %2023 = vmatprep.subr.mxu0 0.0
    %2024 = vmatpush2.msra.mxu0 0.0
    %2025 = vmatprep.subr.mxu0 0.0
    %2026 = vmatpush2.msra.mxu0 0.0
    %2027 = vmatprep.subr.mxu0 0.0
    %2028 = vmatpush2.msra.mxu0 0.0
    %2029 = vmatprep.subr.mxu0 0.0
    %2030 = vmatpush2.msra.mxu0 0.0
    %2031 = vmatprep.subr.mxu0 0.0
    %2032 = vmatpush2.msra.mxu0 0.0
    %2033 = vmatprep.subr.mxu0 0.0
    %2034 = vmatpush2.msra.mxu0 0.0
    %2035 = vmatprep.subr.mxu0 0.0
    %2036 = vmatpush2.msra.mxu0 0.0
    %2037 = vmatprep.subr.mxu0 0.0
    %2038 = vmatpush2.msra.mxu0 0.0
    %2039 = vmatprep.mubr.f32.mxu0 0.0
    %2040 = vmatmul.mubr.f32.gmra.mxu0 %v1948
    %v2041 = vpop.f32.mrf.mxu0
    %v2042 = vadd.f32 %v1973, %v2041
    %v2043 = vpop.f32.mrf.mxu0
    %2044 = vmatprep.mubr.f32.mxu0 0.0
    %2045 = vmatmul.mubr.f32.gmra.mxu0 %v1949
    %v2046 = vpop.f32.mrf.mxu0
    %v2047 = vadd.f32 %v1973, %v2046
    %v2048 = vpop.f32.mrf.mxu0
    %2049 = vmatprep.mubr.f32.mxu0 0.0
    %2050 = vmatmul.mubr.f32.gmra.mxu0 %v1950
    %v2051 = vpop.f32.mrf.mxu0
    %v2052 = vadd.f32 %v1973, %v2051
    %v2053 = vpop.f32.mrf.mxu0
    %2054 = vmatprep.mubr.f32.mxu0 0.0
    %2055 = vmatmul.mubr.f32.gmra.mxu0 %v1951
    %v2056 = vpop.f32.mrf.mxu0
    %v2057 = vadd.f32 %v1973, %v2056
    %v2058 = vpop.f32.mrf.mxu0
    %2059 = vdwg.mxu0
    %v2060 = vadd.f32 %v1776, %v2042
    %v2061 = vadd.f32 %v1777, %v2047
    %v2062 = vadd.f32 %v1778, %v2052
    %v2063 = vadd.f32 %v1779, %v2057
    %v2064 = vsel %vm393, %v2060, 0.0
    %2065 = vadd.xlane.f32.xlu0 %v2064
    %v2066 = vpop.xlane.xlu0 %2065
    %v2067 = vsel %vm393, %v2061, 0.0
    %2068 = vadd.xlane.f32.xlu0 %v2067
    %v2069 = vpop.xlane.xlu0 %2068
    %v2070 = vsel %vm393, %v2062, 0.0
    %2071 = vadd.xlane.f32.xlu0 %v2070
    %v2072 = vpop.xlane.xlu0 %2071
    %v2073 = vsel %vm393, %v2063, 0.0
    %2074 = vadd.xlane.f32.xlu0 %v2073
    %v2075 = vpop.xlane.xlu0 %2074
    %v2076 = vmul.f32 %v2066, %v406
    %v2077 = vmul.f32 %v2069, %v406
    %v2078 = vmul.f32 %v2072, %v406
    %v2079 = vmul.f32 %v2075, %v406
    %v2080 = vmul.f32 %v2060, %v2060
    %v2081 = vmul.f32 %v2061, %v2061
    %v2082 = vmul.f32 %v2062, %v2062
    %v2083 = vmul.f32 %v2063, %v2063
    %v2084 = vsel %vm393, %v2080, 0.0
    %2085 = vadd.xlane.f32.xlu0 %v2084
    %v2086 = vpop.xlane.xlu0 %2085
    %v2087 = vsel %vm393, %v2081, 0.0
    %2088 = vadd.xlane.f32.xlu0 %v2087
    %v2089 = vpop.xlane.xlu0 %2088
    %v2090 = vsel %vm393, %v2082, 0.0
    %2091 = vadd.xlane.f32.xlu0 %v2090
    %v2092 = vpop.xlane.xlu0 %2091
    %v2093 = vsel %vm393, %v2083, 0.0
    %2094 = vadd.xlane.f32.xlu0 %v2093
    %v2095 = vpop.xlane.xlu0 %2094
    %v2096 = vmul.f32 %v2086, %v406
    %v2097 = vmul.f32 %v2089, %v406
    %v2098 = vmul.f32 %v2092, %v406
    %v2099 = vmul.f32 %v2095, %v406
    %v2100 = vmul.f32 %v2076, %v2076
    %v2101 = vmul.f32 %v2077, %v2077
    %v2102 = vmul.f32 %v2078, %v2078
    %v2103 = vmul.f32 %v2079, %v2079
    %v2104 = vsub.f32 %v2096, %v2100
    %v2105 = vsub.f32 %v2097, %v2101
    %v2106 = vsub.f32 %v2098, %v2102
    %v2107 = vsub.f32 %v2099, %v2103
    %v2108 = vsub.f32 %v2060, %v2076
    %v2109 = vsub.f32 %v2061, %v2077
    %v2110 = vsub.f32 %v2062, %v2078
    %v2111 = vsub.f32 %v2063, %v2079
    %v2112 = vadd.f32 %v2104, 1e-05
    %v2113 = vadd.f32 %v2105, 1e-05
    %v2114 = vadd.f32 %v2106, 1e-05
    %v2115 = vadd.f32 %v2107, 1e-05
    %v2116 = vrsqrt.pop %v2112
    %v2117 = vrsqrt.pop %v2113
    %v2118 = vrsqrt.pop %v2114
    %v2119 = vrsqrt.pop %v2115
    %v2120 = vmul.f32 %v2108, %v2116
    %v2121 = vmul.f32 %v2109, %v2117
    %v2122 = vmul.f32 %v2110, %v2118
    %v2123 = vmul.f32 %v2111, %v2119
    %s2124 = scalar_lea.vmem [#allocation5], 64
    %v2125 = vld [vmem:[%s2124] sm:$0xff]
    %v2126 = vld [vmem:[%s2124 + $0x8] sm:$0xff]
    %v2127 = vld [vmem:[%s2124 + $0x10] sm:$0xff]
    %v2128 = vld [vmem:[%s2124 + $0x18] sm:$0xff]
    %s2129 = scalar_lea.vmem [#allocation7], 2
    %v2130 = vld [vmem:[%s2129] sm:$0x1]
    %v2132 = vlaneseq
    %v2133 = vshrl.u32 %v2132, 7
    %v2134 = vsub.s32 0, %v2133
    %v2135 = vrot.slane %v2130, %v2134
    %v2138 = vsel %vm393, %v2120, 0
    %v2141 = vsel %vm393, %v2121, 0
    %v2144 = vsel %vm393, %v2122, 0
    %v2147 = vsel %vm393, %v2123, 0
    %2149 = vmatprep.subr.mxu0 0.0
    %2150 = vmatpush1.msra.mxu0 0.0
    %2151 = vmatprep.subr.mxu0 0.0
    %2152 = vmatpush1.msra.mxu0 0.0
    %2153 = vmatprep.subr.mxu0 0.0
    %2154 = vmatpush1.msra.mxu0 0.0
    %2155 = vmatprep.subr.mxu0 0.0
    %2156 = vmatpush1.msra.mxu0 0.0
    %2157 = vmatprep.subr.mxu0 0.0
    %2158 = vmatpush1.msra.mxu0 0.0
    %2159 = vmatprep.subr.mxu0 0.0
    %2160 = vmatpush1.msra.mxu0 0.0
    %2161 = vmatprep.subr.mxu0 0.0
    %2162 = vmatpush1.msra.mxu0 0.0
    %2163 = vmatprep.subr.mxu0 0.0
    %2164 = vmatpush1.msra.mxu0 0.0
    %2165 = vmatprep.subr.mxu0 0.0
    %2166 = vmatpush1.msra.mxu0 0.0
    %2167 = vmatprep.subr.mxu0 0.0
    %2168 = vmatpush1.msra.mxu0 0.0
    %2169 = vmatprep.subr.mxu0 0.0
    %2170 = vmatpush1.msra.mxu0 0.0
    %2171 = vmatprep.subr.mxu0 0.0
    %2172 = vmatpush1.msra.mxu0 0.0
    %2173 = vmatprep.subr.mxu0 0.0
    %2174 = vmatpush1.msra.mxu0 %v2128
    %2175 = vmatprep.subr.mxu0 0.0
    %2176 = vmatpush1.msra.mxu0 %v2127
    %2177 = vmatprep.subr.mxu0 0.0
    %2178 = vmatpush1.msra.mxu0 %v2126
    %2179 = vmatprep.subr.mxu0 0.0
    %2180 = vmatpush1.msra.mxu0 %v2125
    %2181 = vmatprep.subr.mxu0 0.0
    %2182 = vmatpush2.msra.mxu0 0.0
    %2183 = vmatprep.subr.mxu0 0.0
    %2184 = vmatpush2.msra.mxu0 0.0
    %2185 = vmatprep.subr.mxu0 0.0
    %2186 = vmatpush2.msra.mxu0 0.0
    %2187 = vmatprep.subr.mxu0 0.0
    %2188 = vmatpush2.msra.mxu0 0.0
    %2189 = vmatprep.subr.mxu0 0.0
    %2190 = vmatpush2.msra.mxu0 0.0
    %2191 = vmatprep.subr.mxu0 0.0
    %2192 = vmatpush2.msra.mxu0 0.0
    %2193 = vmatprep.subr.mxu0 0.0
    %2194 = vmatpush2.msra.mxu0 0.0
    %2195 = vmatprep.subr.mxu0 0.0
    %2196 = vmatpush2.msra.mxu0 0.0
    %2197 = vmatprep.subr.mxu0 0.0
    %2198 = vmatpush2.msra.mxu0 0.0
    %2199 = vmatprep.subr.mxu0 0.0
    %2200 = vmatpush2.msra.mxu0 0.0
    %2201 = vmatprep.subr.mxu0 0.0
    %2202 = vmatpush2.msra.mxu0 0.0
    %2203 = vmatprep.subr.mxu0 0.0
    %2204 = vmatpush2.msra.mxu0 0.0
    %2205 = vmatprep.subr.mxu0 0.0
    %2206 = vmatpush2.msra.mxu0 0.0
    %2207 = vmatprep.subr.mxu0 0.0
    %2208 = vmatpush2.msra.mxu0 0.0
    %2209 = vmatprep.subr.mxu0 0.0
    %2210 = vmatpush2.msra.mxu0 0.0
    %2211 = vmatprep.subr.mxu0 0.0
    %2212 = vmatpush2.msra.mxu0 0.0
    %2213 = vmatprep.mubr.f32.mxu0 0.0
    %2214 = vmatmul.mubr.f32.gmra.mxu0 %v2138
    %v2215 = vpop.f32.mrf.mxu0
    %v2216 = vadd.f32 %v2135, %v2215
    %v2217 = vpop.f32.mrf.mxu0
    %2218 = vmatprep.mubr.f32.mxu0 0.0
    %2219 = vmatmul.mubr.f32.gmra.mxu0 %v2141
    %v2220 = vpop.f32.mrf.mxu0
    %v2221 = vadd.f32 %v2135, %v2220
    %v2222 = vpop.f32.mrf.mxu0
    %2223 = vmatprep.mubr.f32.mxu0 0.0
    %2224 = vmatmul.mubr.f32.gmra.mxu0 %v2144
    %v2225 = vpop.f32.mrf.mxu0
    %v2226 = vadd.f32 %v2135, %v2225
    %v2227 = vpop.f32.mrf.mxu0
    %2228 = vmatprep.mubr.f32.mxu0 0.0
    %2229 = vmatmul.mubr.f32.gmra.mxu0 %v2147
    %v2230 = vpop.f32.mrf.mxu0
    %v2231 = vadd.f32 %v2135, %v2230
    %v2232 = vpop.f32.mrf.mxu0
    %2233 = vdwg.mxu0
    %s2234 = scalar_lea.vmem [#allocation8], 64
    %v2235 = vld [vmem:[%s2234] sm:$0xff]
    %v2236 = vld [vmem:[%s2234 + $0x8] sm:$0xff]
    %v2237 = vld [vmem:[%s2234 + $0x10] sm:$0xff]
    %v2238 = vld [vmem:[%s2234 + $0x18] sm:$0xff]
    %s2239 = scalar_lea.vmem [#allocation10], 2
    %v2240 = vld [vmem:[%s2239] sm:$0x1]
    %v2242 = vlaneseq
    %v2243 = vshrl.u32 %v2242, 7
    %v2244 = vsub.s32 0, %v2243
    %v2245 = vrot.slane %v2240, %v2244
    %2247 = vmatprep.subr.mxu0 0.0
    %2248 = vmatpush1.msra.mxu0 0.0
    %2249 = vmatprep.subr.mxu0 0.0
    %2250 = vmatpush1.msra.mxu0 0.0
    %2251 = vmatprep.subr.mxu0 0.0
    %2252 = vmatpush1.msra.mxu0 0.0
    %2253 = vmatprep.subr.mxu0 0.0
    %2254 = vmatpush1.msra.mxu0 0.0
    %2255 = vmatprep.subr.mxu0 0.0
    %2256 = vmatpush1.msra.mxu0 0.0
    %2257 = vmatprep.subr.mxu0 0.0
    %2258 = vmatpush1.msra.mxu0 0.0
    %2259 = vmatprep.subr.mxu0 0.0
    %2260 = vmatpush1.msra.mxu0 0.0
    %2261 = vmatprep.subr.mxu0 0.0
    %2262 = vmatpush1.msra.mxu0 0.0
    %2263 = vmatprep.subr.mxu0 0.0
    %2264 = vmatpush1.msra.mxu0 0.0
    %2265 = vmatprep.subr.mxu0 0.0
    %2266 = vmatpush1.msra.mxu0 0.0
    %2267 = vmatprep.subr.mxu0 0.0
    %2268 = vmatpush1.msra.mxu0 0.0
    %2269 = vmatprep.subr.mxu0 0.0
    %2270 = vmatpush1.msra.mxu0 0.0
    %2271 = vmatprep.subr.mxu0 0.0
    %2272 = vmatpush1.msra.mxu0 %v2238
    %2273 = vmatprep.subr.mxu0 0.0
    %2274 = vmatpush1.msra.mxu0 %v2237
    %2275 = vmatprep.subr.mxu0 0.0
    %2276 = vmatpush1.msra.mxu0 %v2236
    %2277 = vmatprep.subr.mxu0 0.0
    %2278 = vmatpush1.msra.mxu0 %v2235
    %2279 = vmatprep.subr.mxu0 0.0
    %2280 = vmatpush2.msra.mxu0 0.0
    %2281 = vmatprep.subr.mxu0 0.0
    %2282 = vmatpush2.msra.mxu0 0.0
    %2283 = vmatprep.subr.mxu0 0.0
    %2284 = vmatpush2.msra.mxu0 0.0
    %2285 = vmatprep.subr.mxu0 0.0
    %2286 = vmatpush2.msra.mxu0 0.0
    %2287 = vmatprep.subr.mxu0 0.0
    %2288 = vmatpush2.msra.mxu0 0.0
    %2289 = vmatprep.subr.mxu0 0.0
    %2290 = vmatpush2.msra.mxu0 0.0
    %2291 = vmatprep.subr.mxu0 0.0
    %2292 = vmatpush2.msra.mxu0 0.0
    %2293 = vmatprep.subr.mxu0 0.0
    %2294 = vmatpush2.msra.mxu0 0.0
    %2295 = vmatprep.subr.mxu0 0.0
    %2296 = vmatpush2.msra.mxu0 0.0
    %2297 = vmatprep.subr.mxu0 0.0
    %2298 = vmatpush2.msra.mxu0 0.0
    %2299 = vmatprep.subr.mxu0 0.0
    %2300 = vmatpush2.msra.mxu0 0.0
    %2301 = vmatprep.subr.mxu0 0.0
    %2302 = vmatpush2.msra.mxu0 0.0
    %2303 = vmatprep.subr.mxu0 0.0
    %2304 = vmatpush2.msra.mxu0 0.0
    %2305 = vmatprep.subr.mxu0 0.0
    %2306 = vmatpush2.msra.mxu0 0.0
    %2307 = vmatprep.subr.mxu0 0.0
    %2308 = vmatpush2.msra.mxu0 0.0
    %2309 = vmatprep.subr.mxu0 0.0
    %2310 = vmatpush2.msra.mxu0 0.0
    %2311 = vmatprep.mubr.f32.mxu0 0.0
    %2312 = vmatmul.mubr.f32.gmra.mxu0 %v2138
    %v2313 = vpop.f32.mrf.mxu0
    %v2314 = vadd.f32 %v2245, %v2313
    %v2315 = vpop.f32.mrf.mxu0
    %2316 = vmatprep.mubr.f32.mxu0 0.0
    %2317 = vmatmul.mubr.f32.gmra.mxu0 %v2141
    %v2318 = vpop.f32.mrf.mxu0
    %v2319 = vadd.f32 %v2245, %v2318
    %v2320 = vpop.f32.mrf.mxu0
    %2321 = vmatprep.mubr.f32.mxu0 0.0
    %2322 = vmatmul.mubr.f32.gmra.mxu0 %v2144
    %v2323 = vpop.f32.mrf.mxu0
    %v2324 = vadd.f32 %v2245, %v2323
    %v2325 = vpop.f32.mrf.mxu0
    %2326 = vmatprep.mubr.f32.mxu0 0.0
    %2327 = vmatmul.mubr.f32.gmra.mxu0 %v2147
    %v2328 = vpop.f32.mrf.mxu0
    %v2329 = vadd.f32 %v2245, %v2328
    %v2330 = vpop.f32.mrf.mxu0
    %2331 = vdwg.mxu0
    %s2332 = scalar_lea.vmem [#allocation11], 64
    %v2333 = vld [vmem:[%s2332] sm:$0xff]
    %v2334 = vld [vmem:[%s2332 + $0x8] sm:$0xff]
    %v2335 = vld [vmem:[%s2332 + $0x10] sm:$0xff]
    %v2336 = vld [vmem:[%s2332 + $0x18] sm:$0xff]
    %s2337 = scalar_lea.vmem %s9, 2
    %v2338 = vld [vmem:[%s2337] sm:$0x1]
    %v2340 = vlaneseq
    %v2341 = vshrl.u32 %v2340, 7
    %v2342 = vsub.s32 0, %v2341
    %v2343 = vrot.slane %v2338, %v2342
    %2345 = vmatprep.subr.mxu0 0.0
    %2346 = vmatpush1.msra.mxu0 0.0
    %2347 = vmatprep.subr.mxu0 0.0
    %2348 = vmatpush1.msra.mxu0 0.0
    %2349 = vmatprep.subr.mxu0 0.0
    %2350 = vmatpush1.msra.mxu0 0.0
    %2351 = vmatprep.subr.mxu0 0.0
    %2352 = vmatpush1.msra.mxu0 0.0
    %2353 = vmatprep.subr.mxu0 0.0
    %2354 = vmatpush1.msra.mxu0 0.0
    %2355 = vmatprep.subr.mxu0 0.0
    %2356 = vmatpush1.msra.mxu0 0.0
    %2357 = vmatprep.subr.mxu0 0.0
    %2358 = vmatpush1.msra.mxu0 0.0
    %2359 = vmatprep.subr.mxu0 0.0
    %2360 = vmatpush1.msra.mxu0 0.0
    %2361 = vmatprep.subr.mxu0 0.0
    %2362 = vmatpush1.msra.mxu0 0.0
    %2363 = vmatprep.subr.mxu0 0.0
    %2364 = vmatpush1.msra.mxu0 0.0
    %2365 = vmatprep.subr.mxu0 0.0
    %2366 = vmatpush1.msra.mxu0 0.0
    %2367 = vmatprep.subr.mxu0 0.0
    %2368 = vmatpush1.msra.mxu0 0.0
    %2369 = vmatprep.subr.mxu0 0.0
    %2370 = vmatpush1.msra.mxu0 %v2336
    %2371 = vmatprep.subr.mxu0 0.0
    %2372 = vmatpush1.msra.mxu0 %v2335
    %2373 = vmatprep.subr.mxu0 0.0
    %2374 = vmatpush1.msra.mxu0 %v2334
    %2375 = vmatprep.subr.mxu0 0.0
    %2376 = vmatpush1.msra.mxu0 %v2333
    %2377 = vmatprep.subr.mxu0 0.0
    %2378 = vmatpush2.msra.mxu0 0.0
    %2379 = vmatprep.subr.mxu0 0.0
    %2380 = vmatpush2.msra.mxu0 0.0
    %2381 = vmatprep.subr.mxu0 0.0
    %2382 = vmatpush2.msra.mxu0 0.0
    %2383 = vmatprep.subr.mxu0 0.0
    %2384 = vmatpush2.msra.mxu0 0.0
    %2385 = vmatprep.subr.mxu0 0.0
    %2386 = vmatpush2.msra.mxu0 0.0
    %2387 = vmatprep.subr.mxu0 0.0
    %2388 = vmatpush2.msra.mxu0 0.0
    %2389 = vmatprep.subr.mxu0 0.0
    %2390 = vmatpush2.msra.mxu0 0.0
    %2391 = vmatprep.subr.mxu0 0.0
    %2392 = vmatpush2.msra.mxu0 0.0
    %2393 = vmatprep.subr.mxu0 0.0
    %2394 = vmatpush2.msra.mxu0 0.0
    %2395 = vmatprep.subr.mxu0 0.0
    %2396 = vmatpush2.msra.mxu0 0.0
    %2397 = vmatprep.subr.mxu0 0.0
    %2398 = vmatpush2.msra.mxu0 0.0
    %2399 = vmatprep.subr.mxu0 0.0
    %2400 = vmatpush2.msra.mxu0 0.0
    %2401 = vmatprep.subr.mxu0 0.0
    %2402 = vmatpush2.msra.mxu0 0.0
    %2403 = vmatprep.subr.mxu0 0.0
    %2404 = vmatpush2.msra.mxu0 0.0
    %2405 = vmatprep.subr.mxu0 0.0
    %2406 = vmatpush2.msra.mxu0 0.0
    %2407 = vmatprep.subr.mxu0 0.0
    %2408 = vmatpush2.msra.mxu0 0.0
    %2409 = vmatprep.mubr.f32.mxu0 0.0
    %2410 = vmatmul.mubr.f32.gmra.mxu0 %v2138
    %v2411 = vpop.f32.mrf.mxu0
    %v2412 = vadd.f32 %v2343, %v2411
    %v2413 = vpop.f32.mrf.mxu0
    %2414 = vmatprep.mubr.f32.mxu0 0.0
    %2415 = vmatmul.mubr.f32.gmra.mxu0 %v2141
    %v2416 = vpop.f32.mrf.mxu0
    %v2417 = vadd.f32 %v2343, %v2416
    %v2418 = vpop.f32.mrf.mxu0
    %2419 = vmatprep.mubr.f32.mxu0 0.0
    %2420 = vmatmul.mubr.f32.gmra.mxu0 %v2144
    %v2421 = vpop.f32.mrf.mxu0
    %v2422 = vadd.f32 %v2343, %v2421
    %v2423 = vpop.f32.mrf.mxu0
    %2424 = vmatprep.mubr.f32.mxu0 0.0
    %2425 = vmatmul.mubr.f32.gmra.mxu0 %v2147
    %v2426 = vpop.f32.mrf.mxu0
    %v2427 = vadd.f32 %v2343, %v2426
    %v2428 = vpop.f32.mrf.mxu0
    %2429 = vdwg.mxu0
    %v2431 = vsel %vm755, %v2216, 0
    %v2434 = vsel %vm755, %v2221, 0
    %v2437 = vsel %vm755, %v2226, 0
    %v2440 = vsel %vm755, %v2231, 0
    %v2443 = vsel %vm755, %v2314, 0
    %v2446 = vsel %vm755, %v2319, 0
    %v2449 = vsel %vm755, %v2324, 0
    %v2452 = vsel %vm755, %v2329, 0
    %2454 = vmatprep.subr.mxu0 0.0
    %2455 = vmatpush1.xpose.msra.mxu0 0.0
    %2456 = vmatprep.subr.mxu0 0.0
    %2457 = vmatpush1.xpose.msra.mxu0 0.0
    %2458 = vmatprep.subr.mxu0 0.0
    %2459 = vmatpush1.xpose.msra.mxu0 0.0
    %2460 = vmatprep.subr.mxu0 0.0
    %2461 = vmatpush1.xpose.msra.mxu0 0.0
    %2462 = vmatprep.subr.mxu0 0.0
    %2463 = vmatpush1.xpose.msra.mxu0 0.0
    %2464 = vmatprep.subr.mxu0 0.0
    %2465 = vmatpush1.xpose.msra.mxu0 0.0
    %2466 = vmatprep.subr.mxu0 0.0
    %2467 = vmatpush1.xpose.msra.mxu0 0.0
    %2468 = vmatprep.subr.mxu0 0.0
    %2469 = vmatpush1.xpose.msra.mxu0 0.0
    %2470 = vmatprep.subr.mxu0 0.0
    %2471 = vmatpush1.xpose.msra.mxu0 0.0
    %2472 = vmatprep.subr.mxu0 0.0
    %2473 = vmatpush1.xpose.msra.mxu0 0.0
    %2474 = vmatprep.subr.mxu0 0.0
    %2475 = vmatpush1.xpose.msra.mxu0 0.0
    %2476 = vmatprep.subr.mxu0 0.0
    %2477 = vmatpush1.xpose.msra.mxu0 0.0
    %2478 = vmatprep.subr.mxu0 0.0
    %2479 = vmatpush1.xpose.msra.mxu0 %v2452
    %2480 = vmatprep.subr.mxu0 0.0
    %2481 = vmatpush1.xpose.msra.mxu0 %v2449
    %2482 = vmatprep.subr.mxu0 0.0
    %2483 = vmatpush1.xpose.msra.mxu0 %v2446
    %2484 = vmatprep.subr.mxu0 0.0
    %2485 = vmatpush1.xpose.msra.mxu0 %v2443
    %2486 = vmatprep.subr.mxu0 0.0
    %2487 = vmatpush2.xpose.msra.mxu0 0.0
    %2488 = vmatprep.subr.mxu0 0.0
    %2489 = vmatpush2.xpose.msra.mxu0 0.0
    %2490 = vmatprep.subr.mxu0 0.0
    %2491 = vmatpush2.xpose.msra.mxu0 0.0
    %2492 = vmatprep.subr.mxu0 0.0
    %2493 = vmatpush2.xpose.msra.mxu0 0.0
    %2494 = vmatprep.subr.mxu0 0.0
    %2495 = vmatpush2.xpose.msra.mxu0 0.0
    %2496 = vmatprep.subr.mxu0 0.0
    %2497 = vmatpush2.xpose.msra.mxu0 0.0
    %2498 = vmatprep.subr.mxu0 0.0
    %2499 = vmatpush2.xpose.msra.mxu0 0.0
    %2500 = vmatprep.subr.mxu0 0.0
    %2501 = vmatpush2.xpose.msra.mxu0 0.0
    %2502 = vmatprep.subr.mxu0 0.0
    %2503 = vmatpush2.xpose.msra.mxu0 0.0
    %2504 = vmatprep.subr.mxu0 0.0
    %2505 = vmatpush2.xpose.msra.mxu0 0.0
    %2506 = vmatprep.subr.mxu0 0.0
    %2507 = vmatpush2.xpose.msra.mxu0 0.0
    %2508 = vmatprep.subr.mxu0 0.0
    %2509 = vmatpush2.xpose.msra.mxu0 0.0
    %2510 = vmatprep.subr.mxu0 0.0
    %2511 = vmatpush2.xpose.msra.mxu0 0.0
    %2512 = vmatprep.subr.mxu0 0.0
    %2513 = vmatpush2.xpose.msra.mxu0 0.0
    %2514 = vmatprep.subr.mxu0 0.0
    %2515 = vmatpush2.xpose.msra.mxu0 0.0
    %2516 = vmatprep.subr.mxu0 0.0
    %2517 = vmatpush2.xpose.msra.mxu0 0.0
    %2518 = vmatprep.mubr.f32.mxu0 0.0
    %2519 = vmatmul.mubr.f32.gmra.mxu0 %v2431
    %v2520 = vpop.f32.mrf.mxu0
    %v2521 = vadd.f32 0.0, %v2520
    %v2522 = vpop.f32.mrf.mxu0
    %2523 = vmatprep.mubr.f32.mxu0 0.0
    %2524 = vmatmul.mubr.f32.gmra.mxu0 %v2434
    %v2525 = vpop.f32.mrf.mxu0
    %v2526 = vadd.f32 0.0, %v2525
    %v2527 = vpop.f32.mrf.mxu0
    %2528 = vmatprep.mubr.f32.mxu0 0.0
    %2529 = vmatmul.mubr.f32.gmra.mxu0 %v2437
    %v2530 = vpop.f32.mrf.mxu0
    %v2531 = vadd.f32 0.0, %v2530
    %v2532 = vpop.f32.mrf.mxu0
    %2533 = vmatprep.mubr.f32.mxu0 0.0
    %2534 = vmatmul.mubr.f32.gmra.mxu0 %v2440
    %v2535 = vpop.f32.mrf.mxu0
    %v2536 = vadd.f32 0.0, %v2535
    %v2537 = vpop.f32.mrf.mxu0
    %2538 = vdwg.mxu0
    %v2539 = vmul.f32 %v2521, 0.25
    %v2540 = vmul.f32 %v2526, 0.25
    %v2541 = vmul.f32 %v2531, 0.25
    %v2542 = vmul.f32 %v2536, 0.25
    %v2543 = vadd.f32 %v2539, %v389
    %v2544 = vadd.f32 %v2540, %v390
    %v2545 = vadd.f32 %v2541, %v391
    %v2546 = vadd.f32 %v2542, %v392
    %v2547 = vsel %vm393, %v2543, -inf
    %2548 = vmax.xlane.f32.xlu0 %v2547
    %v2549 = vpop.xlane.xlu0 %2548
    %v2550 = vsel %vm393, %v2544, -inf
    %2551 = vmax.xlane.f32.xlu0 %v2550
    %v2552 = vpop.xlane.xlu0 %2551
    %v2553 = vsel %vm393, %v2545, -inf
    %2554 = vmax.xlane.f32.xlu0 %v2553
    %v2555 = vpop.xlane.xlu0 %2554
    %v2556 = vsel %vm393, %v2546, -inf
    %2557 = vmax.xlane.f32.xlu0 %v2556
    %v2558 = vpop.xlane.xlu0 %2557
    %v2559 = vsub.f32 %v2543, %v2549
    %v2560 = vsub.f32 %v2544, %v2552
    %v2561 = vsub.f32 %v2545, %v2555
    %v2562 = vsub.f32 %v2546, %v2558
    %v2563 = vmul.f32 %v2559, 1.442695
    %v2564 = vpow.pop %v2563
    %v2565 = vmul.f32 %v2560, 1.442695
    %v2566 = vpow.pop %v2565
    %v2567 = vmul.f32 %v2561, 1.442695
    %v2568 = vpow.pop %v2567
    %v2569 = vmul.f32 %v2562, 1.442695
    %v2570 = vpow.pop %v2569
    %v2571 = vsel %vm393, %v2564, 0.0
    %2572 = vadd.xlane.f32.xlu0 %v2571
    %v2573 = vpop.xlane.xlu0 %2572
    %v2574 = vsel %vm393, %v2566, 0.0
    %2575 = vadd.xlane.f32.xlu0 %v2574
    %v2576 = vpop.xlane.xlu0 %2575
    %v2577 = vsel %vm393, %v2568, 0.0
    %2578 = vadd.xlane.f32.xlu0 %v2577
    %v2579 = vpop.xlane.xlu0 %2578
    %v2580 = vsel %vm393, %v2570, 0.0
    %2581 = vadd.xlane.f32.xlu0 %v2580
    %v2582 = vpop.xlane.xlu0 %2581
    %v2583 = vrcp.pop %v2573
    %v2584 = vmul.f32 %v2564, %v2583
    %v2585 = vrcp.pop %v2576
    %v2586 = vmul.f32 %v2566, %v2585
    %v2587 = vrcp.pop %v2579
    %v2588 = vmul.f32 %v2568, %v2587
    %v2589 = vrcp.pop %v2582
    %v2590 = vmul.f32 %v2570, %v2589
    %v2592 = vsel %vm393, %v2584, 0
    %v2595 = vsel %vm393, %v2586, 0
    %v2598 = vsel %vm393, %v2588, 0
    %v2601 = vsel %vm393, %v2590, 0
    %2603 = vmatprep.subr.mxu0 0.0
    %2604 = vmatpush1.msra.mxu0 0.0
    %2605 = vmatprep.subr.mxu0 0.0
    %2606 = vmatpush1.msra.mxu0 0.0
    %2607 = vmatprep.subr.mxu0 0.0
    %2608 = vmatpush1.msra.mxu0 0.0
    %2609 = vmatprep.subr.mxu0 0.0
    %2610 = vmatpush1.msra.mxu0 0.0
    %2611 = vmatprep.subr.mxu0 0.0
    %2612 = vmatpush1.msra.mxu0 0.0
    %2613 = vmatprep.subr.mxu0 0.0
    %2614 = vmatpush1.msra.mxu0 0.0
    %2615 = vmatprep.subr.mxu0 0.0
    %2616 = vmatpush1.msra.mxu0 0.0
    %2617 = vmatprep.subr.mxu0 0.0
    %2618 = vmatpush1.msra.mxu0 0.0
    %2619 = vmatprep.subr.mxu0 0.0
    %2620 = vmatpush1.msra.mxu0 0.0
    %2621 = vmatprep.subr.mxu0 0.0
    %2622 = vmatpush1.msra.mxu0 0.0
    %2623 = vmatprep.subr.mxu0 0.0
    %2624 = vmatpush1.msra.mxu0 0.0
    %2625 = vmatprep.subr.mxu0 0.0
    %2626 = vmatpush1.msra.mxu0 0.0
    %2627 = vmatprep.subr.mxu0 0.0
    %2628 = vmatpush1.msra.mxu0 %v2427
    %2629 = vmatprep.subr.mxu0 0.0
    %2630 = vmatpush1.msra.mxu0 %v2422
    %2631 = vmatprep.subr.mxu0 0.0
    %2632 = vmatpush1.msra.mxu0 %v2417
    %2633 = vmatprep.subr.mxu0 0.0
    %2634 = vmatpush1.msra.mxu0 %v2412
    %2635 = vmatprep.subr.mxu0 0.0
    %2636 = vmatpush2.msra.mxu0 0.0
    %2637 = vmatprep.subr.mxu0 0.0
    %2638 = vmatpush2.msra.mxu0 0.0
    %2639 = vmatprep.subr.mxu0 0.0
    %2640 = vmatpush2.msra.mxu0 0.0
    %2641 = vmatprep.subr.mxu0 0.0
    %2642 = vmatpush2.msra.mxu0 0.0
    %2643 = vmatprep.subr.mxu0 0.0
    %2644 = vmatpush2.msra.mxu0 0.0
    %2645 = vmatprep.subr.mxu0 0.0
    %2646 = vmatpush2.msra.mxu0 0.0
    %2647 = vmatprep.subr.mxu0 0.0
    %2648 = vmatpush2.msra.mxu0 0.0
    %2649 = vmatprep.subr.mxu0 0.0
    %2650 = vmatpush2.msra.mxu0 0.0
    %2651 = vmatprep.subr.mxu0 0.0
    %2652 = vmatpush2.msra.mxu0 0.0
    %2653 = vmatprep.subr.mxu0 0.0
    %2654 = vmatpush2.msra.mxu0 0.0
    %2655 = vmatprep.subr.mxu0 0.0
    %2656 = vmatpush2.msra.mxu0 0.0
    %2657 = vmatprep.subr.mxu0 0.0
    %2658 = vmatpush2.msra.mxu0 0.0
    %2659 = vmatprep.subr.mxu0 0.0
    %2660 = vmatpush2.msra.mxu0 0.0
    %2661 = vmatprep.subr.mxu0 0.0
    %2662 = vmatpush2.msra.mxu0 0.0
    %2663 = vmatprep.subr.mxu0 0.0
    %2664 = vmatpush2.msra.mxu0 0.0
    %2665 = vmatprep.subr.mxu0 0.0
    %2666 = vmatpush2.msra.mxu0 0.0
    %2667 = vmatprep.mubr.f32.mxu0 0.0
    %2668 = vmatmul.mubr.f32.gmra.mxu0 %v2592
    %v2669 = vpop.f32.mrf.mxu0
    %v2670 = vadd.f32 0.0, %v2669
    %v2671 = vpop.f32.mrf.mxu0
    %2672 = vmatprep.mubr.f32.mxu0 0.0
    %2673 = vmatmul.mubr.f32.gmra.mxu0 %v2595
    %v2674 = vpop.f32.mrf.mxu0
    %v2675 = vadd.f32 0.0, %v2674
    %v2676 = vpop.f32.mrf.mxu0
    %2677 = vmatprep.mubr.f32.mxu0 0.0
    %2678 = vmatmul.mubr.f32.gmra.mxu0 %v2598
    %v2679 = vpop.f32.mrf.mxu0
    %v2680 = vadd.f32 0.0, %v2679
    %v2681 = vpop.f32.mrf.mxu0
    %2682 = vmatprep.mubr.f32.mxu0 0.0
    %2683 = vmatmul.mubr.f32.gmra.mxu0 %v2601
    %v2684 = vpop.f32.mrf.mxu0
    %v2685 = vadd.f32 0.0, %v2684
    %v2686 = vpop.f32.mrf.mxu0
    %2687 = vdwg.mxu0
    %s2688 = scalar_lea.vmem [#allocation13], 32
    %v2689 = vld [vmem:[%s2688] sm:$0xff]
    %v2690 = vld [vmem:[%s2688 + $0x8] sm:$0xff]
    %s2691 = scalar_lea.vmem [#allocation5], 96
    %v2692 = vld [vmem:[%s2691] sm:$0xff]
    %v2693 = vld [vmem:[%s2691 + $0x8] sm:$0xff]
    %v2694 = vld [vmem:[%s2691 + $0x10] sm:$0xff]
    %v2695 = vld [vmem:[%s2691 + $0x18] sm:$0xff]
    %s2696 = scalar_lea.vmem [#allocation7], 3
    %v2697 = vld [vmem:[%s2696] sm:$0x1]
    %v2699 = vlaneseq
    %v2700 = vshrl.u32 %v2699, 7
    %v2701 = vsub.s32 0, %v2700
    %v2702 = vrot.slane %v2697, %v2701
    %2704 = vmatprep.subr.mxu0 0.0
    %2705 = vmatpush1.msra.mxu0 0.0
    %2706 = vmatprep.subr.mxu0 0.0
    %2707 = vmatpush1.msra.mxu0 0.0
    %2708 = vmatprep.subr.mxu0 0.0
    %2709 = vmatpush1.msra.mxu0 0.0
    %2710 = vmatprep.subr.mxu0 0.0
    %2711 = vmatpush1.msra.mxu0 0.0
    %2712 = vmatprep.subr.mxu0 0.0
    %2713 = vmatpush1.msra.mxu0 0.0
    %2714 = vmatprep.subr.mxu0 0.0
    %2715 = vmatpush1.msra.mxu0 0.0
    %2716 = vmatprep.subr.mxu0 0.0
    %2717 = vmatpush1.msra.mxu0 0.0
    %2718 = vmatprep.subr.mxu0 0.0
    %2719 = vmatpush1.msra.mxu0 0.0
    %2720 = vmatprep.subr.mxu0 0.0
    %2721 = vmatpush1.msra.mxu0 0.0
    %2722 = vmatprep.subr.mxu0 0.0
    %2723 = vmatpush1.msra.mxu0 0.0
    %2724 = vmatprep.subr.mxu0 0.0
    %2725 = vmatpush1.msra.mxu0 0.0
    %2726 = vmatprep.subr.mxu0 0.0
    %2727 = vmatpush1.msra.mxu0 0.0
    %2728 = vmatprep.subr.mxu0 0.0
    %2729 = vmatpush1.msra.mxu0 %v2695
    %2730 = vmatprep.subr.mxu0 0.0
    %2731 = vmatpush1.msra.mxu0 %v2694
    %2732 = vmatprep.subr.mxu0 0.0
    %2733 = vmatpush1.msra.mxu0 %v2693
    %2734 = vmatprep.subr.mxu0 0.0
    %2735 = vmatpush1.msra.mxu0 %v2692
    %2736 = vmatprep.subr.mxu0 0.0
    %2737 = vmatpush2.msra.mxu0 0.0
    %2738 = vmatprep.subr.mxu0 0.0
    %2739 = vmatpush2.msra.mxu0 0.0
    %2740 = vmatprep.subr.mxu0 0.0
    %2741 = vmatpush2.msra.mxu0 0.0
    %2742 = vmatprep.subr.mxu0 0.0
    %2743 = vmatpush2.msra.mxu0 0.0
    %2744 = vmatprep.subr.mxu0 0.0
    %2745 = vmatpush2.msra.mxu0 0.0
    %2746 = vmatprep.subr.mxu0 0.0
    %2747 = vmatpush2.msra.mxu0 0.0
    %2748 = vmatprep.subr.mxu0 0.0
    %2749 = vmatpush2.msra.mxu0 0.0
    %2750 = vmatprep.subr.mxu0 0.0
    %2751 = vmatpush2.msra.mxu0 0.0
    %2752 = vmatprep.subr.mxu0 0.0
    %2753 = vmatpush2.msra.mxu0 0.0
    %2754 = vmatprep.subr.mxu0 0.0
    %2755 = vmatpush2.msra.mxu0 0.0
    %2756 = vmatprep.subr.mxu0 0.0
    %2757 = vmatpush2.msra.mxu0 0.0
    %2758 = vmatprep.subr.mxu0 0.0
    %2759 = vmatpush2.msra.mxu0 0.0
    %2760 = vmatprep.subr.mxu0 0.0
    %2761 = vmatpush2.msra.mxu0 0.0
    %2762 = vmatprep.subr.mxu0 0.0
    %2763 = vmatpush2.msra.mxu0 0.0
    %2764 = vmatprep.subr.mxu0 0.0
    %2765 = vmatpush2.msra.mxu0 0.0
    %2766 = vmatprep.subr.mxu0 0.0
    %2767 = vmatpush2.msra.mxu0 0.0
    %2768 = vmatprep.mubr.f32.mxu0 0.0
    %2769 = vmatmul.mubr.f32.gmra.mxu0 %v2138
    %v2770 = vpop.f32.mrf.mxu0
    %v2771 = vadd.f32 %v2702, %v2770
    %v2772 = vpop.f32.mrf.mxu0
    %2773 = vmatprep.mubr.f32.mxu0 0.0
    %2774 = vmatmul.mubr.f32.gmra.mxu0 %v2141
    %v2775 = vpop.f32.mrf.mxu0
    %v2776 = vadd.f32 %v2702, %v2775
    %v2777 = vpop.f32.mrf.mxu0
    %2778 = vmatprep.mubr.f32.mxu0 0.0
    %2779 = vmatmul.mubr.f32.gmra.mxu0 %v2144
    %v2780 = vpop.f32.mrf.mxu0
    %v2781 = vadd.f32 %v2702, %v2780
    %v2782 = vpop.f32.mrf.mxu0
    %2783 = vmatprep.mubr.f32.mxu0 0.0
    %2784 = vmatmul.mubr.f32.gmra.mxu0 %v2147
    %v2785 = vpop.f32.mrf.mxu0
    %v2786 = vadd.f32 %v2702, %v2785
    %v2787 = vpop.f32.mrf.mxu0
    %2788 = vdwg.mxu0
    %s2789 = scalar_lea.vmem [#allocation8], 96
    %v2790 = vld [vmem:[%s2789] sm:$0xff]
    %v2791 = vld [vmem:[%s2789 + $0x8] sm:$0xff]
    %v2792 = vld [vmem:[%s2789 + $0x10] sm:$0xff]
    %v2793 = vld [vmem:[%s2789 + $0x18] sm:$0xff]
    %s2794 = scalar_lea.vmem [#allocation10], 3
    %v2795 = vld [vmem:[%s2794] sm:$0x1]
    %v2797 = vlaneseq
    %v2798 = vshrl.u32 %v2797, 7
    %v2799 = vsub.s32 0, %v2798
    %v2800 = vrot.slane %v2795, %v2799
    %2802 = vmatprep.subr.mxu0 0.0
    %2803 = vmatpush1.msra.mxu0 0.0
    %2804 = vmatprep.subr.mxu0 0.0
    %2805 = vmatpush1.msra.mxu0 0.0
    %2806 = vmatprep.subr.mxu0 0.0
    %2807 = vmatpush1.msra.mxu0 0.0
    %2808 = vmatprep.subr.mxu0 0.0
    %2809 = vmatpush1.msra.mxu0 0.0
    %2810 = vmatprep.subr.mxu0 0.0
    %2811 = vmatpush1.msra.mxu0 0.0
    %2812 = vmatprep.subr.mxu0 0.0
    %2813 = vmatpush1.msra.mxu0 0.0
    %2814 = vmatprep.subr.mxu0 0.0
    %2815 = vmatpush1.msra.mxu0 0.0
    %2816 = vmatprep.subr.mxu0 0.0
    %2817 = vmatpush1.msra.mxu0 0.0
    %2818 = vmatprep.subr.mxu0 0.0
    %2819 = vmatpush1.msra.mxu0 0.0
    %2820 = vmatprep.subr.mxu0 0.0
    %2821 = vmatpush1.msra.mxu0 0.0
    %2822 = vmatprep.subr.mxu0 0.0
    %2823 = vmatpush1.msra.mxu0 0.0
    %2824 = vmatprep.subr.mxu0 0.0
    %2825 = vmatpush1.msra.mxu0 0.0
    %2826 = vmatprep.subr.mxu0 0.0
    %2827 = vmatpush1.msra.mxu0 %v2793
    %2828 = vmatprep.subr.mxu0 0.0
    %2829 = vmatpush1.msra.mxu0 %v2792
    %2830 = vmatprep.subr.mxu0 0.0
    %2831 = vmatpush1.msra.mxu0 %v2791
    %2832 = vmatprep.subr.mxu0 0.0
    %2833 = vmatpush1.msra.mxu0 %v2790
    %2834 = vmatprep.subr.mxu0 0.0
    %2835 = vmatpush2.msra.mxu0 0.0
    %2836 = vmatprep.subr.mxu0 0.0
    %2837 = vmatpush2.msra.mxu0 0.0
    %2838 = vmatprep.subr.mxu0 0.0
    %2839 = vmatpush2.msra.mxu0 0.0
    %2840 = vmatprep.subr.mxu0 0.0
    %2841 = vmatpush2.msra.mxu0 0.0
    %2842 = vmatprep.subr.mxu0 0.0
    %2843 = vmatpush2.msra.mxu0 0.0
    %2844 = vmatprep.subr.mxu0 0.0
    %2845 = vmatpush2.msra.mxu0 0.0
    %2846 = vmatprep.subr.mxu0 0.0
    %2847 = vmatpush2.msra.mxu0 0.0
    %2848 = vmatprep.subr.mxu0 0.0
    %2849 = vmatpush2.msra.mxu0 0.0
    %2850 = vmatprep.subr.mxu0 0.0
    %2851 = vmatpush2.msra.mxu0 0.0
    %2852 = vmatprep.subr.mxu0 0.0
    %2853 = vmatpush2.msra.mxu0 0.0
    %2854 = vmatprep.subr.mxu0 0.0
    %2855 = vmatpush2.msra.mxu0 0.0
    %2856 = vmatprep.subr.mxu0 0.0
    %2857 = vmatpush2.msra.mxu0 0.0
    %2858 = vmatprep.subr.mxu0 0.0
    %2859 = vmatpush2.msra.mxu0 0.0
    %2860 = vmatprep.subr.mxu0 0.0
    %2861 = vmatpush2.msra.mxu0 0.0
    %2862 = vmatprep.subr.mxu0 0.0
    %2863 = vmatpush2.msra.mxu0 0.0
    %2864 = vmatprep.subr.mxu0 0.0
    %2865 = vmatpush2.msra.mxu0 0.0
    %2866 = vmatprep.mubr.f32.mxu0 0.0
    %2867 = vmatmul.mubr.f32.gmra.mxu0 %v2138
    %v2868 = vpop.f32.mrf.mxu0
    %v2869 = vadd.f32 %v2800, %v2868
    %v2870 = vpop.f32.mrf.mxu0
    %2871 = vmatprep.mubr.f32.mxu0 0.0
    %2872 = vmatmul.mubr.f32.gmra.mxu0 %v2141
    %v2873 = vpop.f32.mrf.mxu0
    %v2874 = vadd.f32 %v2800, %v2873
    %v2875 = vpop.f32.mrf.mxu0
    %2876 = vmatprep.mubr.f32.mxu0 0.0
    %2877 = vmatmul.mubr.f32.gmra.mxu0 %v2144
    %v2878 = vpop.f32.mrf.mxu0
    %v2879 = vadd.f32 %v2800, %v2878
    %v2880 = vpop.f32.mrf.mxu0
    %2881 = vmatprep.mubr.f32.mxu0 0.0
    %2882 = vmatmul.mubr.f32.gmra.mxu0 %v2147
    %v2883 = vpop.f32.mrf.mxu0
    %v2884 = vadd.f32 %v2800, %v2883
    %v2885 = vpop.f32.mrf.mxu0
    %2886 = vdwg.mxu0
    %s2887 = scalar_lea.vmem [#allocation11], 96
    %v2888 = vld [vmem:[%s2887] sm:$0xff]
    %v2889 = vld [vmem:[%s2887 + $0x8] sm:$0xff]
    %v2890 = vld [vmem:[%s2887 + $0x10] sm:$0xff]
    %v2891 = vld [vmem:[%s2887 + $0x18] sm:$0xff]
    %s2892 = scalar_lea.vmem %s9, 3
    %v2893 = vld [vmem:[%s2892] sm:$0x1]
    %v2895 = vlaneseq
    %v2896 = vshrl.u32 %v2895, 7
    %v2897 = vsub.s32 0, %v2896
    %v2898 = vrot.slane %v2893, %v2897
    %2900 = vmatprep.subr.mxu0 0.0
    %2901 = vmatpush1.msra.mxu0 0.0
    %2902 = vmatprep.subr.mxu0 0.0
    %2903 = vmatpush1.msra.mxu0 0.0
    %2904 = vmatprep.subr.mxu0 0.0
    %2905 = vmatpush1.msra.mxu0 0.0
    %2906 = vmatprep.subr.mxu0 0.0
    %2907 = vmatpush1.msra.mxu0 0.0
    %2908 = vmatprep.subr.mxu0 0.0
    %2909 = vmatpush1.msra.mxu0 0.0
    %2910 = vmatprep.subr.mxu0 0.0
    %2911 = vmatpush1.msra.mxu0 0.0
    %2912 = vmatprep.subr.mxu0 0.0
    %2913 = vmatpush1.msra.mxu0 0.0
    %2914 = vmatprep.subr.mxu0 0.0
    %2915 = vmatpush1.msra.mxu0 0.0
    %2916 = vmatprep.subr.mxu0 0.0
    %2917 = vmatpush1.msra.mxu0 0.0
    %2918 = vmatprep.subr.mxu0 0.0
    %2919 = vmatpush1.msra.mxu0 0.0
    %2920 = vmatprep.subr.mxu0 0.0
    %2921 = vmatpush1.msra.mxu0 0.0
    %2922 = vmatprep.subr.mxu0 0.0
    %2923 = vmatpush1.msra.mxu0 0.0
    %2924 = vmatprep.subr.mxu0 0.0
    %2925 = vmatpush1.msra.mxu0 %v2891
    %2926 = vmatprep.subr.mxu0 0.0
    %2927 = vmatpush1.msra.mxu0 %v2890
    %2928 = vmatprep.subr.mxu0 0.0
    %2929 = vmatpush1.msra.mxu0 %v2889
    %2930 = vmatprep.subr.mxu0 0.0
    %2931 = vmatpush1.msra.mxu0 %v2888
    %2932 = vmatprep.subr.mxu0 0.0
    %2933 = vmatpush2.msra.mxu0 0.0
    %2934 = vmatprep.subr.mxu0 0.0
    %2935 = vmatpush2.msra.mxu0 0.0
    %2936 = vmatprep.subr.mxu0 0.0
    %2937 = vmatpush2.msra.mxu0 0.0
    %2938 = vmatprep.subr.mxu0 0.0
    %2939 = vmatpush2.msra.mxu0 0.0
    %2940 = vmatprep.subr.mxu0 0.0
    %2941 = vmatpush2.msra.mxu0 0.0
    %2942 = vmatprep.subr.mxu0 0.0
    %2943 = vmatpush2.msra.mxu0 0.0
    %2944 = vmatprep.subr.mxu0 0.0
    %2945 = vmatpush2.msra.mxu0 0.0
    %2946 = vmatprep.subr.mxu0 0.0
    %2947 = vmatpush2.msra.mxu0 0.0
    %2948 = vmatprep.subr.mxu0 0.0
    %2949 = vmatpush2.msra.mxu0 0.0
    %2950 = vmatprep.subr.mxu0 0.0
    %2951 = vmatpush2.msra.mxu0 0.0
    %2952 = vmatprep.subr.mxu0 0.0
    %2953 = vmatpush2.msra.mxu0 0.0
    %2954 = vmatprep.subr.mxu0 0.0
    %2955 = vmatpush2.msra.mxu0 0.0
    %2956 = vmatprep.subr.mxu0 0.0
    %2957 = vmatpush2.msra.mxu0 0.0
    %2958 = vmatprep.subr.mxu0 0.0
    %2959 = vmatpush2.msra.mxu0 0.0
    %2960 = vmatprep.subr.mxu0 0.0
    %2961 = vmatpush2.msra.mxu0 0.0
    %2962 = vmatprep.subr.mxu0 0.0
    %2963 = vmatpush2.msra.mxu0 0.0
    %2964 = vmatprep.mubr.f32.mxu0 0.0
    %2965 = vmatmul.mubr.f32.gmra.mxu0 %v2138
    %v2966 = vpop.f32.mrf.mxu0
    %v2967 = vadd.f32 %v2898, %v2966
    %v2968 = vpop.f32.mrf.mxu0
    %2969 = vmatprep.mubr.f32.mxu0 0.0
    %2970 = vmatmul.mubr.f32.gmra.mxu0 %v2141
    %v2971 = vpop.f32.mrf.mxu0
    %v2972 = vadd.f32 %v2898, %v2971
    %v2973 = vpop.f32.mrf.mxu0
    %2974 = vmatprep.mubr.f32.mxu0 0.0
    %2975 = vmatmul.mubr.f32.gmra.mxu0 %v2144
    %v2976 = vpop.f32.mrf.mxu0
    %v2977 = vadd.f32 %v2898, %v2976
    %v2978 = vpop.f32.mrf.mxu0
    %2979 = vmatprep.mubr.f32.mxu0 0.0
    %2980 = vmatmul.mubr.f32.gmra.mxu0 %v2147
    %v2981 = vpop.f32.mrf.mxu0
    %v2982 = vadd.f32 %v2898, %v2981
    %v2983 = vpop.f32.mrf.mxu0
    %2984 = vdwg.mxu0
    %v2986 = vsel %vm755, %v2771, 0
    %v2989 = vsel %vm755, %v2776, 0
    %v2992 = vsel %vm755, %v2781, 0
    %v2995 = vsel %vm755, %v2786, 0
    %v2998 = vsel %vm755, %v2869, 0
    %v3001 = vsel %vm755, %v2874, 0
    %v3004 = vsel %vm755, %v2879, 0
    %v3007 = vsel %vm755, %v2884, 0
    %3009 = vmatprep.subr.mxu0 0.0
    %3010 = vmatpush1.xpose.msra.mxu0 0.0
    %3011 = vmatprep.subr.mxu0 0.0
    %3012 = vmatpush1.xpose.msra.mxu0 0.0
    %3013 = vmatprep.subr.mxu0 0.0
    %3014 = vmatpush1.xpose.msra.mxu0 0.0
    %3015 = vmatprep.subr.mxu0 0.0
    %3016 = vmatpush1.xpose.msra.mxu0 0.0
    %3017 = vmatprep.subr.mxu0 0.0
    %3018 = vmatpush1.xpose.msra.mxu0 0.0
    %3019 = vmatprep.subr.mxu0 0.0
    %3020 = vmatpush1.xpose.msra.mxu0 0.0
    %3021 = vmatprep.subr.mxu0 0.0
    %3022 = vmatpush1.xpose.msra.mxu0 0.0
    %3023 = vmatprep.subr.mxu0 0.0
    %3024 = vmatpush1.xpose.msra.mxu0 0.0
    %3025 = vmatprep.subr.mxu0 0.0
    %3026 = vmatpush1.xpose.msra.mxu0 0.0
    %3027 = vmatprep.subr.mxu0 0.0
    %3028 = vmatpush1.xpose.msra.mxu0 0.0
    %3029 = vmatprep.subr.mxu0 0.0
    %3030 = vmatpush1.xpose.msra.mxu0 0.0
    %3031 = vmatprep.subr.mxu0 0.0
    %3032 = vmatpush1.xpose.msra.mxu0 0.0
    %3033 = vmatprep.subr.mxu0 0.0
    %3034 = vmatpush1.xpose.msra.mxu0 %v3007
    %3035 = vmatprep.subr.mxu0 0.0
    %3036 = vmatpush1.xpose.msra.mxu0 %v3004
    %3037 = vmatprep.subr.mxu0 0.0
    %3038 = vmatpush1.xpose.msra.mxu0 %v3001
    %3039 = vmatprep.subr.mxu0 0.0
    %3040 = vmatpush1.xpose.msra.mxu0 %v2998
    %3041 = vmatprep.subr.mxu0 0.0
    %3042 = vmatpush2.xpose.msra.mxu0 0.0
    %3043 = vmatprep.subr.mxu0 0.0
    %3044 = vmatpush2.xpose.msra.mxu0 0.0
    %3045 = vmatprep.subr.mxu0 0.0
    %3046 = vmatpush2.xpose.msra.mxu0 0.0
    %3047 = vmatprep.subr.mxu0 0.0
    %3048 = vmatpush2.xpose.msra.mxu0 0.0
    %3049 = vmatprep.subr.mxu0 0.0
    %3050 = vmatpush2.xpose.msra.mxu0 0.0
    %3051 = vmatprep.subr.mxu0 0.0
    %3052 = vmatpush2.xpose.msra.mxu0 0.0
    %3053 = vmatprep.subr.mxu0 0.0
    %3054 = vmatpush2.xpose.msra.mxu0 0.0
    %3055 = vmatprep.subr.mxu0 0.0
    %3056 = vmatpush2.xpose.msra.mxu0 0.0
    %3057 = vmatprep.subr.mxu0 0.0
    %3058 = vmatpush2.xpose.msra.mxu0 0.0
    %3059 = vmatprep.subr.mxu0 0.0
    %3060 = vmatpush2.xpose.msra.mxu0 0.0
    %3061 = vmatprep.subr.mxu0 0.0
    %3062 = vmatpush2.xpose.msra.mxu0 0.0
    %3063 = vmatprep.subr.mxu0 0.0
    %3064 = vmatpush2.xpose.msra.mxu0 0.0
    %3065 = vmatprep.subr.mxu0 0.0
    %3066 = vmatpush2.xpose.msra.mxu0 0.0
    %3067 = vmatprep.subr.mxu0 0.0
    %3068 = vmatpush2.xpose.msra.mxu0 0.0
    %3069 = vmatprep.subr.mxu0 0.0
    %3070 = vmatpush2.xpose.msra.mxu0 0.0
    %3071 = vmatprep.subr.mxu0 0.0
    %3072 = vmatpush2.xpose.msra.mxu0 0.0
    %3073 = vmatprep.mubr.f32.mxu0 0.0
    %3074 = vmatmul.mubr.f32.gmra.mxu0 %v2986
    %v3075 = vpop.f32.mrf.mxu0
    %v3076 = vadd.f32 0.0, %v3075
    %v3077 = vpop.f32.mrf.mxu0
    %3078 = vmatprep.mubr.f32.mxu0 0.0
    %3079 = vmatmul.mubr.f32.gmra.mxu0 %v2989
    %v3080 = vpop.f32.mrf.mxu0
    %v3081 = vadd.f32 0.0, %v3080
    %v3082 = vpop.f32.mrf.mxu0
    %3083 = vmatprep.mubr.f32.mxu0 0.0
    %3084 = vmatmul.mubr.f32.gmra.mxu0 %v2992
    %v3085 = vpop.f32.mrf.mxu0
    %v3086 = vadd.f32 0.0, %v3085
    %v3087 = vpop.f32.mrf.mxu0
    %3088 = vmatprep.mubr.f32.mxu0 0.0
    %3089 = vmatmul.mubr.f32.gmra.mxu0 %v2995
    %v3090 = vpop.f32.mrf.mxu0
    %v3091 = vadd.f32 0.0, %v3090
    %v3092 = vpop.f32.mrf.mxu0
    %3093 = vdwg.mxu0
    %v3094 = vmul.f32 %v3076, 0.25
    %v3095 = vmul.f32 %v3081, 0.25
    %v3096 = vmul.f32 %v3086, 0.25
    %v3097 = vmul.f32 %v3091, 0.25
    %v3098 = vadd.f32 %v3094, %v389
    %v3099 = vadd.f32 %v3095, %v390
    %v3100 = vadd.f32 %v3096, %v391
    %v3101 = vadd.f32 %v3097, %v392
    %v3102 = vsel %vm393, %v3098, -inf
    %3103 = vmax.xlane.f32.xlu0 %v3102
    %v3104 = vpop.xlane.xlu0 %3103
    %v3105 = vsel %vm393, %v3099, -inf
    %3106 = vmax.xlane.f32.xlu0 %v3105
    %v3107 = vpop.xlane.xlu0 %3106
    %v3108 = vsel %vm393, %v3100, -inf
    %3109 = vmax.xlane.f32.xlu0 %v3108
    %v3110 = vpop.xlane.xlu0 %3109
    %v3111 = vsel %vm393, %v3101, -inf
    %3112 = vmax.xlane.f32.xlu0 %v3111
    %v3113 = vpop.xlane.xlu0 %3112
    %v3114 = vsub.f32 %v3098, %v3104
    %v3115 = vsub.f32 %v3099, %v3107
    %v3116 = vsub.f32 %v3100, %v3110
    %v3117 = vsub.f32 %v3101, %v3113
    %v3118 = vmul.f32 %v3114, 1.442695
    %v3119 = vpow.pop %v3118
    %v3120 = vmul.f32 %v3115, 1.442695
    %v3121 = vpow.pop %v3120
    %v3122 = vmul.f32 %v3116, 1.442695
    %v3123 = vpow.pop %v3122
    %v3124 = vmul.f32 %v3117, 1.442695
    %v3125 = vpow.pop %v3124
    %v3126 = vsel %vm393, %v3119, 0.0
    %3127 = vadd.xlane.f32.xlu0 %v3126
    %v3128 = vpop.xlane.xlu0 %3127
    %v3129 = vsel %vm393, %v3121, 0.0
    %3130 = vadd.xlane.f32.xlu0 %v3129
    %v3131 = vpop.xlane.xlu0 %3130
    %v3132 = vsel %vm393, %v3123, 0.0
    %3133 = vadd.xlane.f32.xlu0 %v3132
    %v3134 = vpop.xlane.xlu0 %3133
    %v3135 = vsel %vm393, %v3125, 0.0
    %3136 = vadd.xlane.f32.xlu0 %v3135
    %v3137 = vpop.xlane.xlu0 %3136
    %v3138 = vrcp.pop %v3128
    %v3139 = vmul.f32 %v3119, %v3138
    %v3140 = vrcp.pop %v3131
    %v3141 = vmul.f32 %v3121, %v3140
    %v3142 = vrcp.pop %v3134
    %v3143 = vmul.f32 %v3123, %v3142
    %v3144 = vrcp.pop %v3137
    %v3145 = vmul.f32 %v3125, %v3144
    %v3147 = vsel %vm393, %v3139, 0
    %v3150 = vsel %vm393, %v3141, 0
    %v3153 = vsel %vm393, %v3143, 0
    %v3156 = vsel %vm393, %v3145, 0
    %3158 = vmatprep.subr.mxu0 0.0
    %3159 = vmatpush1.msra.mxu0 0.0
    %3160 = vmatprep.subr.mxu0 0.0
    %3161 = vmatpush1.msra.mxu0 0.0
    %3162 = vmatprep.subr.mxu0 0.0
    %3163 = vmatpush1.msra.mxu0 0.0
    %3164 = vmatprep.subr.mxu0 0.0
    %3165 = vmatpush1.msra.mxu0 0.0
    %3166 = vmatprep.subr.mxu0 0.0
    %3167 = vmatpush1.msra.mxu0 0.0
    %3168 = vmatprep.subr.mxu0 0.0
    %3169 = vmatpush1.msra.mxu0 0.0
    %3170 = vmatprep.subr.mxu0 0.0
    %3171 = vmatpush1.msra.mxu0 0.0
    %3172 = vmatprep.subr.mxu0 0.0
    %3173 = vmatpush1.msra.mxu0 0.0
    %3174 = vmatprep.subr.mxu0 0.0
    %3175 = vmatpush1.msra.mxu0 0.0
    %3176 = vmatprep.subr.mxu0 0.0
    %3177 = vmatpush1.msra.mxu0 0.0
    %3178 = vmatprep.subr.mxu0 0.0
    %3179 = vmatpush1.msra.mxu0 0.0
    %3180 = vmatprep.subr.mxu0 0.0
    %3181 = vmatpush1.msra.mxu0 0.0
    %3182 = vmatprep.subr.mxu0 0.0
    %3183 = vmatpush1.msra.mxu0 %v2982
    %3184 = vmatprep.subr.mxu0 0.0
    %3185 = vmatpush1.msra.mxu0 %v2977
    %3186 = vmatprep.subr.mxu0 0.0
    %3187 = vmatpush1.msra.mxu0 %v2972
    %3188 = vmatprep.subr.mxu0 0.0
    %3189 = vmatpush1.msra.mxu0 %v2967
    %3190 = vmatprep.subr.mxu0 0.0
    %3191 = vmatpush2.msra.mxu0 0.0
    %3192 = vmatprep.subr.mxu0 0.0
    %3193 = vmatpush2.msra.mxu0 0.0
    %3194 = vmatprep.subr.mxu0 0.0
    %3195 = vmatpush2.msra.mxu0 0.0
    %3196 = vmatprep.subr.mxu0 0.0
    %3197 = vmatpush2.msra.mxu0 0.0
    %3198 = vmatprep.subr.mxu0 0.0
    %3199 = vmatpush2.msra.mxu0 0.0
    %3200 = vmatprep.subr.mxu0 0.0
    %3201 = vmatpush2.msra.mxu0 0.0
    %3202 = vmatprep.subr.mxu0 0.0
    %3203 = vmatpush2.msra.mxu0 0.0
    %3204 = vmatprep.subr.mxu0 0.0
    %3205 = vmatpush2.msra.mxu0 0.0
    %3206 = vmatprep.subr.mxu0 0.0
    %3207 = vmatpush2.msra.mxu0 0.0
    %3208 = vmatprep.subr.mxu0 0.0
    %3209 = vmatpush2.msra.mxu0 0.0
    %3210 = vmatprep.subr.mxu0 0.0
    %3211 = vmatpush2.msra.mxu0 0.0
    %3212 = vmatprep.subr.mxu0 0.0
    %3213 = vmatpush2.msra.mxu0 0.0
    %3214 = vmatprep.subr.mxu0 0.0
    %3215 = vmatpush2.msra.mxu0 0.0
    %3216 = vmatprep.subr.mxu0 0.0
    %3217 = vmatpush2.msra.mxu0 0.0
    %3218 = vmatprep.subr.mxu0 0.0
    %3219 = vmatpush2.msra.mxu0 0.0
    %3220 = vmatprep.subr.mxu0 0.0
    %3221 = vmatpush2.msra.mxu0 0.0
    %3222 = vmatprep.mubr.f32.mxu0 0.0
    %3223 = vmatmul.mubr.f32.gmra.mxu0 %v3147
    %v3224 = vpop.f32.mrf.mxu0
    %v3225 = vadd.f32 0.0, %v3224
    %v3226 = vpop.f32.mrf.mxu0
    %3227 = vmatprep.mubr.f32.mxu0 0.0
    %3228 = vmatmul.mubr.f32.gmra.mxu0 %v3150
    %v3229 = vpop.f32.mrf.mxu0
    %v3230 = vadd.f32 0.0, %v3229
    %v3231 = vpop.f32.mrf.mxu0
    %3232 = vmatprep.mubr.f32.mxu0 0.0
    %3233 = vmatmul.mubr.f32.gmra.mxu0 %v3153
    %v3234 = vpop.f32.mrf.mxu0
    %v3235 = vadd.f32 0.0, %v3234
    %v3236 = vpop.f32.mrf.mxu0
    %3237 = vmatprep.mubr.f32.mxu0 0.0
    %3238 = vmatmul.mubr.f32.gmra.mxu0 %v3156
    %v3239 = vpop.f32.mrf.mxu0
    %v3240 = vadd.f32 0.0, %v3239
    %v3241 = vpop.f32.mrf.mxu0
    %3242 = vdwg.mxu0
    %s3243 = scalar_lea.vmem [#allocation13], 48
    %v3244 = vld [vmem:[%s3243] sm:$0xff]
    %v3245 = vld [vmem:[%s3243 + $0x8] sm:$0xff]
    %v3247 = vsel %vm755, %v3225, 0
    %v3250 = vsel %vm755, %v3230, 0
    %v3253 = vsel %vm755, %v3235, 0
    %v3256 = vsel %vm755, %v3240, 0
    %3258 = vmatprep.subr.mxu0 0.0
    %3259 = vmatpush1.msra.mxu0 0.0
    %3260 = vmatprep.subr.mxu0 0.0
    %3261 = vmatpush1.msra.mxu0 0.0
    %3262 = vmatprep.subr.mxu0 0.0
    %3263 = vmatpush1.msra.mxu0 0.0
    %3264 = vmatprep.subr.mxu0 0.0
    %3265 = vmatpush1.msra.mxu0 0.0
    %3266 = vmatprep.subr.mxu0 0.0
    %3267 = vmatpush1.msra.mxu0 0.0
    %3268 = vmatprep.subr.mxu0 0.0
    %3269 = vmatpush1.msra.mxu0 0.0
    %3270 = vmatprep.subr.mxu0 0.0
    %3271 = vmatpush1.msra.mxu0 0.0
    %3272 = vmatprep.subr.mxu0 0.0
    %3273 = vmatpush1.msra.mxu0 0.0
    %3274 = vmatprep.subr.mxu0 0.0
    %3275 = vmatpush1.msra.mxu0 0.0
    %3276 = vmatprep.subr.mxu0 0.0
    %3277 = vmatpush1.msra.mxu0 0.0
    %3278 = vmatprep.subr.mxu0 0.0
    %3279 = vmatpush1.msra.mxu0 0.0
    %3280 = vmatprep.subr.mxu0 0.0
    %3281 = vmatpush1.msra.mxu0 0.0
    %3282 = vmatprep.subr.mxu0 0.0
    %3283 = vmatpush1.msra.mxu0 0.0
    %3284 = vmatprep.subr.mxu0 0.0
    %3285 = vmatpush1.msra.mxu0 0.0
    %3286 = vmatprep.subr.mxu0 0.0
    %3287 = vmatpush1.msra.mxu0 %v3245
    %3288 = vmatprep.subr.mxu0 0.0
    %3289 = vmatpush1.msra.mxu0 %v3244
    %3290 = vmatprep.subr.mxu0 0.0
    %3291 = vmatpush2.msra.mxu0 0.0
    %3292 = vmatprep.subr.mxu0 0.0
    %3293 = vmatpush2.msra.mxu0 0.0
    %3294 = vmatprep.subr.mxu0 0.0
    %3295 = vmatpush2.msra.mxu0 0.0
    %3296 = vmatprep.subr.mxu0 0.0
    %3297 = vmatpush2.msra.mxu0 0.0
    %3298 = vmatprep.subr.mxu0 0.0
    %3299 = vmatpush2.msra.mxu0 0.0
    %3300 = vmatprep.subr.mxu0 0.0
    %3301 = vmatpush2.msra.mxu0 0.0
    %3302 = vmatprep.subr.mxu0 0.0
    %3303 = vmatpush2.msra.mxu0 0.0
    %3304 = vmatprep.subr.mxu0 0.0
    %3305 = vmatpush2.msra.mxu0 0.0
    %3306 = vmatprep.subr.mxu0 0.0
    %3307 = vmatpush2.msra.mxu0 0.0
    %3308 = vmatprep.subr.mxu0 0.0
    %3309 = vmatpush2.msra.mxu0 0.0
    %3310 = vmatprep.subr.mxu0 0.0
    %3311 = vmatpush2.msra.mxu0 0.0
    %3312 = vmatprep.subr.mxu0 0.0
    %3313 = vmatpush2.msra.mxu0 0.0
    %3314 = vmatprep.subr.mxu0 0.0
    %3315 = vmatpush2.msra.mxu0 0.0
    %3316 = vmatprep.subr.mxu0 0.0
    %3317 = vmatpush2.msra.mxu0 0.0
    %3318 = vmatprep.subr.mxu0 0.0
    %3319 = vmatpush2.msra.mxu0 0.0
    %3320 = vmatprep.subr.mxu0 0.0
    %3321 = vmatpush2.msra.mxu0 0.0
    %3322 = vmatprep.mubr.f32.mxu0 0.0
    %3323 = vmatmul.mubr.f32.gmra.mxu0 %v3247
    %v3324 = vpop.f32.mrf.mxu0
    %v3325 = vadd.f32 0.0, %v3324
    %v3326 = vpop.f32.mrf.mxu0
    %3327 = vmatprep.mubr.f32.mxu0 0.0
    %3328 = vmatmul.mubr.f32.gmra.mxu0 %v3250
    %v3329 = vpop.f32.mrf.mxu0
    %v3330 = vadd.f32 0.0, %v3329
    %v3331 = vpop.f32.mrf.mxu0
    %3332 = vmatprep.mubr.f32.mxu0 0.0
    %3333 = vmatmul.mubr.f32.gmra.mxu0 %v3253
    %v3334 = vpop.f32.mrf.mxu0
    %v3335 = vadd.f32 0.0, %v3334
    %v3336 = vpop.f32.mrf.mxu0
    %3337 = vmatprep.mubr.f32.mxu0 0.0
    %3338 = vmatmul.mubr.f32.gmra.mxu0 %v3256
    %v3339 = vpop.f32.mrf.mxu0
    %v3340 = vadd.f32 0.0, %v3339
    %v3341 = vpop.f32.mrf.mxu0
    %3342 = vdwg.mxu0
    %v3344 = vsel %vm755, %v2670, 0
    %v3347 = vsel %vm755, %v2675, 0
    %v3350 = vsel %vm755, %v2680, 0
    %v3353 = vsel %vm755, %v2685, 0
    %3355 = vmatprep.subr.mxu0 0.0
    %3356 = vmatpush1.msra.mxu0 0.0
    %3357 = vmatprep.subr.mxu0 0.0
    %3358 = vmatpush1.msra.mxu0 0.0
    %3359 = vmatprep.subr.mxu0 0.0
    %3360 = vmatpush1.msra.mxu0 0.0
    %3361 = vmatprep.subr.mxu0 0.0
    %3362 = vmatpush1.msra.mxu0 0.0
    %3363 = vmatprep.subr.mxu0 0.0
    %3364 = vmatpush1.msra.mxu0 0.0
    %3365 = vmatprep.subr.mxu0 0.0
    %3366 = vmatpush1.msra.mxu0 0.0
    %3367 = vmatprep.subr.mxu0 0.0
    %3368 = vmatpush1.msra.mxu0 0.0
    %3369 = vmatprep.subr.mxu0 0.0
    %3370 = vmatpush1.msra.mxu0 0.0
    %3371 = vmatprep.subr.mxu0 0.0
    %3372 = vmatpush1.msra.mxu0 0.0
    %3373 = vmatprep.subr.mxu0 0.0
    %3374 = vmatpush1.msra.mxu0 0.0
    %3375 = vmatprep.subr.mxu0 0.0
    %3376 = vmatpush1.msra.mxu0 0.0
    %3377 = vmatprep.subr.mxu0 0.0
    %3378 = vmatpush1.msra.mxu0 0.0
    %3379 = vmatprep.subr.mxu0 0.0
    %3380 = vmatpush1.msra.mxu0 0.0
    %3381 = vmatprep.subr.mxu0 0.0
    %3382 = vmatpush1.msra.mxu0 0.0
    %3383 = vmatprep.subr.mxu0 0.0
    %3384 = vmatpush1.msra.mxu0 %v2690
    %3385 = vmatprep.subr.mxu0 0.0
    %3386 = vmatpush1.msra.mxu0 %v2689
    %3387 = vmatprep.subr.mxu0 0.0
    %3388 = vmatpush2.msra.mxu0 0.0
    %3389 = vmatprep.subr.mxu0 0.0
    %3390 = vmatpush2.msra.mxu0 0.0
    %3391 = vmatprep.subr.mxu0 0.0
    %3392 = vmatpush2.msra.mxu0 0.0
    %3393 = vmatprep.subr.mxu0 0.0
    %3394 = vmatpush2.msra.mxu0 0.0
    %3395 = vmatprep.subr.mxu0 0.0
    %3396 = vmatpush2.msra.mxu0 0.0
    %3397 = vmatprep.subr.mxu0 0.0
    %3398 = vmatpush2.msra.mxu0 0.0
    %3399 = vmatprep.subr.mxu0 0.0
    %3400 = vmatpush2.msra.mxu0 0.0
    %3401 = vmatprep.subr.mxu0 0.0
    %3402 = vmatpush2.msra.mxu0 0.0
    %3403 = vmatprep.subr.mxu0 0.0
    %3404 = vmatpush2.msra.mxu0 0.0
    %3405 = vmatprep.subr.mxu0 0.0
    %3406 = vmatpush2.msra.mxu0 0.0
    %3407 = vmatprep.subr.mxu0 0.0
    %3408 = vmatpush2.msra.mxu0 0.0
    %3409 = vmatprep.subr.mxu0 0.0
    %3410 = vmatpush2.msra.mxu0 0.0
    %3411 = vmatprep.subr.mxu0 0.0
    %3412 = vmatpush2.msra.mxu0 0.0
    %3413 = vmatprep.subr.mxu0 0.0
    %3414 = vmatpush2.msra.mxu0 0.0
    %3415 = vmatprep.subr.mxu0 0.0
    %3416 = vmatpush2.msra.mxu0 0.0
    %3417 = vmatprep.subr.mxu0 0.0
    %3418 = vmatpush2.msra.mxu0 0.0
    %3419 = vmatprep.mubr.f32.mxu0 0.0
    %3420 = vmatmul.mubr.f32.gmra.mxu0 %v3344
    %v3421 = vpop.f32.mrf.mxu0
    %v3422 = vadd.f32 %v3325, %v3421
    %v3423 = vpop.f32.mrf.mxu0
    %3424 = vmatprep.mubr.f32.mxu0 0.0
    %3425 = vmatmul.mubr.f32.gmra.mxu0 %v3347
    %v3426 = vpop.f32.mrf.mxu0
    %v3427 = vadd.f32 %v3330, %v3426
    %v3428 = vpop.f32.mrf.mxu0
    %3429 = vmatprep.mubr.f32.mxu0 0.0
    %3430 = vmatmul.mubr.f32.gmra.mxu0 %v3350
    %v3431 = vpop.f32.mrf.mxu0
    %v3432 = vadd.f32 %v3335, %v3431
    %v3433 = vpop.f32.mrf.mxu0
    %3434 = vmatprep.mubr.f32.mxu0 0.0
    %3435 = vmatmul.mubr.f32.gmra.mxu0 %v3353
    %v3436 = vpop.f32.mrf.mxu0
    %v3437 = vadd.f32 %v3340, %v3436
    %v3438 = vpop.f32.mrf.mxu0
    %3439 = vdwg.mxu0
    %v3440 = vadd.f32 %v2060, %v3422
    %v3441 = vadd.f32 %v2061, %v3427
    %v3442 = vadd.f32 %v2062, %v3432
    %v3443 = vadd.f32 %v2063, %v3437
    %s3444 = scalar_lea.vmem %s11, 1
    %v3445 = vld [vmem:[%s3444] sm:$0x1]
    %v3447 = vlaneseq
    %v3448 = vshrl.u32 %v3447, 7
    %v3449 = vsub.s32 0, %v3448
    %v3450 = vrot.slane %v3445, %v3449
    %v3452 = vadd.f32 %v3440, %v3450
    %v3453 = vadd.f32 %v3441, %v3450
    %v3454 = vadd.f32 %v3442, %v3450
    %v3455 = vadd.f32 %v3443, %v3450
    %v3456 = vsel %vm393, %v3452, 0.0
    %3457 = vadd.xlane.f32.xlu0 %v3456
    %v3458 = vpop.xlane.xlu0 %3457
    %v3459 = vsel %vm393, %v3453, 0.0
    %3460 = vadd.xlane.f32.xlu0 %v3459
    %v3461 = vpop.xlane.xlu0 %3460
    %v3462 = vsel %vm393, %v3454, 0.0
    %3463 = vadd.xlane.f32.xlu0 %v3462
    %v3464 = vpop.xlane.xlu0 %3463
    %v3465 = vsel %vm393, %v3455, 0.0
    %3466 = vadd.xlane.f32.xlu0 %v3465
    %v3467 = vpop.xlane.xlu0 %3466
    %v3468 = vmul.f32 %v3458, %v406
    %v3469 = vmul.f32 %v3461, %v406
    %v3470 = vmul.f32 %v3464, %v406
    %v3471 = vmul.f32 %v3467, %v406
    %v3472 = vmul.f32 %v3452, %v3452
    %v3473 = vmul.f32 %v3453, %v3453
    %v3474 = vmul.f32 %v3454, %v3454
    %v3475 = vmul.f32 %v3455, %v3455
    %v3476 = vsel %vm393, %v3472, 0.0
    %3477 = vadd.xlane.f32.xlu0 %v3476
    %v3478 = vpop.xlane.xlu0 %3477
    %v3479 = vsel %vm393, %v3473, 0.0
    %3480 = vadd.xlane.f32.xlu0 %v3479
    %v3481 = vpop.xlane.xlu0 %3480
    %v3482 = vsel %vm393, %v3474, 0.0
    %3483 = vadd.xlane.f32.xlu0 %v3482
    %v3484 = vpop.xlane.xlu0 %3483
    %v3485 = vsel %vm393, %v3475, 0.0
    %3486 = vadd.xlane.f32.xlu0 %v3485
    %v3487 = vpop.xlane.xlu0 %3486
    %v3488 = vmul.f32 %v3478, %v406
    %v3489 = vmul.f32 %v3481, %v406
    %v3490 = vmul.f32 %v3484, %v406
    %v3491 = vmul.f32 %v3487, %v406
    %v3492 = vmul.f32 %v3468, %v3468
    %v3493 = vmul.f32 %v3469, %v3469
    %v3494 = vmul.f32 %v3470, %v3470
    %v3495 = vmul.f32 %v3471, %v3471
    %v3496 = vsub.f32 %v3488, %v3492
    %v3497 = vsub.f32 %v3489, %v3493
    %v3498 = vsub.f32 %v3490, %v3494
    %v3499 = vsub.f32 %v3491, %v3495
    %v3500 = vsub.f32 %v3452, %v3468
    %v3501 = vsub.f32 %v3453, %v3469
    %v3502 = vsub.f32 %v3454, %v3470
    %v3503 = vsub.f32 %v3455, %v3471
    %v3504 = vadd.f32 %v3496, 1e-05
    %v3505 = vadd.f32 %v3497, 1e-05
    %v3506 = vadd.f32 %v3498, 1e-05
    %v3507 = vadd.f32 %v3499, 1e-05
    %v3508 = vrsqrt.pop %v3504
    %v3509 = vrsqrt.pop %v3505
    %v3510 = vrsqrt.pop %v3506
    %v3511 = vrsqrt.pop %v3507
    %v3512 = vmul.f32 %v3500, %v3508
    %v3513 = vmul.f32 %v3501, %v3509
    %v3514 = vmul.f32 %v3502, %v3510
    %v3515 = vmul.f32 %v3503, %v3511
    %s3516 = scalar_lea.vmem %s12, 32
    %v3517 = vld [vmem:[%s3516] sm:$0xff]
    %v3518 = vld [vmem:[%s3516 + $0x8] sm:$0xff]
    %v3519 = vld [vmem:[%s3516 + $0x10] sm:$0xff]
    %v3520 = vld [vmem:[%s3516 + $0x18] sm:$0xff]
    %s3521 = scalar_lea.vmem [#allocation14], 1
    %v3522 = vld [vmem:[%s3521] sm:$0x1]
    %v3524 = vlaneseq
    %v3525 = vshrl.u32 %v3524, 7
    %v3526 = vsub.s32 0, %v3525
    %v3527 = vrot.slane %v3522, %v3526
    %v3530 = vsel %vm393, %v3512, 0
    %v3533 = vsel %vm393, %v3513, 0
    %v3536 = vsel %vm393, %v3514, 0
    %v3539 = vsel %vm393, %v3515, 0
    %3541 = vmatprep.subr.mxu0 0.0
    %3542 = vmatpush1.msra.mxu0 0.0
    %3543 = vmatprep.subr.mxu0 0.0
    %3544 = vmatpush1.msra.mxu0 0.0
    %3545 = vmatprep.subr.mxu0 0.0
    %3546 = vmatpush1.msra.mxu0 0.0
    %3547 = vmatprep.subr.mxu0 0.0
    %3548 = vmatpush1.msra.mxu0 0.0
    %3549 = vmatprep.subr.mxu0 0.0
    %3550 = vmatpush1.msra.mxu0 0.0
    %3551 = vmatprep.subr.mxu0 0.0
    %3552 = vmatpush1.msra.mxu0 0.0
    %3553 = vmatprep.subr.mxu0 0.0
    %3554 = vmatpush1.msra.mxu0 0.0
    %3555 = vmatprep.subr.mxu0 0.0
    %3556 = vmatpush1.msra.mxu0 0.0
    %3557 = vmatprep.subr.mxu0 0.0
    %3558 = vmatpush1.msra.mxu0 0.0
    %3559 = vmatprep.subr.mxu0 0.0
    %3560 = vmatpush1.msra.mxu0 0.0
    %3561 = vmatprep.subr.mxu0 0.0
    %3562 = vmatpush1.msra.mxu0 0.0
    %3563 = vmatprep.subr.mxu0 0.0
    %3564 = vmatpush1.msra.mxu0 0.0
    %3565 = vmatprep.subr.mxu0 0.0
    %3566 = vmatpush1.msra.mxu0 %v3520
    %3567 = vmatprep.subr.mxu0 0.0
    %3568 = vmatpush1.msra.mxu0 %v3519
    %3569 = vmatprep.subr.mxu0 0.0
    %3570 = vmatpush1.msra.mxu0 %v3518
    %3571 = vmatprep.subr.mxu0 0.0
    %3572 = vmatpush1.msra.mxu0 %v3517
    %3573 = vmatprep.subr.mxu0 0.0
    %3574 = vmatpush2.msra.mxu0 0.0
    %3575 = vmatprep.subr.mxu0 0.0
    %3576 = vmatpush2.msra.mxu0 0.0
    %3577 = vmatprep.subr.mxu0 0.0
    %3578 = vmatpush2.msra.mxu0 0.0
    %3579 = vmatprep.subr.mxu0 0.0
    %3580 = vmatpush2.msra.mxu0 0.0
    %3581 = vmatprep.subr.mxu0 0.0
    %3582 = vmatpush2.msra.mxu0 0.0
    %3583 = vmatprep.subr.mxu0 0.0
    %3584 = vmatpush2.msra.mxu0 0.0
    %3585 = vmatprep.subr.mxu0 0.0
    %3586 = vmatpush2.msra.mxu0 0.0
    %3587 = vmatprep.subr.mxu0 0.0
    %3588 = vmatpush2.msra.mxu0 0.0
    %3589 = vmatprep.subr.mxu0 0.0
    %3590 = vmatpush2.msra.mxu0 0.0
    %3591 = vmatprep.subr.mxu0 0.0
    %3592 = vmatpush2.msra.mxu0 0.0
    %3593 = vmatprep.subr.mxu0 0.0
    %3594 = vmatpush2.msra.mxu0 0.0
    %3595 = vmatprep.subr.mxu0 0.0
    %3596 = vmatpush2.msra.mxu0 0.0
    %3597 = vmatprep.subr.mxu0 0.0
    %3598 = vmatpush2.msra.mxu0 0.0
    %3599 = vmatprep.subr.mxu0 0.0
    %3600 = vmatpush2.msra.mxu0 0.0
    %3601 = vmatprep.subr.mxu0 0.0
    %3602 = vmatpush2.msra.mxu0 0.0
    %3603 = vmatprep.subr.mxu0 0.0
    %3604 = vmatpush2.msra.mxu0 0.0
    %3605 = vmatprep.mubr.f32.mxu0 0.0
    %3606 = vmatmul.mubr.f32.gmra.mxu0 %v3530
    %v3607 = vpop.f32.mrf.mxu0
    %v3608 = vadd.f32 %v3527, %v3607
    %v3609 = vpop.f32.mrf.mxu0
    %3610 = vmatprep.mubr.f32.mxu0 0.0
    %3611 = vmatmul.mubr.f32.gmra.mxu0 %v3533
    %v3612 = vpop.f32.mrf.mxu0
    %v3613 = vadd.f32 %v3527, %v3612
    %v3614 = vpop.f32.mrf.mxu0
    %3615 = vmatprep.mubr.f32.mxu0 0.0
    %3616 = vmatmul.mubr.f32.gmra.mxu0 %v3536
    %v3617 = vpop.f32.mrf.mxu0
    %v3618 = vadd.f32 %v3527, %v3617
    %v3619 = vpop.f32.mrf.mxu0
    %3620 = vmatprep.mubr.f32.mxu0 0.0
    %3621 = vmatmul.mubr.f32.gmra.mxu0 %v3539
    %v3622 = vpop.f32.mrf.mxu0
    %v3623 = vadd.f32 %v3527, %v3622
    %v3624 = vpop.f32.mrf.mxu0
    %3625 = vdwg.mxu0
    %v3626 = vmax.f32 %v3608, 0.0
    %v3627 = vmax.f32 %v3613, 0.0
    %v3628 = vmax.f32 %v3618, 0.0
    %v3629 = vmax.f32 %v3623, 0.0
    %s3630 = scalar_lea.vmem [#allocation16], 128
    %v3631 = vld [vmem:[%s3630] sm:$0xff]
    %v3632 = vld [vmem:[%s3630 + $0x8] sm:$0xff]
    %v3633 = vld [vmem:[%s3630 + $0x10] sm:$0xff]
    %v3634 = vld [vmem:[%s3630 + $0x18] sm:$0xff]
    %v3635 = vld [vmem:[%s3630 + $0x20] sm:$0xff]
    %v3636 = vld [vmem:[%s3630 + $0x28] sm:$0xff]
    %v3637 = vld [vmem:[%s3630 + $0x30] sm:$0xff]
    %v3638 = vld [vmem:[%s3630 + $0x38] sm:$0xff]
    %v3639 = vld [vmem:[%s3630 + $0x40] sm:$0xff]
    %v3640 = vld [vmem:[%s3630 + $0x48] sm:$0xff]
    %v3641 = vld [vmem:[%s3630 + $0x50] sm:$0xff]
    %v3642 = vld [vmem:[%s3630 + $0x58] sm:$0xff]
    %v3643 = vld [vmem:[%s3630 + $0x60] sm:$0xff]
    %v3644 = vld [vmem:[%s3630 + $0x68] sm:$0xff]
    %v3645 = vld [vmem:[%s3630 + $0x70] sm:$0xff]
    %v3646 = vld [vmem:[%s3630 + $0x78] sm:$0xff]
    %s3647 = scalar_lea.vmem %s15, 1
    %v3648 = vld [vmem:[%s3647] sm:$0x1]
    %v3650 = vlaneseq
    %v3651 = vshrl.u32 %v3650, 7
    %v3652 = vsub.s32 0, %v3651
    %v3653 = vrot.slane %v3648, %v3652
    %3655 = vmatprep.subr.mxu0 0.0
    %3656 = vmatpush1.msra.mxu0 %v3646
    %3657 = vmatprep.subr.mxu0 0.0
    %3658 = vmatpush1.msra.mxu0 %v3645
    %3659 = vmatprep.subr.mxu0 0.0
    %3660 = vmatpush1.msra.mxu0 %v3644
    %3661 = vmatprep.subr.mxu0 0.0
    %3662 = vmatpush1.msra.mxu0 %v3643
    %3663 = vmatprep.subr.mxu0 0.0
    %3664 = vmatpush1.msra.mxu0 %v3642
    %3665 = vmatprep.subr.mxu0 0.0
    %3666 = vmatpush1.msra.mxu0 %v3641
    %3667 = vmatprep.subr.mxu0 0.0
    %3668 = vmatpush1.msra.mxu0 %v3640
    %3669 = vmatprep.subr.mxu0 0.0
    %3670 = vmatpush1.msra.mxu0 %v3639
    %3671 = vmatprep.subr.mxu0 0.0
    %3672 = vmatpush1.msra.mxu0 %v3638
    %3673 = vmatprep.subr.mxu0 0.0
    %3674 = vmatpush1.msra.mxu0 %v3637
    %3675 = vmatprep.subr.mxu0 0.0
    %3676 = vmatpush1.msra.mxu0 %v3636
    %3677 = vmatprep.subr.mxu0 0.0
    %3678 = vmatpush1.msra.mxu0 %v3635
    %3679 = vmatprep.subr.mxu0 0.0
    %3680 = vmatpush1.msra.mxu0 %v3634
    %3681 = vmatprep.subr.mxu0 0.0
    %3682 = vmatpush1.msra.mxu0 %v3633
    %3683 = vmatprep.subr.mxu0 0.0
    %3684 = vmatpush1.msra.mxu0 %v3632
    %3685 = vmatprep.subr.mxu0 0.0
    %3686 = vmatpush1.msra.mxu0 %v3631
    %3687 = vmatprep.subr.mxu0 0.0
    %3688 = vmatpush2.msra.mxu0 0.0
    %3689 = vmatprep.subr.mxu0 0.0
    %3690 = vmatpush2.msra.mxu0 0.0
    %3691 = vmatprep.subr.mxu0 0.0
    %3692 = vmatpush2.msra.mxu0 0.0
    %3693 = vmatprep.subr.mxu0 0.0
    %3694 = vmatpush2.msra.mxu0 0.0
    %3695 = vmatprep.subr.mxu0 0.0
    %3696 = vmatpush2.msra.mxu0 0.0
    %3697 = vmatprep.subr.mxu0 0.0
    %3698 = vmatpush2.msra.mxu0 0.0
    %3699 = vmatprep.subr.mxu0 0.0
    %3700 = vmatpush2.msra.mxu0 0.0
    %3701 = vmatprep.subr.mxu0 0.0
    %3702 = vmatpush2.msra.mxu0 0.0
    %3703 = vmatprep.subr.mxu0 0.0
    %3704 = vmatpush2.msra.mxu0 0.0
    %3705 = vmatprep.subr.mxu0 0.0
    %3706 = vmatpush2.msra.mxu0 0.0
    %3707 = vmatprep.subr.mxu0 0.0
    %3708 = vmatpush2.msra.mxu0 0.0
    %3709 = vmatprep.subr.mxu0 0.0
    %3710 = vmatpush2.msra.mxu0 0.0
    %3711 = vmatprep.subr.mxu0 0.0
    %3712 = vmatpush2.msra.mxu0 0.0
    %3713 = vmatprep.subr.mxu0 0.0
    %3714 = vmatpush2.msra.mxu0 0.0
    %3715 = vmatprep.subr.mxu0 0.0
    %3716 = vmatpush2.msra.mxu0 0.0
    %3717 = vmatprep.subr.mxu0 0.0
    %3718 = vmatpush2.msra.mxu0 0.0
    %3719 = vmatprep.mubr.f32.mxu0 0.0
    %3720 = vmatmul.mubr.f32.gmra.mxu0 %v3626
    %v3721 = vpop.f32.mrf.mxu0
    %v3722 = vadd.f32 %v3653, %v3721
    %v3723 = vpop.f32.mrf.mxu0
    %3724 = vmatprep.mubr.f32.mxu0 0.0
    %3725 = vmatmul.mubr.f32.gmra.mxu0 %v3627
    %v3726 = vpop.f32.mrf.mxu0
    %v3727 = vadd.f32 %v3653, %v3726
    %v3728 = vpop.f32.mrf.mxu0
    %3729 = vmatprep.mubr.f32.mxu0 0.0
    %3730 = vmatmul.mubr.f32.gmra.mxu0 %v3628
    %v3731 = vpop.f32.mrf.mxu0
    %v3732 = vadd.f32 %v3653, %v3731
    %v3733 = vpop.f32.mrf.mxu0
    %3734 = vmatprep.mubr.f32.mxu0 0.0
    %3735 = vmatmul.mubr.f32.gmra.mxu0 %v3629
    %v3736 = vpop.f32.mrf.mxu0
    %v3737 = vadd.f32 %v3653, %v3736
    %v3738 = vpop.f32.mrf.mxu0
    %3739 = vdwg.mxu0
    %v3740 = vadd.f32 %v3452, %v3722
    %v3741 = vadd.f32 %v3453, %v3727
    %v3742 = vadd.f32 %v3454, %v3732
    %v3743 = vadd.f32 %v3455, %v3737
    %v3744 = vsel %vm393, %v3740, 0.0
    %3745 = vadd.xlane.f32.xlu0 %v3744
    %v3746 = vpop.xlane.xlu0 %3745
    %v3747 = vsel %vm393, %v3741, 0.0
    %3748 = vadd.xlane.f32.xlu0 %v3747
    %v3749 = vpop.xlane.xlu0 %3748
    %v3750 = vsel %vm393, %v3742, 0.0
    %3751 = vadd.xlane.f32.xlu0 %v3750
    %v3752 = vpop.xlane.xlu0 %3751
    %v3753 = vsel %vm393, %v3743, 0.0
    %3754 = vadd.xlane.f32.xlu0 %v3753
    %v3755 = vpop.xlane.xlu0 %3754
    %v3756 = vmul.f32 %v3746, %v406
    %v3757 = vmul.f32 %v3749, %v406
    %v3758 = vmul.f32 %v3752, %v406
    %v3759 = vmul.f32 %v3755, %v406
    %v3760 = vmul.f32 %v3740, %v3740
    %v3761 = vmul.f32 %v3741, %v3741
    %v3762 = vmul.f32 %v3742, %v3742
    %v3763 = vmul.f32 %v3743, %v3743
    %v3764 = vsel %vm393, %v3760, 0.0
    %3765 = vadd.xlane.f32.xlu0 %v3764
    %v3766 = vpop.xlane.xlu0 %3765
    %v3767 = vsel %vm393, %v3761, 0.0
    %3768 = vadd.xlane.f32.xlu0 %v3767
    %v3769 = vpop.xlane.xlu0 %3768
    %v3770 = vsel %vm393, %v3762, 0.0
    %3771 = vadd.xlane.f32.xlu0 %v3770
    %v3772 = vpop.xlane.xlu0 %3771
    %v3773 = vsel %vm393, %v3763, 0.0
    %3774 = vadd.xlane.f32.xlu0 %v3773
    %v3775 = vpop.xlane.xlu0 %3774
    %v3776 = vmul.f32 %v3766, %v406
    %v3777 = vmul.f32 %v3769, %v406
    %v3778 = vmul.f32 %v3772, %v406
    %v3779 = vmul.f32 %v3775, %v406
    %v3780 = vmul.f32 %v3756, %v3756
    %v3781 = vmul.f32 %v3757, %v3757
    %v3782 = vmul.f32 %v3758, %v3758
    %v3783 = vmul.f32 %v3759, %v3759
    %v3784 = vsub.f32 %v3776, %v3780
    %v3785 = vsub.f32 %v3777, %v3781
    %v3786 = vsub.f32 %v3778, %v3782
    %v3787 = vsub.f32 %v3779, %v3783
    %v3788 = vsub.f32 %v3740, %v3756
    %v3789 = vsub.f32 %v3741, %v3757
    %v3790 = vsub.f32 %v3742, %v3758
    %v3791 = vsub.f32 %v3743, %v3759
    %v3792 = vadd.f32 %v3784, 1e-05
    %v3793 = vadd.f32 %v3785, 1e-05
    %v3794 = vadd.f32 %v3786, 1e-05
    %v3795 = vadd.f32 %v3787, 1e-05
    %v3796 = vrsqrt.pop %v3792
    %v3797 = vrsqrt.pop %v3793
    %v3798 = vrsqrt.pop %v3794
    %v3799 = vrsqrt.pop %v3795
    %v3800 = vmul.f32 %v3788, %v3796
    %v3801 = vmul.f32 %v3789, %v3797
    %v3802 = vmul.f32 %v3790, %v3798
    %v3803 = vmul.f32 %v3791, %v3799
    %v3804 = vld [vmem:[%s16] sm:$0xff]
    %v3805 = vld [vmem:[%s16 + $0x8] sm:$0xff]
    %v3806 = vld [vmem:[%s16 + $0x10] sm:$0xff]
    %v3807 = vld [vmem:[%s16 + $0x18] sm:$0xff]
    %v3808 = vld [vmem:[%s17] sm:$0x1]
    %v3810 = vlaneseq
    %v3811 = vshrl.u32 %v3810, 7
    %v3812 = vsub.s32 0, %v3811
    %v3813 = vrot.slane %v3808, %v3812
    %v3816 = vsel %vm393, %v3800, 0
    %v3819 = vsel %vm393, %v3801, 0
    %v3822 = vsel %vm393, %v3802, 0
    %v3825 = vsel %vm393, %v3803, 0
    %3827 = vmatprep.subr.mxu0 0.0
    %3828 = vmatpush1.msra.mxu0 0.0
    %3829 = vmatprep.subr.mxu0 0.0
    %3830 = vmatpush1.msra.mxu0 0.0
    %3831 = vmatprep.subr.mxu0 0.0
    %3832 = vmatpush1.msra.mxu0 0.0
    %3833 = vmatprep.subr.mxu0 0.0
    %3834 = vmatpush1.msra.mxu0 0.0
    %3835 = vmatprep.subr.mxu0 0.0
    %3836 = vmatpush1.msra.mxu0 0.0
    %3837 = vmatprep.subr.mxu0 0.0
    %3838 = vmatpush1.msra.mxu0 0.0
    %3839 = vmatprep.subr.mxu0 0.0
    %3840 = vmatpush1.msra.mxu0 0.0
    %3841 = vmatprep.subr.mxu0 0.0
    %3842 = vmatpush1.msra.mxu0 0.0
    %3843 = vmatprep.subr.mxu0 0.0
    %3844 = vmatpush1.msra.mxu0 0.0
    %3845 = vmatprep.subr.mxu0 0.0
    %3846 = vmatpush1.msra.mxu0 0.0
    %3847 = vmatprep.subr.mxu0 0.0
    %3848 = vmatpush1.msra.mxu0 0.0
    %3849 = vmatprep.subr.mxu0 0.0
    %3850 = vmatpush1.msra.mxu0 0.0
    %3851 = vmatprep.subr.mxu0 0.0
    %3852 = vmatpush1.msra.mxu0 %v3807
    %3853 = vmatprep.subr.mxu0 0.0
    %3854 = vmatpush1.msra.mxu0 %v3806
    %3855 = vmatprep.subr.mxu0 0.0
    %3856 = vmatpush1.msra.mxu0 %v3805
    %3857 = vmatprep.subr.mxu0 0.0
    %3858 = vmatpush1.msra.mxu0 %v3804
    %3859 = vmatprep.subr.mxu0 0.0
    %3860 = vmatpush2.msra.mxu0 0.0
    %3861 = vmatprep.subr.mxu0 0.0
    %3862 = vmatpush2.msra.mxu0 0.0
    %3863 = vmatprep.subr.mxu0 0.0
    %3864 = vmatpush2.msra.mxu0 0.0
    %3865 = vmatprep.subr.mxu0 0.0
    %3866 = vmatpush2.msra.mxu0 0.0
    %3867 = vmatprep.subr.mxu0 0.0
    %3868 = vmatpush2.msra.mxu0 0.0
    %3869 = vmatprep.subr.mxu0 0.0
    %3870 = vmatpush2.msra.mxu0 0.0
    %3871 = vmatprep.subr.mxu0 0.0
    %3872 = vmatpush2.msra.mxu0 0.0
    %3873 = vmatprep.subr.mxu0 0.0
    %3874 = vmatpush2.msra.mxu0 0.0
    %3875 = vmatprep.subr.mxu0 0.0
    %3876 = vmatpush2.msra.mxu0 0.0
    %3877 = vmatprep.subr.mxu0 0.0
    %3878 = vmatpush2.msra.mxu0 0.0
    %3879 = vmatprep.subr.mxu0 0.0
    %3880 = vmatpush2.msra.mxu0 0.0
    %3881 = vmatprep.subr.mxu0 0.0
    %3882 = vmatpush2.msra.mxu0 0.0
    %3883 = vmatprep.subr.mxu0 0.0
    %3884 = vmatpush2.msra.mxu0 0.0
    %3885 = vmatprep.subr.mxu0 0.0
    %3886 = vmatpush2.msra.mxu0 0.0
    %3887 = vmatprep.subr.mxu0 0.0
    %3888 = vmatpush2.msra.mxu0 0.0
    %3889 = vmatprep.subr.mxu0 0.0
    %3890 = vmatpush2.msra.mxu0 0.0
    %3891 = vmatprep.mubr.f32.mxu0 0.0
    %3892 = vmatmul.mubr.f32.gmra.mxu0 %v3816
    %v3893 = vpop.f32.mrf.mxu0
    %v3894 = vadd.f32 %v3813, %v3893
    %v3895 = vpop.f32.mrf.mxu0
    %3896 = vmatprep.mubr.f32.mxu0 0.0
    %3897 = vmatmul.mubr.f32.gmra.mxu0 %v3819
    %v3898 = vpop.f32.mrf.mxu0
    %v3899 = vadd.f32 %v3813, %v3898
    %v3900 = vpop.f32.mrf.mxu0
    %3901 = vmatprep.mubr.f32.mxu0 0.0
    %3902 = vmatmul.mubr.f32.gmra.mxu0 %v3822
    %v3903 = vpop.f32.mrf.mxu0
    %v3904 = vadd.f32 %v3813, %v3903
    %v3905 = vpop.f32.mrf.mxu0
    %3906 = vmatprep.mubr.f32.mxu0 0.0
    %3907 = vmatmul.mubr.f32.gmra.mxu0 %v3825
    %v3908 = vpop.f32.mrf.mxu0
    %v3909 = vadd.f32 %v3813, %v3908
    %v3910 = vpop.f32.mrf.mxu0
    %3911 = vdwg.mxu0
    %3912 = vst [vmem:[#allocation17] sm:$0xff] %v3894
    %3913 = vst [vmem:[#allocation17 + $0x8] sm:$0xff] %v3899
    %3914 = vst [vmem:[#allocation17 + $0x10] sm:$0xff] %v3904
    %3915 = vst [vmem:[#allocation17 + $0x18] sm:$0xff] %v3909
    // Predicated region
    $region110: #{forward.1} parent=1 // pred_check
      _
    $region111: #{forward.1} parent=1 // pred_check_branch
      %3917 = sbr.rel (0) target = $region113
    $region112: #{forward.1} parent=1 // pred_region
      %s3919 = ssub.s32 512, 512
      %3920 = vsyncadd [#allocation4], %s3919
      %s3921 = sshll.u32 [#allocation17], 4
      %s3922 = int_to_ptr.vmem [resolvable:$true] %s3921
      %3927 = dma.vmem_to_hbm [thread:$0]  %s3922, 512, %s18, [#allocation4], 128, 128, 8
    $region113: #{forward.1} parent=1 // pred_fallthru
      _
    // Predicated region
    $region114: #{forward.1} parent=1 // pred_check
      _
    $region115: #{forward.1} parent=1 // pred_check_branch
      %3929 = sbr.rel (0) target = $region117
    $region116: #{forward.1} parent=1 // pred_region
      %3930 = dma.done [#allocation4], 512
    $region117: #{forward.1} parent=1 // pred_fallthru
      _
    %3931 = vsyncpa [#allocation3], 1
    %3932 = vsyncpa [#allocation6], 1
    %3933 = vsyncpa [#allocation9], 1
    %3934 = vsyncpa [#allocation12], 1
    %3935 = vsyncpa [#allocation15], 1
    %3936 = vsyncpa [#allocation4], 1

</llo_original>
